<compile_context>
chip_gen: v7x
topology: tpu7x:2x2x1
jax: 0.10.0
libtpu: 0.0.40
codegen_flags: <defaults>
</compile_context>

<pallas_src>
import functools

import jax
import jax.numpy as jnp
from jax.experimental import pallas as pl
from jax.experimental.pallas import tpu as pltpu


_MIB = 1024 * 1024


def _tpu_vmem_capacity_bytes(default=64 * _MIB):
    """Physical VMEM per TensorCore; conservative default if the query fails."""
    try:
        info = pltpu.get_tpu_info()
        cap = getattr(info, "vmem_capacity_bytes", None)
        if cap:
            return int(cap)
    except Exception:
        pass
    return default


def _is_multi_tensorcore(vmem_bytes):
    # v7x exposes 64 MiB/TC and has 2 TCs/chip; v5e/v6e expose 128 MiB, 1 TC.
    return vmem_bytes <= 64 * _MIB


def _block_footprint_bytes(wb, N, Cg, itemsize, heads_per_group, nW):
    """Per-grid-step VMEM footprint: pipelined q/k/v/out buffers, the f32
    output scratch slab, per-head f32 softmax intermediates, and the resident
    (double-buffered) bias / mask blocks."""
    per = 2 * 4 * wb * N * Cg * itemsize        # q, k, v, out (double-buffered)
    per += wb * N * Cg * 4                      # f32 output scratch slab
    per += 4 * wb * N * N * 4                   # scores / e / p / ctx live f32
    per += 2 * heads_per_group * N * N * 4      # bias block (double-buffered)
    if nW:
        per += 2 * nW * N * N * 4               # mask block (double-buffered)
        per += min(wb, nW) * N * N * 4          # mask cast to f32 in-kernel
    return per


def _pick_heads_per_group(num_heads, head_dim, C):
    """All heads fused for small C; 128-lane head groups for wide stages so the
    per-step footprint shrinks while output blocks stay 128-lane multiples."""
    if C < 512 or head_dim > 128 or 128 % head_dim != 0:
        return num_heads
    hpg = 128 // head_dim
    if num_heads % hpg != 0:
        return num_heads
    return hpg


def _pick_windows_per_block(B_, N, Cg, itemsize, heads_per_group, nW,
                            budget_bytes, prefer_even_steps, num_groups):
    """Largest window count per grid step that fits the VMEM budget, divides
    B_, is compatible with the mask period, and (on multi-TC parts only)
    prefers an even number of parallel grid steps."""
    def ok(d):
        if B_ % d != 0:
            return False
        if nW is not None and not (nW % d == 0 or d % nW == 0):
            return False
        return _block_footprint_bytes(
            d, N, Cg, itemsize, heads_per_group, nW) <= budget_bytes

    cands = [d for d in range(1, B_ + 1) if ok(d)] or [1]
    if prefer_even_steps:
        even = [d for d in cands if ((B_ // d) * num_groups) % 2 == 0]
        if even:
            cands = even
    return max(cands)


def _window_attn_body(q_ref, k_ref, v_ref, bias_ref, o_ref, out_f32, add_mask, *,
                      scale, heads, head_dim):
    """Attention for one block of WB windows and one head group, f32 softmax."""
    for h in range(heads):                     # heads-per-group small -> static unroll
        sl = slice(h * head_dim, (h + 1) * head_dim)
        # Scale q on the (WB, N, hd) tile (hd < N -> fewer VALU multiplies than
        # scaling the (WB, N, N) score accumulator); stays in the input dtype
        # so the MXU is fed low-precision operands.
        qh = q_ref[:, :, sl] * scale
        kh = k_ref[:, :, sl]
        vh = v_ref[:, :, sl]

        # scores = q @ k^T per window: contract last axes, batch over windows
        # (no explicit transpose of k -> no XLU work).
        scores = jnp.einsum("wnd,wmd->wnm", qh, kh,
                            preferred_element_type=jnp.float32)   # (WB, N, N) f32
        scores = scores + bias_ref[h].astype(jnp.float32)[None]
        scores = add_mask(scores)

        # numerically-stable softmax in f32
        m = jnp.max(scores, axis=-1, keepdims=True)
        e = jnp.exp(scores - m)
        s = jnp.sum(e, axis=-1, keepdims=True)
        # EUP approximate reciprocal + one Newton refinement: keeps the VALU
        # slot free while staying well inside the 1e-4 tolerance.
        r = pl.reciprocal(s, approx=True)
        r = r * (2.0 - s * r)
        p = e * r

        ctx = jnp.einsum("wnm,wmd->wnd", p.astype(vh.dtype), vh,
                         preferred_element_type=jnp.float32)      # (WB, N, hd)
        # Write this head into the f32 scratch slab: no H-wide live ranges and
        # no final concatenate materialization.
        out_f32[:, :, sl] = ctx

    # single lane-dense store of the full (WB, N, Cg) slab (C-last, unmasked vst)
    o_ref[...] = out_f32[...].astype(o_ref.dtype)


def _window_attn_kernel_masked(q_ref, k_ref, v_ref, bias_ref, mask_ref, o_ref,
                               out_f32, *, scale, heads, head_dim,
                               windows_per_block, nW):
    WB = windows_per_block
    # Global window index of window w in this block is b*WB + w; its mask index
    # is (b*WB + w) % nW. WB is chosen so that WB | nW or nW | WB.
    if WB == nW:
        mask_f32 = mask_ref[...].astype(jnp.float32)
        add_mask = lambda s: s + mask_f32
    elif WB < nW:
        period = nW // WB
        start = pl.multiple_of((pl.program_id(0) % period) * WB, WB)
        mask_f32 = mask_ref[pl.ds(start, WB)].astype(jnp.float32)
        add_mask = lambda s: s + mask_f32
    else:
        # WB is a multiple of nW: add the VMEM-resident (nW, N, N) mask by
        # broadcasting over window groups -- no (WB, N, N) repeat materialized.
        reps = WB // nW
        mask_f32 = mask_ref[...].astype(jnp.float32)

        def add_mask(s, _reps=reps, _m=mask_f32, _nW=nW, _WB=WB):
            n = s.shape[-1]
            return (s.reshape(_reps, _nW, n, n) + _m[None]).reshape(_WB, n, n)

    _window_attn_body(q_ref, k_ref, v_ref, bias_ref, o_ref, out_f32, add_mask,
                      scale=scale, heads=heads, head_dim=head_dim)


def _window_attn_kernel_nomask(q_ref, k_ref, v_ref, bias_ref, o_ref, out_f32, *,
                               scale, heads, head_dim):
    _window_attn_body(q_ref, k_ref, v_ref, bias_ref, o_ref, out_f32,
                      lambda s: s, scale=scale, heads=heads, head_dim=head_dim)


def window_attention_pallas(q, k, v, bias, mask=None, *, num_heads, scale,
                            windows_per_block=None, heads_per_block=None):
    """q, k, v: (B_, N, C); bias: (H, N, N); mask: (nW, N, N) or None.
    Returns (B_, N, C), matching WindowAttention.forward."""
    B_, N, C = q.shape
    head_dim = C // num_heads
    nW = None if mask is None else mask.shape[0]
    itemsize = jnp.dtype(q.dtype).itemsize

    vmem_phys = _tpu_vmem_capacity_bytes()
    budget = vmem_phys // 2                         # 64 MiB on v5e/v6e, 32 MiB on v7x
    prefer_even = _is_multi_tensorcore(vmem_phys)   # only 2-TC parts care

    heads_pg = heads_per_block or _pick_heads_per_group(num_heads, head_dim, C)
    assert num_heads % heads_pg == 0, "heads_per_block must divide num_heads"
    num_groups = num_heads // heads_pg
    Cg = heads_pg * head_dim

    WB = windows_per_block or _pick_windows_per_block(
        B_, N, Cg, itemsize, heads_pg, nW, budget, prefer_even, num_groups)
    assert B_ % WB == 0, "windows_per_block must divide num_windows * batch"
    if nW is not None:
        assert (nW % WB == 0) or (WB % nW == 0), \
            "windows_per_block must divide or be a multiple of nW"

    grid = (B_ // WB, num_groups)

    qkv_spec = pl.BlockSpec((WB, N, Cg), lambda b, g: (b, 0, g))
    out_spec = pl.BlockSpec((WB, N, Cg), lambda b, g: (b, 0, g))
    # bias: sliced per head group; constant over the window axis -> stays resident
    bias_spec = pl.BlockSpec((heads_pg, N, N), lambda b, g: (g, 0, 0))

    cost = pl.CostEstimate(
        flops=4 * B_ * num_heads * N * N * head_dim,            # two matmuls
        transcendentals=B_ * num_heads * N * N,                  # exp
        bytes_accessed=(4 * B_ * N * C * itemsize
                        + bias.size * jnp.dtype(bias.dtype).itemsize
                        + (0 if mask is None
                           else mask.size * jnp.dtype(mask.dtype).itemsize)),
    )

    vmem_need = _block_footprint_bytes(WB, N, Cg, itemsize, heads_pg, nW)
    vmem_limit = int(min(max(int(1.5 * vmem_need), 32 * _MIB),
                         int(0.78 * vmem_phys)))

    compiler_params = pltpu.CompilerParams(
        dimension_semantics=("parallel", "parallel"),
        vmem_limit_bytes=vmem_limit,
    )

    scratch_shapes = [pltpu.VMEM((WB, N, Cg), jnp.float32)]   # per-head output slab

    if mask is None:
        kernel = functools.partial(
            _window_attn_kernel_nomask,
            scale=scale, heads=heads_pg, head_dim=head_dim)
        in_specs = [qkv_spec, qkv_spec, qkv_spec, bias_spec]
        args = (q, k, v, bias)
    else:
        mask_spec = pl.BlockSpec(mask.shape, lambda b, g: (0, 0, 0))
        kernel = functools.partial(
            _window_attn_kernel_masked,
            scale=scale, heads=heads_pg, head_dim=head_dim,
            windows_per_block=WB, nW=nW)
        in_specs = [qkv_spec, qkv_spec, qkv_spec, bias_spec, mask_spec]
        args = (q, k, v, bias, mask)

    return pl.pallas_call(
        kernel,
        out_shape=jax.ShapeDtypeStruct((B_, N, C), q.dtype),
        grid_spec=pltpu.PrefetchScalarGridSpec(
            num_scalar_prefetch=0,
            grid=grid,
            in_specs=in_specs,
            out_specs=out_spec,
            scratch_shapes=scratch_shapes,
        ),
        compiler_params=compiler_params,
        cost_estimate=cost,
    )(*args)


def build_relative_position_bias(table, window_size):
    """table: ((2Wh-1)*(2Ww-1), H) -> bias (H, N, N), matching the PyTorch buffer math."""
    Wh, Ww = window_size
    coords_h = jnp.arange(Wh)
    coords_w = jnp.arange(Ww)
    coords = jnp.stack(jnp.meshgrid(coords_h, coords_w, indexing="ij"))   # (2, Wh, Ww)
    coords_flatten = coords.reshape(2, -1)                                # (2, N)
    rel = coords_flatten[:, :, None] - coords_flatten[:, None, :]         # (2, N, N)
    rel = rel.transpose(1, 2, 0)                                          # (N, N, 2)
    rel = rel.at[:, :, 0].add(Wh - 1)
    rel = rel.at[:, :, 1].add(Ww - 1)
    rel = rel.at[:, :, 0].multiply(2 * Ww - 1)
    relative_position_index = rel.sum(-1)                                 # (N, N)

    N = Wh * Ww
    bias = table[relative_position_index.reshape(-1)].reshape(N, N, -1)   # (N, N, H)
    return bias.transpose(2, 0, 1)                                        # (H, N, N)


def window_attention_reference(q, k, v, bias, mask, *, num_heads, scale):
    B_, N, C = q.shape
    hd = C // num_heads
    qh = q.reshape(B_, N, num_heads, hd).transpose(0, 2, 1, 3) * scale
    kh = k.reshape(B_, N, num_heads, hd).transpose(0, 2, 1, 3)
    vh = v.reshape(B_, N, num_heads, hd).transpose(0, 2, 1, 3)
    attn = jnp.einsum("bhnd,bhmd->bhnm", qh, kh) + bias[None]
    if mask is not None:
        nW = mask.shape[0]
        attn = attn.reshape(B_ // nW, nW, num_heads, N, N) + mask[None, :, None]
        attn = attn.reshape(B_, num_heads, N, N)
    attn = jax.nn.softmax(attn, axis=-1)
    out = jnp.einsum("bhnm,bhmd->bhnd", attn, vh)
    return out.transpose(0, 2, 1, 3).reshape(B_, N, C)


if __name__ == "__main__":
    # Small deterministic configuration
    dim = 32
    num_heads = 4
    window_size = (4, 4)
    Wh, Ww = window_size
    N = Wh * Ww            # 16
    head_dim = dim // num_heads
    scale = head_dim ** (-0.5)
    nW = 4                 # number of windows
    B = 2                  # batch
    B_ = nW * B            # 8

    key = jax.random.PRNGKey(0)
    kq, kk, kv, kt, km = jax.random.split(key, 5)

    q = jax.random.normal(kq, (B_, N, dim), dtype=jnp.float32)
    k = jax.random.normal(kk, (B_, N, dim), dtype=jnp.float32)
    v = jax.random.normal(kv, (B_, N, dim), dtype=jnp.float32)

    # relative_position_bias_table ~ trunc_normal(std=0.02)
    table = 0.02 * jax.random.truncated_normal(
        kt, -2.0, 2.0, ((2 * Wh - 1) * (2 * Ww - 1), num_heads), dtype=jnp.float32
    )
    bias = build_relative_position_bias(table, window_size)   # (H, N, N)

    # shifted-window style additive mask: (nW, N, N) with 0 / -inf-ish entries
    mask_bits = jax.random.bernoulli(km, 0.15, (nW, N, N))
    mask = jnp.where(mask_bits, -100.0, 0.0).astype(jnp.float32)

    # masked (shifted-window) path
    out = window_attention_pallas(q, k, v, bias, mask, num_heads=num_heads, scale=scale)
    out = jax.block_until_ready(out)
    ref = window_attention_reference(q, k, v, bias, mask, num_heads=num_heads, scale=scale)
    assert jnp.allclose(out, ref, atol=1e-4, rtol=1e-4), "masked path mismatch vs reference"

    # exercise the WB < nW mask-slicing path explicitly
    out_s = window_attention_pallas(q, k, v, bias, mask, num_heads=num_heads,
                                    scale=scale, windows_per_block=2)
    out_s = jax.block_until_ready(out_s)
    assert jnp.allclose(out_s, ref, atol=1e-4, rtol=1e-4), "WB<nW path mismatch vs reference"

    # no-mask (non-shifted window) path
    out_nm = window_attention_pallas(q, k, v, bias, None, num_heads=num_heads, scale=scale)
    out_nm = jax.block_until_ready(out_nm)
    ref_nm = window_attention_reference(q, k, v, bias, None, num_heads=num_heads, scale=scale)
    assert jnp.allclose(out_nm, ref_nm, atol=1e-4, rtol=1e-4), "no-mask path mismatch vs reference"

    print("KERNEL_OK")
</pallas_src>

<mosaic_0001>
module attributes {stable_mosaic.version = 11 : i64} {
  func.func @_window_attn_kernel_masked(%arg0: i32, %arg1: i32, %arg2: memref<4x16x32xf32, #tpu.memory_space<vmem>>, %arg3: memref<4x16x32xf32, #tpu.memory_space<vmem>>, %arg4: memref<4x16x32xf32, #tpu.memory_space<vmem>>, %arg5: memref<4x16x16xf32, #tpu.memory_space<vmem>>, %arg6: memref<4x16x16xf32, #tpu.memory_space<vmem>>, %arg7: memref<4x16x32xf32, #tpu.memory_space<vmem>>, %arg8: memref<4x16x32xf32, #tpu.memory_space<vmem>>) attributes {dimension_semantics = [#tpu.dimension_semantics<parallel>, #tpu.dimension_semantics<parallel>], iteration_bounds = array<i64: 2, 1>, scalar_prefetch = 0 : i64, scratch_operands = 1 : i64, tpu.core_type = #tpu.core_type<tc>, window_params = [{transform_indices = @transform_0, window_bounds = array<i64: 4, 16, 32>}, {transform_indices = @transform_1, window_bounds = array<i64: 4, 16, 32>}, {transform_indices = @transform_2, window_bounds = array<i64: 4, 16, 32>}, {transform_indices = @transform_3, window_bounds = array<i64: 4, 16, 16>}, {pipeline_mode = #tpu.pipeline_mode<synchronous>, transform_indices = @transform_4, window_bounds = array<i64: 4, 16, 16>}, {transform_indices = @transform_5, window_bounds = array<i64: 4, 16, 32>}]} {
    %c0 = arith.constant 0 : index
    %c0_0 = arith.constant 0 : index
    %c0_1 = arith.constant 0 : index
    %0 = vector.load %arg6[%c0, %c0_0, %c0_1] : memref<4x16x16xf32, #tpu.memory_space<vmem>>, vector<4x16x16xf32>
    %c0_2 = arith.constant 0 : index
    %c0_3 = arith.constant 0 : index
    %c0_4 = arith.constant 0 : index
    %1 = vector.load %arg2[%c0_2, %c0_3, %c0_4] : memref<4x16x32xf32, #tpu.memory_space<vmem>>, vector<4x16x8xf32>
    %cst = arith.constant 0.353553385 : f32
    %2 = vector.broadcast %cst : f32 to vector<4x16x8xf32>
    %3 = arith.mulf %1, %2 : vector<4x16x8xf32>
    %c0_5 = arith.constant 0 : index
    %c0_6 = arith.constant 0 : index
    %c0_7 = arith.constant 0 : index
    %4 = vector.load %arg3[%c0_5, %c0_6, %c0_7] : memref<4x16x32xf32, #tpu.memory_space<vmem>>, vector<4x16x8xf32>
    %c0_8 = arith.constant 0 : index
    %c0_9 = arith.constant 0 : index
    %c0_10 = arith.constant 0 : index
    %5 = vector.load %arg4[%c0_8, %c0_9, %c0_10] : memref<4x16x32xf32, #tpu.memory_space<vmem>>, vector<4x16x8xf32>
    "tpu.trace_start"() <{level = 10 : i32, message = "wnd,wmd->wnm"}> : () -> ()
    %cst_11 = arith.constant dense<0.000000e+00> : vector<4x16x16xf32>
    %6 = tpu.matmul %3, %4, %cst_11 {dimension_numbers = #tpu.dot_dimension_numbers<[2], [2], [1], [1], [0, 0, 0, 1, 1, 1], [0], [0]>} : vector<4x16x8xf32>, vector<4x16x8xf32>, vector<4x16x16xf32> -> vector<4x16x16xf32>
    "tpu.trace_stop"() : () -> ()
    %c0_12 = arith.constant 0 : index
    %c0_13 = arith.constant 0 : index
    %c0_14 = arith.constant 0 : index
    %7 = vector.load %arg5[%c0_12, %c0_13, %c0_14] : memref<4x16x16xf32, #tpu.memory_space<vmem>>, vector<1x16x16xf32>
    %8 = vector.shape_cast %7 : vector<1x16x16xf32> to vector<16x16xf32>
    %9 = vector.shape_cast %8 : vector<16x16xf32> to vector<1x16x16xf32>
    %10 = vector.broadcast %9 : vector<1x16x16xf32> to vector<4x16x16xf32>
    %11 = arith.addf %6, %10 : vector<4x16x16xf32>
    %12 = arith.addf %11, %0 : vector<4x16x16xf32>
    %cst_15 = arith.constant dense<0xFF800000> : vector<4x16xf32>
    %13 = vector.multi_reduction <maximumf>, %12, %cst_15 [2] : vector<4x16x16xf32> to vector<4x16xf32>
    %14 = vector.shape_cast %13 : vector<4x16xf32> to vector<4x16x1xf32>
    %15 = vector.broadcast %14 : vector<4x16x1xf32> to vector<4x16x16xf32>
    %16 = arith.subf %12, %15 : vector<4x16x16xf32>
    %17 = math.exp %16 : vector<4x16x16xf32>
    %cst_16 = arith.constant dense<0.000000e+00> : vector<4x16xf32>
    %18 = vector.multi_reduction <add>, %17, %cst_16 [2] : vector<4x16x16xf32> to vector<4x16xf32>
    %19 = vector.shape_cast %18 : vector<4x16xf32> to vector<4x16x1xf32>
    %20 = tpu.reciprocal %19 {approx = true} : vector<4x16x1xf32> -> vector<4x16x1xf32>
    %21 = arith.mulf %19, %20 : vector<4x16x1xf32>
    %cst_17 = arith.constant 2.000000e+00 : f32
    %22 = vector.broadcast %cst_17 : f32 to vector<4x16x1xf32>
    %23 = arith.subf %22, %21 : vector<4x16x1xf32>
    %24 = arith.mulf %20, %23 : vector<4x16x1xf32>
    %25 = vector.broadcast %24 : vector<4x16x1xf32> to vector<4x16x16xf32>
    %26 = arith.mulf %17, %25 : vector<4x16x16xf32>
    "tpu.trace_start"() <{level = 10 : i32, message = "wnm,wmd->wnd"}> : () -> ()
    %cst_18 = arith.constant dense<0.000000e+00> : vector<4x16x8xf32>
    %27 = tpu.matmul %26, %5, %cst_18 {dimension_numbers = #tpu.dot_dimension_numbers<[2], [1], [1], [2], [0, 0, 0, 1, 1, 2], [0], [0]>} : vector<4x16x16xf32>, vector<4x16x8xf32>, vector<4x16x8xf32> -> vector<4x16x8xf32>
    "tpu.trace_stop"() : () -> ()
    %c0_19 = arith.constant 0 : index
    %c0_20 = arith.constant 0 : index
    %c0_21 = arith.constant 0 : index
    %28 = vector.load %arg8[%c0_19, %c0_20, %c0_21] : memref<4x16x32xf32, #tpu.memory_space<vmem>>, vector<4x16x8xf32>
    tpu.vector_store %arg8[%c0_19, %c0_20, %c0_21], %27 {strides = array<i32>} : memref<4x16x32xf32, #tpu.memory_space<vmem>>, vector<4x16x8xf32>,
    %c0_22 = arith.constant 0 : index
    %c0_23 = arith.constant 0 : index
    %c8 = arith.constant 8 : index
    %29 = vector.load %arg2[%c0_22, %c0_23, %c8] : memref<4x16x32xf32, #tpu.memory_space<vmem>>, vector<4x16x8xf32>
    %cst_24 = arith.constant 0.353553385 : f32
    %30 = vector.broadcast %cst_24 : f32 to vector<4x16x8xf32>
    %31 = arith.mulf %29, %30 : vector<4x16x8xf32>
    %c0_25 = arith.constant 0 : index
    %c0_26 = arith.constant 0 : index
    %c8_27 = arith.constant 8 : index
    %32 = vector.load %arg3[%c0_25, %c0_26, %c8_27] : memref<4x16x32xf32, #tpu.memory_space<vmem>>, vector<4x16x8xf32>
    %c0_28 = arith.constant 0 : index
    %c0_29 = arith.constant 0 : index
    %c8_30 = arith.constant 8 : index
    %33 = vector.load %arg4[%c0_28, %c0_29, %c8_30] : memref<4x16x32xf32, #tpu.memory_space<vmem>>, vector<4x16x8xf32>
    "tpu.trace_start"() <{level = 10 : i32, message = "wnd,wmd->wnm"}> : () -> ()
    %cst_31 = arith.constant dense<0.000000e+00> : vector<4x16x16xf32>
    %34 = tpu.matmul %31, %32, %cst_31 {dimension_numbers = #tpu.dot_dimension_numbers<[2], [2], [1], [1], [0, 0, 0, 1, 1, 1], [0], [0]>} : vector<4x16x8xf32>, vector<4x16x8xf32>, vector<4x16x16xf32> -> vector<4x16x16xf32>
    "tpu.trace_stop"() : () -> ()
    %c1 = arith.constant 1 : index
    %c0_32 = arith.constant 0 : index
    %c0_33 = arith.constant 0 : index
    %35 = vector.load %arg5[%c1, %c0_32, %c0_33] : memref<4x16x16xf32, #tpu.memory_space<vmem>>, vector<1x16x16xf32>
    %36 = vector.shape_cast %35 : vector<1x16x16xf32> to vector<16x16xf32>
    %37 = vector.shape_cast %36 : vector<16x16xf32> to vector<1x16x16xf32>
    %38 = vector.broadcast %37 : vector<1x16x16xf32> to vector<4x16x16xf32>
    %39 = arith.addf %34, %38 : vector<4x16x16xf32>
    %40 = arith.addf %39, %0 : vector<4x16x16xf32>
    %cst_34 = arith.constant dense<0xFF800000> : vector<4x16xf32>
    %41 = vector.multi_reduction <maximumf>, %40, %cst_34 [2] : vector<4x16x16xf32> to vector<4x16xf32>
    %42 = vector.shape_cast %41 : vector<4x16xf32> to vector<4x16x1xf32>
    %43 = vector.broadcast %42 : vector<4x16x1xf32> to vector<4x16x16xf32>
    %44 = arith.subf %40, %43 : vector<4x16x16xf32>
    %45 = math.exp %44 : vector<4x16x16xf32>
    %cst_35 = arith.constant dense<0.000000e+00> : vector<4x16xf32>
    %46 = vector.multi_reduction <add>, %45, %cst_35 [2] : vector<4x16x16xf32> to vector<4x16xf32>
    %47 = vector.shape_cast %46 : vector<4x16xf32> to vector<4x16x1xf32>
    %48 = tpu.reciprocal %47 {approx = true} : vector<4x16x1xf32> -> vector<4x16x1xf32>
    %49 = arith.mulf %47, %48 : vector<4x16x1xf32>
    %cst_36 = arith.constant 2.000000e+00 : f32
    %50 = vector.broadcast %cst_36 : f32 to vector<4x16x1xf32>
    %51 = arith.subf %50, %49 : vector<4x16x1xf32>
    %52 = arith.mulf %48, %51 : vector<4x16x1xf32>
    %53 = vector.broadcast %52 : vector<4x16x1xf32> to vector<4x16x16xf32>
    %54 = arith.mulf %45, %53 : vector<4x16x16xf32>
    "tpu.trace_start"() <{level = 10 : i32, message = "wnm,wmd->wnd"}> : () -> ()
    %cst_37 = arith.constant dense<0.000000e+00> : vector<4x16x8xf32>
    %55 = tpu.matmul %54, %33, %cst_37 {dimension_numbers = #tpu.dot_dimension_numbers<[2], [1], [1], [2], [0, 0, 0, 1, 1, 2], [0], [0]>} : vector<4x16x16xf32>, vector<4x16x8xf32>, vector<4x16x8xf32> -> vector<4x16x8xf32>
    "tpu.trace_stop"() : () -> ()
    %c0_38 = arith.constant 0 : index
    %c0_39 = arith.constant 0 : index
    %c8_40 = arith.constant 8 : index
    %56 = vector.load %arg8[%c0_38, %c0_39, %c8_40] : memref<4x16x32xf32, #tpu.memory_space<vmem>>, vector<4x16x8xf32>
    tpu.vector_store %arg8[%c0_38, %c0_39, %c8_40], %55 {strides = array<i32>} : memref<4x16x32xf32, #tpu.memory_space<vmem>>, vector<4x16x8xf32>,
    %c0_41 = arith.constant 0 : index
    %c0_42 = arith.constant 0 : index
    %c16 = arith.constant 16 : index
    %57 = vector.load %arg2[%c0_41, %c0_42, %c16] : memref<4x16x32xf32, #tpu.memory_space<vmem>>, vector<4x16x8xf32>
    %cst_43 = arith.constant 0.353553385 : f32
    %58 = vector.broadcast %cst_43 : f32 to vector<4x16x8xf32>
    %59 = arith.mulf %57, %58 : vector<4x16x8xf32>
    %c0_44 = arith.constant 0 : index
    %c0_45 = arith.constant 0 : index
    %c16_46 = arith.constant 16 : index
    %60 = vector.load %arg3[%c0_44, %c0_45, %c16_46] : memref<4x16x32xf32, #tpu.memory_space<vmem>>, vector<4x16x8xf32>
    %c0_47 = arith.constant 0 : index
    %c0_48 = arith.constant 0 : index
    %c16_49 = arith.constant 16 : index
    %61 = vector.load %arg4[%c0_47, %c0_48, %c16_49] : memref<4x16x32xf32, #tpu.memory_space<vmem>>, vector<4x16x8xf32>
    "tpu.trace_start"() <{level = 10 : i32, message = "wnd,wmd->wnm"}> : () -> ()
    %cst_50 = arith.constant dense<0.000000e+00> : vector<4x16x16xf32>
    %62 = tpu.matmul %59, %60, %cst_50 {dimension_numbers = #tpu.dot_dimension_numbers<[2], [2], [1], [1], [0, 0, 0, 1, 1, 1], [0], [0]>} : vector<4x16x8xf32>, vector<4x16x8xf32>, vector<4x16x16xf32> -> vector<4x16x16xf32>
    "tpu.trace_stop"() : () -> ()
    %c2 = arith.constant 2 : index
    %c0_51 = arith.constant 0 : index
    %c0_52 = arith.constant 0 : index
    %63 = vector.load %arg5[%c2, %c0_51, %c0_52] : memref<4x16x16xf32, #tpu.memory_space<vmem>>, vector<1x16x16xf32>
    %64 = vector.shape_cast %63 : vector<1x16x16xf32> to vector<16x16xf32>
    %65 = vector.shape_cast %64 : vector<16x16xf32> to vector<1x16x16xf32>
    %66 = vector.broadcast %65 : vector<1x16x16xf32> to vector<4x16x16xf32>
    %67 = arith.addf %62, %66 : vector<4x16x16xf32>
    %68 = arith.addf %67, %0 : vector<4x16x16xf32>
    %cst_53 = arith.constant dense<0xFF800000> : vector<4x16xf32>
    %69 = vector.multi_reduction <maximumf>, %68, %cst_53 [2] : vector<4x16x16xf32> to vector<4x16xf32>
    %70 = vector.shape_cast %69 : vector<4x16xf32> to vector<4x16x1xf32>
    %71 = vector.broadcast %70 : vector<4x16x1xf32> to vector<4x16x16xf32>
    %72 = arith.subf %68, %71 : vector<4x16x16xf32>
    %73 = math.exp %72 : vector<4x16x16xf32>
    %cst_54 = arith.constant dense<0.000000e+00> : vector<4x16xf32>
    %74 = vector.multi_reduction <add>, %73, %cst_54 [2] : vector<4x16x16xf32> to vector<4x16xf32>
    %75 = vector.shape_cast %74 : vector<4x16xf32> to vector<4x16x1xf32>
    %76 = tpu.reciprocal %75 {approx = true} : vector<4x16x1xf32> -> vector<4x16x1xf32>
    %77 = arith.mulf %75, %76 : vector<4x16x1xf32>
    %cst_55 = arith.constant 2.000000e+00 : f32
    %78 = vector.broadcast %cst_55 : f32 to vector<4x16x1xf32>
    %79 = arith.subf %78, %77 : vector<4x16x1xf32>
    %80 = arith.mulf %76, %79 : vector<4x16x1xf32>
    %81 = vector.broadcast %80 : vector<4x16x1xf32> to vector<4x16x16xf32>
    %82 = arith.mulf %73, %81 : vector<4x16x16xf32>
    "tpu.trace_start"() <{level = 10 : i32, message = "wnm,wmd->wnd"}> : () -> ()
    %cst_56 = arith.constant dense<0.000000e+00> : vector<4x16x8xf32>
    %83 = tpu.matmul %82, %61, %cst_56 {dimension_numbers = #tpu.dot_dimension_numbers<[2], [1], [1], [2], [0, 0, 0, 1, 1, 2], [0], [0]>} : vector<4x16x16xf32>, vector<4x16x8xf32>, vector<4x16x8xf32> -> vector<4x16x8xf32>
    "tpu.trace_stop"() : () -> ()
    %c0_57 = arith.constant 0 : index
    %c0_58 = arith.constant 0 : index
    %c16_59 = arith.constant 16 : index
    %84 = vector.load %arg8[%c0_57, %c0_58, %c16_59] : memref<4x16x32xf32, #tpu.memory_space<vmem>>, vector<4x16x8xf32>
    tpu.vector_store %arg8[%c0_57, %c0_58, %c16_59], %83 {strides = array<i32>} : memref<4x16x32xf32, #tpu.memory_space<vmem>>, vector<4x16x8xf32>,
    %c0_60 = arith.constant 0 : index
    %c0_61 = arith.constant 0 : index
    %c24 = arith.constant 24 : index
    %85 = vector.load %arg2[%c0_60, %c0_61, %c24] : memref<4x16x32xf32, #tpu.memory_space<vmem>>, vector<4x16x8xf32>
    %cst_62 = arith.constant 0.353553385 : f32
    %86 = vector.broadcast %cst_62 : f32 to vector<4x16x8xf32>
    %87 = arith.mulf %85, %86 : vector<4x16x8xf32>
    %c0_63 = arith.constant 0 : index
    %c0_64 = arith.constant 0 : index
    %c24_65 = arith.constant 24 : index
    %88 = vector.load %arg3[%c0_63, %c0_64, %c24_65] : memref<4x16x32xf32, #tpu.memory_space<vmem>>, vector<4x16x8xf32>
    %c0_66 = arith.constant 0 : index
    %c0_67 = arith.constant 0 : index
    %c24_68 = arith.constant 24 : index
    %89 = vector.load %arg4[%c0_66, %c0_67, %c24_68] : memref<4x16x32xf32, #tpu.memory_space<vmem>>, vector<4x16x8xf32>
    "tpu.trace_start"() <{level = 10 : i32, message = "wnd,wmd->wnm"}> : () -> ()
    %cst_69 = arith.constant dense<0.000000e+00> : vector<4x16x16xf32>
    %90 = tpu.matmul %87, %88, %cst_69 {dimension_numbers = #tpu.dot_dimension_numbers<[2], [2], [1], [1], [0, 0, 0, 1, 1, 1], [0], [0]>} : vector<4x16x8xf32>, vector<4x16x8xf32>, vector<4x16x16xf32> -> vector<4x16x16xf32>
    "tpu.trace_stop"() : () -> ()
    %c3 = arith.constant 3 : index
    %c0_70 = arith.constant 0 : index
    %c0_71 = arith.constant 0 : index
    %91 = vector.load %arg5[%c3, %c0_70, %c0_71] : memref<4x16x16xf32, #tpu.memory_space<vmem>>, vector<1x16x16xf32>
    %92 = vector.shape_cast %91 : vector<1x16x16xf32> to vector<16x16xf32>
    %93 = vector.shape_cast %92 : vector<16x16xf32> to vector<1x16x16xf32>
    %94 = vector.broadcast %93 : vector<1x16x16xf32> to vector<4x16x16xf32>
    %95 = arith.addf %90, %94 : vector<4x16x16xf32>
    %96 = arith.addf %95, %0 : vector<4x16x16xf32>
    %cst_72 = arith.constant dense<0xFF800000> : vector<4x16xf32>
    %97 = vector.multi_reduction <maximumf>, %96, %cst_72 [2] : vector<4x16x16xf32> to vector<4x16xf32>
    %98 = vector.shape_cast %97 : vector<4x16xf32> to vector<4x16x1xf32>
    %99 = vector.broadcast %98 : vector<4x16x1xf32> to vector<4x16x16xf32>
    %100 = arith.subf %96, %99 : vector<4x16x16xf32>
    %101 = math.exp %100 : vector<4x16x16xf32>
    %cst_73 = arith.constant dense<0.000000e+00> : vector<4x16xf32>
    %102 = vector.multi_reduction <add>, %101, %cst_73 [2] : vector<4x16x16xf32> to vector<4x16xf32>
    %103 = vector.shape_cast %102 : vector<4x16xf32> to vector<4x16x1xf32>
    %104 = tpu.reciprocal %103 {approx = true} : vector<4x16x1xf32> -> vector<4x16x1xf32>
    %105 = arith.mulf %103, %104 : vector<4x16x1xf32>
    %cst_74 = arith.constant 2.000000e+00 : f32
    %106 = vector.broadcast %cst_74 : f32 to vector<4x16x1xf32>
    %107 = arith.subf %106, %105 : vector<4x16x1xf32>
    %108 = arith.mulf %104, %107 : vector<4x16x1xf32>
    %109 = vector.broadcast %108 : vector<4x16x1xf32> to vector<4x16x16xf32>
    %110 = arith.mulf %101, %109 : vector<4x16x16xf32>
    "tpu.trace_start"() <{level = 10 : i32, message = "wnm,wmd->wnd"}> : () -> ()
    %cst_75 = arith.constant dense<0.000000e+00> : vector<4x16x8xf32>
    %111 = tpu.matmul %110, %89, %cst_75 {dimension_numbers = #tpu.dot_dimension_numbers<[2], [1], [1], [2], [0, 0, 0, 1, 1, 2], [0], [0]>} : vector<4x16x16xf32>, vector<4x16x8xf32>, vector<4x16x8xf32> -> vector<4x16x8xf32>
    "tpu.trace_stop"() : () -> ()
    %c0_76 = arith.constant 0 : index
    %c0_77 = arith.constant 0 : index
    %c24_78 = arith.constant 24 : index
    %112 = vector.load %arg8[%c0_76, %c0_77, %c24_78] : memref<4x16x32xf32, #tpu.memory_space<vmem>>, vector<4x16x8xf32>
    tpu.vector_store %arg8[%c0_76, %c0_77, %c24_78], %111 {strides = array<i32>} : memref<4x16x32xf32, #tpu.memory_space<vmem>>, vector<4x16x8xf32>,
    %c0_79 = arith.constant 0 : index
    %c0_80 = arith.constant 0 : index
    %c0_81 = arith.constant 0 : index
    %113 = vector.load %arg8[%c0_79, %c0_80, %c0_81] : memref<4x16x32xf32, #tpu.memory_space<vmem>>, vector<4x16x32xf32>
    %c0_82 = arith.constant 0 : index
    %c0_83 = arith.constant 0 : index
    %c0_84 = arith.constant 0 : index
    %114 = vector.load %arg7[%c0_82, %c0_83, %c0_84] : memref<4x16x32xf32, #tpu.memory_space<vmem>>, vector<4x16x32xf32>
    tpu.vector_store %arg7[%c0_82, %c0_83, %c0_84], %113 {strides = array<i32>} : memref<4x16x32xf32, #tpu.memory_space<vmem>>, vector<4x16x32xf32>,
    return
  }
  func.func @transform_0(%arg0: i32, %arg1: i32) -> (i32, i32, i32) {
    %c0_i32 = arith.constant 0 : i32
    %c0_i32_0 = arith.constant 0 : i32
    return %arg0, %c0_i32, %arg1 : i32, i32, i32
  }
  func.func @transform_1(%arg0: i32, %arg1: i32) -> (i32, i32, i32) {
    %c0_i32 = arith.constant 0 : i32
    %c0_i32_0 = arith.constant 0 : i32
    return %arg0, %c0_i32, %arg1 : i32, i32, i32
  }
  func.func @transform_2(%arg0: i32, %arg1: i32) -> (i32, i32, i32) {
    %c0_i32 = arith.constant 0 : i32
    %c0_i32_0 = arith.constant 0 : i32
    return %arg0, %c0_i32, %arg1 : i32, i32, i32
  }
  func.func @transform_3(%arg0: i32, %arg1: i32) -> (i32, i32, i32) {
    %c0_i32 = arith.constant 0 : i32
    %c0_i32_0 = arith.constant 0 : i32
    %c0_i32_1 = arith.constant 0 : i32
    return %arg1, %c0_i32, %c0_i32_0 : i32, i32, i32
  }
  func.func @transform_4(%arg0: i32, %arg1: i32) -> (i32, i32, i32) {
    %c0_i32 = arith.constant 0 : i32
    %c0_i32_0 = arith.constant 0 : i32
    %c0_i32_1 = arith.constant 0 : i32
    %c0_i32_2 = arith.constant 0 : i32
    return %c0_i32, %c0_i32_0, %c0_i32_1 : i32, i32, i32
  }
  func.func @transform_5(%arg0: i32, %arg1: i32) -> (i32, i32, i32) {
    %c0_i32 = arith.constant 0 : i32
    %c0_i32_0 = arith.constant 0 : i32
    return %arg0, %c0_i32, %arg1 : i32, i32, i32
  }
}

</mosaic_0001>

<llo_original>
// kernel: tpu_custom_call.1
$region0: #{tpu_custom_call.1}
  #allocation0 [shape = 'u32[]', space=smem, size = 0x4, offset = 0x4, fixed_abs, tag = 'smem constant byte address 0x4 - core index']
  #allocation1 [shape = 'u32[144,128]{1,0:T(1,128)}', space=vmem, size = 0x12000, scoped, tag = 'internal scratch']
  #allocation2 [shape = 'f32[4,16,32]{2,1,0:T(8,128)}', space=vmem, size = 0x8000, scoped, tag = 'scratch operand']
  %s0 = inlined_call_operand.hbm [shape: f32[8,16,32], index: 0, kind: input, shape index: {}]
  %s1 = inlined_call_operand.hbm [shape: f32[8,16,32], index: 1, kind: input, shape index: {}]
  %s2 = inlined_call_operand.hbm [shape: f32[8,16,32], index: 2, kind: input, shape index: {}]
  %s3 = inlined_call_operand.hbm [shape: f32[4,16,16], index: 3, kind: input, shape index: {}]
  %s4 = inlined_call_operand.hbm [shape: f32[4,16,16], index: 4, kind: input, shape index: {}]
  %s5 = inlined_call_operand.hbm [shape: f32[8,16,32], index: 5, kind: output, shape index: {}]
  %s6 = sld [smem:[#allocation0]]
  $region73: #{tpu_custom_call.1} parent=0
    _
  %s8 = ssub.s32 1, %s6
  %s9 = scalar_select 0, %s8, %s6
  $region1: #{tpu_custom_call.1} parent=0
    #allocation3 [shape = 'u8[65536]{0}', space=vmem, size = 0x10000, scoped, tag = 'input window, operand 0']
    #allocation4 [shape = 's32[2]{0}', space=sflag, size = 0x8, scoped, tag = 'scoped memory for tpu_custom_call.1']
    #allocation5 [shape = 's32[2]{0}', space=sflag, size = 0x8, scoped, tag = 'scoped memory for tpu_custom_call.1']
    #allocation6 [shape = 'u8[65536]{0}', space=vmem, size = 0x10000, scoped, tag = 'input window, operand 1']
    #allocation7 [shape = 's32[2]{0}', space=sflag, size = 0x8, scoped, tag = 'scoped memory for tpu_custom_call.1']
    #allocation8 [shape = 'u8[65536]{0}', space=vmem, size = 0x10000, scoped, tag = 'input window, operand 2']
    #allocation9 [shape = 'u8[32768]{0}', space=vmem, size = 0x8000, scoped, tag = 'input window, operand 3, single buffered']
    #allocation10 [shape = 's32[1]{0}', space=sflag, size = 0x4, scoped, tag = 'scoped memory for tpu_custom_call.1']
    #allocation11 [shape = 'u8[32768]{0}', space=vmem, size = 0x8000, scoped, tag = 'input window, operand 4, single buffered']
    #allocation12 [shape = 'u8[65536]{0}', space=vmem, size = 0x10000, scoped, tag = 'output window, operand 0']
    %10 = vsyncpa [#allocation4], 0
    %s11 = scalar_lea.sflag [#allocation4], 1
    %12 = vsyncpa %s11, 0
    %13 = vsyncpa [#allocation7], 0
    %s14 = scalar_lea.sflag [#allocation7], 1
    %15 = vsyncpa %s14, 0
    %16 = vsyncpa [#allocation10], 0
    %17 = vsyncpa [#allocation5], 0
    %s18 = scalar_lea.sflag [#allocation5], 1
    %19 = vsyncpa %s18, 0
    loop: start=0, step=1, limit=4
    $region2: #{tpu_custom_call.1} parent=1 // loop_pre_header
      _
    $region3: #{tpu_custom_call.1} parent=1 // loop_header
      %s21 = sphi 0, %s25
      %p22 = scmp.ge.s32.totalorder %s21, 4
      %s28 = sphi 0, %s40
      %s29 = sphi 0, %s36
      %s30 = sphi 0, %s28
      %s31 = sphi 0, %s29
      %s32 = sphi 0, %s30
      %s33 = sphi 0, %s31
      %s45 = sphi 0, %s47
      %s48 = sphi 0, %s45
      %s49 = sphi 0, %s48
      %s65 = sphi 0, %s49
      %s73 = sphi 0, %s75
      %s76 = sphi 0, %s73
      %s77 = sphi 0, %s76
      %s93 = sphi 0, %s77
      %s101 = sphi 0, %s103
      %s104 = sphi 0, %s101
      %s105 = sphi 0, %s104
      %s121 = sphi 0, %s105
      %s127 = sphi 0, %s129
      %s130 = sphi 0, %s127
      %s131 = sphi 0, %s130
      %s147 = sphi 0, %s131
      %s151 = sphi 0, %s151
      %s153 = sphi 0, %s151
      %s154 = sphi 0, %s153
      %s168 = sphi 0, %s154
      %s176 = sphi 0, %s178
      %s179 = sphi 0, %s176
      %s180 = sphi 0, %s179
      %s196 = sphi 0, %s180
    $region4: #{tpu_custom_call.1} parent=1 // loop_header_branch
      %24 = sbr.rel (%p22) target = $region8
    $region5: #{tpu_custom_call.1} parent=1 // loop_body
      %s26 = ssub.s32 %s21, 1
      %s27 = ssub.s32 %s21, 2
      %s34 = sadd.s32 1, %s29
      %p35 = scmp.ge.s32.totalorder %s34, 1
      %s36 = scalar_select %p35, 0, %s34
      %s37 = sadd.s32 1, %s28
      %s38 = scalar_select %p35, %s37, %s28
      %p39 = scmp.ge.s32.totalorder %s38, 2
      %s40 = scalar_select %p39, 0, %s38
      %s41 = ssub.s32 %s28, %s40
      %s42 = ssub.s32 %s29, %s36
      %s43 = sor.u32 %s41, %s42
      %p44 = scmp.eq.s32.totalorder %s43, 0
      %s46 = sadd.s32 %s45, 1
      %s47 = scalar_select %p44, %s45, %s46
      %p50 = pneg %p44
      %p51 = scmp.eq.s32.totalorder %s21, 1
      %p52 = por %p50, %p51
      %p53 = scmp.ne.s32.totalorder %s45, %s48
      %p54 = scmp.eq.s32.totalorder %s21, 0
      %p55 = por %p53, %p54
      %p56 = scmp.ne.s32.totalorder %s45, %s48
      %p57 = scmp.eq.s32.totalorder %s26, 1
      %p58 = por %p56, %p57
      %p59 = scmp.ne.s32.totalorder %s48, %s49
      %p60 = scmp.eq.s32.totalorder %s26, 0
      %p61 = por %p59, %p60
      %p62 = scmp.ne.s32.totalorder %s48, %s49
      %p63 = scmp.eq.s32.totalorder %s27, 1
      %p64 = por %p62, %p63
      %p66 = scmp.ne.s32.totalorder %s49, %s65
      %p67 = scmp.eq.s32.totalorder %s27, 0
      %p68 = por %p66, %p67
      %s69 = ssub.s32 %s28, %s40
      %s70 = ssub.s32 %s29, %s36
      %s71 = sor.u32 %s69, %s70
      %p72 = scmp.eq.s32.totalorder %s71, 0
      %s74 = sadd.s32 %s73, 1
      %s75 = scalar_select %p72, %s73, %s74
      %p78 = pneg %p72
      %p79 = scmp.eq.s32.totalorder %s21, 1
      %p80 = por %p78, %p79
      %p81 = scmp.ne.s32.totalorder %s73, %s76
      %p82 = scmp.eq.s32.totalorder %s21, 0
      %p83 = por %p81, %p82
      %p84 = scmp.ne.s32.totalorder %s73, %s76
      %p85 = scmp.eq.s32.totalorder %s26, 1
      %p86 = por %p84, %p85
      %p87 = scmp.ne.s32.totalorder %s76, %s77
      %p88 = scmp.eq.s32.totalorder %s26, 0
      %p89 = por %p87, %p88
      %p90 = scmp.ne.s32.totalorder %s76, %s77
      %p91 = scmp.eq.s32.totalorder %s27, 1
      %p92 = por %p90, %p91
      %p94 = scmp.ne.s32.totalorder %s77, %s93
      %p95 = scmp.eq.s32.totalorder %s27, 0
      %p96 = por %p94, %p95
      %s97 = ssub.s32 %s28, %s40
      %s98 = ssub.s32 %s29, %s36
      %s99 = sor.u32 %s97, %s98
      %p100 = scmp.eq.s32.totalorder %s99, 0
      %s102 = sadd.s32 %s101, 1
      %s103 = scalar_select %p100, %s101, %s102
      %p106 = pneg %p100
      %p107 = scmp.eq.s32.totalorder %s21, 1
      %p108 = por %p106, %p107
      %p109 = scmp.ne.s32.totalorder %s101, %s104
      %p110 = scmp.eq.s32.totalorder %s21, 0
      %p111 = por %p109, %p110
      %p112 = scmp.ne.s32.totalorder %s101, %s104
      %p113 = scmp.eq.s32.totalorder %s26, 1
      %p114 = por %p112, %p113
      %p115 = scmp.ne.s32.totalorder %s104, %s105
      %p116 = scmp.eq.s32.totalorder %s26, 0
      %p117 = por %p115, %p116
      %p118 = scmp.ne.s32.totalorder %s104, %s105
      %p119 = scmp.eq.s32.totalorder %s27, 1
      %p120 = por %p118, %p119
      %p122 = scmp.ne.s32.totalorder %s105, %s121
      %p123 = scmp.eq.s32.totalorder %s27, 0
      %p124 = por %p122, %p123
      %s125 = ssub.s32 %s29, %s36
      %p126 = scmp.eq.s32.totalorder %s125, 0
      %s128 = sadd.s32 %s127, 1
      %s129 = scalar_select %p126, %s127, %s128
      %p132 = pneg %p126
      %p133 = scmp.eq.s32.totalorder %s21, 1
      %p134 = por %p132, %p133
      %p135 = scmp.ne.s32.totalorder %s127, %s130
      %p136 = scmp.eq.s32.totalorder %s21, 0
      %p137 = por %p135, %p136
      %p138 = scmp.ne.s32.totalorder %s127, %s130
      %p139 = scmp.eq.s32.totalorder %s26, 1
      %p140 = por %p138, %p139
      %p141 = scmp.ne.s32.totalorder %s130, %s131
      %p142 = scmp.eq.s32.totalorder %s26, 0
      %p143 = por %p141, %p142
      %p144 = scmp.ne.s32.totalorder %s130, %s131
      %p145 = scmp.eq.s32.totalorder %s27, 1
      %p146 = por %p144, %p145
      %p148 = scmp.ne.s32.totalorder %s131, %s147
      %p149 = scmp.eq.s32.totalorder %s27, 0
      %p150 = por %p148, %p149
      %s152 = sadd.s32 %s151, 1
      %p155 = scmp.eq.s32.totalorder %s21, 1
      %p156 = scmp.ne.s32.totalorder %s151, %s153
      %p157 = scmp.eq.s32.totalorder %s21, 0
      %p158 = por %p156, %p157
      %p159 = scmp.ne.s32.totalorder %s151, %s153
      %p160 = scmp.eq.s32.totalorder %s26, 1
      %p161 = por %p159, %p160
      %p162 = scmp.ne.s32.totalorder %s153, %s154
      %p163 = scmp.eq.s32.totalorder %s26, 0
      %p164 = por %p162, %p163
      %p165 = scmp.ne.s32.totalorder %s153, %s154
      %p166 = scmp.eq.s32.totalorder %s27, 1
      %p167 = por %p165, %p166
      %p169 = scmp.ne.s32.totalorder %s154, %s168
      %p170 = scmp.eq.s32.totalorder %s27, 0
      %p171 = por %p169, %p170
      %s172 = ssub.s32 %s28, %s40
      %s173 = ssub.s32 %s29, %s36
      %s174 = sor.u32 %s172, %s173
      %p175 = scmp.eq.s32.totalorder %s174, 0
      %s177 = sadd.s32 %s176, 1
      %s178 = scalar_select %p175, %s176, %s177
      %p181 = pneg %p175
      %p182 = scmp.eq.s32.totalorder %s21, 1
      %p183 = por %p181, %p182
      %p184 = scmp.ne.s32.totalorder %s176, %s179
      %p185 = scmp.eq.s32.totalorder %s21, 0
      %p186 = por %p184, %p185
      %p187 = scmp.ne.s32.totalorder %s176, %s179
      %p188 = scmp.eq.s32.totalorder %s26, 1
      %p189 = por %p187, %p188
      %p190 = scmp.ne.s32.totalorder %s179, %s180
      %p191 = scmp.eq.s32.totalorder %s26, 0
      %p192 = por %p190, %p191
      %p193 = scmp.ne.s32.totalorder %s179, %s180
      %p194 = scmp.eq.s32.totalorder %s27, 1
      %p195 = por %p193, %p194
      %p197 = scmp.ne.s32.totalorder %s180, %s196
      %p198 = scmp.eq.s32.totalorder %s27, 0
      %p199 = por %p197, %p198
      %p200 = scmp.le.s32.totalorder 1, %s21
      %p201 = scmp.lt.s32.totalorder %s21, 3
      %p202 = pnand %p200, %p201
      %p203 = pneg %p202
      // Predicated region
      $region9: #{tpu_custom_call.1} parent=5 // pred_check
        _
      $region10: #{tpu_custom_call.1} parent=5 // pred_check_branch
        %205 = sbr.rel (%p202) target = $region12
      $region11: #{tpu_custom_call.1} parent=5 // pred_region
        %s206 = ssub.s32 %s21, 1
        // Predicated region
        $region13: #{tpu_custom_call.1} parent=11 // pred_check
          %p207 = pneg %p143
        $region14: #{tpu_custom_call.1} parent=11 // pred_check_branch
          %209 = sbr.rel (%p207) target = $region16
        $region15: #{tpu_custom_call.1} parent=11 // pred_region
          %s210 = smul.u32 4, %s31
          %s212 = ssub.s32 1024, 1024
          %213 = vsyncadd [#allocation10], %s212
          %s214 = smul.addr %s210, 2
          %s215 = smul.addr %s214, 128
          %s216 = scalar_lea.hbm %s3, %s215
          %s217 = sshll.u32 [#allocation9], 4
          %s218 = int_to_ptr.vmem [resolvable:$true] %s217
          %223 = dma.hbm_to_vmem [thread:$0]  %s216, 1024, %s218, [#allocation10], 128, 128, 8
        $region16: #{tpu_custom_call.1} parent=11 // pred_fallthru
          _
        // Predicated region
        $region17: #{tpu_custom_call.1} parent=11 // pred_check
          %p224 = pneg %p164
        $region18: #{tpu_custom_call.1} parent=11 // pred_check_branch
          %226 = sbr.rel (%p224) target = $region20
        $region19: #{tpu_custom_call.1} parent=11 // pred_region
          %s228 = ssub.s32 1024, 1024
          %229 = vsyncadd [#allocation10], %s228
          %s230 = sshll.u32 [#allocation11], 4
          %s231 = int_to_ptr.vmem [resolvable:$true] %s230
          %236 = dma.hbm_to_vmem [thread:$0]  %s4, 1024, %s231, [#allocation10], 128, 128, 8
        $region20: #{tpu_custom_call.1} parent=11 // pred_fallthru
          _
      $region12: #{tpu_custom_call.1} parent=5 // pred_fallthru
        _
      %p237 = scmp.lt.s32.totalorder %s21, 2
      // Predicated region
      $region21: #{tpu_custom_call.1} parent=5 // pred_check
        %p238 = pneg %p237
      $region22: #{tpu_custom_call.1} parent=5 // pred_check_branch
        %240 = sbr.rel (%p238) target = $region24
      $region23: #{tpu_custom_call.1} parent=5 // pred_region
        // Predicated region
        $region25: #{tpu_custom_call.1} parent=23 // pred_check
          %p241 = pneg %p55
        $region26: #{tpu_custom_call.1} parent=23 // pred_check_branch
          %243 = sbr.rel (%p241) target = $region28
        $region27: #{tpu_custom_call.1} parent=23 // pred_region
          %s244 = sand.u32 %s45, 1
          %s245 = scalar_lea.sflag [#allocation4], %s244
          %s246 = sand.u32 %s45, 1
          %s247 = smul.addr %s246, 64
          %s248 = scalar_lea.vmem [#allocation3], %s247
          %s249 = smul.u32 4, %s28
          %s251 = ssub.s32 1024, 1024
          %252 = vsyncadd %s245, %s251
          %s253 = smul.addr %s249, 2
          %s254 = sadd.s32 %s29, %s253
          %s255 = smul.addr %s254, 128
          %s256 = scalar_lea.hbm %s0, %s255
          %s257 = sshll.u32 %s248, 4
          %s258 = int_to_ptr.vmem [resolvable:$true] %s257
          %263 = dma.hbm_to_vmem [thread:$0]  %s256, 1024, %s258, %s245, 128, 128, 8
        $region28: #{tpu_custom_call.1} parent=23 // pred_fallthru
          _
        // Predicated region
        $region29: #{tpu_custom_call.1} parent=23 // pred_check
          %p264 = pneg %p83
        $region30: #{tpu_custom_call.1} parent=23 // pred_check_branch
          %266 = sbr.rel (%p264) target = $region32
        $region31: #{tpu_custom_call.1} parent=23 // pred_region
          %s267 = sand.u32 %s21, 1
          %s268 = scalar_lea.sflag [#allocation7], %s267
          %s269 = sand.u32 %s73, 1
          %s270 = smul.addr %s269, 64
          %s271 = scalar_lea.vmem [#allocation6], %s270
          %s272 = smul.u32 4, %s28
          %s274 = ssub.s32 1024, 1024
          %275 = vsyncadd %s268, %s274
          %s276 = smul.addr %s272, 2
          %s277 = sadd.s32 %s29, %s276
          %s278 = smul.addr %s277, 128
          %s279 = scalar_lea.hbm %s1, %s278
          %s280 = sshll.u32 %s271, 4
          %s281 = int_to_ptr.vmem [resolvable:$true] %s280
          %286 = dma.hbm_to_vmem [thread:$0]  %s279, 1024, %s281, %s268, 128, 128, 8
        $region32: #{tpu_custom_call.1} parent=23 // pred_fallthru
          _
        // Predicated region
        $region33: #{tpu_custom_call.1} parent=23 // pred_check
          %p287 = pneg %p111
        $region34: #{tpu_custom_call.1} parent=23 // pred_check_branch
          %289 = sbr.rel (%p287) target = $region36
        $region35: #{tpu_custom_call.1} parent=23 // pred_region
          %s290 = sand.u32 %s21, 1
          %s291 = scalar_lea.sflag [#allocation7], %s290
          %s292 = sand.u32 %s101, 1
          %s293 = smul.addr %s292, 64
          %s294 = scalar_lea.vmem [#allocation8], %s293
          %s295 = smul.u32 4, %s28
          %s297 = ssub.s32 1024, 1024
          %298 = vsyncadd %s291, %s297
          %s299 = smul.addr %s295, 2
          %s300 = sadd.s32 %s29, %s299
          %s301 = smul.addr %s300, 128
          %s302 = scalar_lea.hbm %s2, %s301
          %s303 = sshll.u32 %s294, 4
          %s304 = int_to_ptr.vmem [resolvable:$true] %s303
          %309 = dma.hbm_to_vmem [thread:$0]  %s302, 1024, %s304, %s291, 128, 128, 8
        $region36: #{tpu_custom_call.1} parent=23 // pred_fallthru
          _
      $region24: #{tpu_custom_call.1} parent=5 // pred_fallthru
        _
      %p310 = scmp.le.s32.totalorder 1, %s21
      %p311 = scmp.lt.s32.totalorder %s21, 3
      %p312 = pnand %p310, %p311
      %p313 = pneg %p312
      // Predicated region
      $region37: #{tpu_custom_call.1} parent=5 // pred_check
        _
      $region38: #{tpu_custom_call.1} parent=5 // pred_check_branch
        %315 = sbr.rel (%p312) target = $region40
      $region39: #{tpu_custom_call.1} parent=5 // pred_region
        %s316 = ssub.s32 %s21, 1
        %s317 = sand.u32 %s48, 1
        %s318 = scalar_lea.sflag [#allocation4], %s317
        %s319 = sand.u32 %s48, 1
        %s320 = smul.addr %s319, 64
        %s321 = scalar_lea.vmem [#allocation3], %s320
        // Predicated region
        $region41: #{tpu_custom_call.1} parent=39 // pred_check
          %p322 = pneg %p61
        $region42: #{tpu_custom_call.1} parent=39 // pred_check_branch
          %324 = sbr.rel (%p322) target = $region44
        $region43: #{tpu_custom_call.1} parent=39 // pred_region
          %325 = dma.done %s318, 1024
        $region44: #{tpu_custom_call.1} parent=39 // pred_fallthru
          _
        %s326 = sand.u32 %s26, 1
        %s327 = scalar_lea.sflag [#allocation7], %s326
        %s328 = sand.u32 %s76, 1
        %s329 = smul.addr %s328, 64
        %s330 = scalar_lea.vmem [#allocation6], %s329
        // Predicated region
        $region45: #{tpu_custom_call.1} parent=39 // pred_check
          %p331 = pneg %p89
        $region46: #{tpu_custom_call.1} parent=39 // pred_check_branch
          %333 = sbr.rel (%p331) target = $region48
        $region47: #{tpu_custom_call.1} parent=39 // pred_region
          %334 = dma.done %s327, 1024
        $region48: #{tpu_custom_call.1} parent=39 // pred_fallthru
          _
        %s335 = sand.u32 %s26, 1
        %s336 = scalar_lea.sflag [#allocation7], %s335
        %s337 = sand.u32 %s104, 1
        %s338 = smul.addr %s337, 64
        %s339 = scalar_lea.vmem [#allocation8], %s338
        // Predicated region
        $region49: #{tpu_custom_call.1} parent=39 // pred_check
          %p340 = pneg %p117
        $region50: #{tpu_custom_call.1} parent=39 // pred_check_branch
          %342 = sbr.rel (%p340) target = $region52
        $region51: #{tpu_custom_call.1} parent=39 // pred_region
          %343 = dma.done %s336, 1024
        $region52: #{tpu_custom_call.1} parent=39 // pred_fallthru
          _
        // Predicated region
        $region53: #{tpu_custom_call.1} parent=39 // pred_check
          %p344 = pneg %p143
        $region54: #{tpu_custom_call.1} parent=39 // pred_check_branch
          %346 = sbr.rel (%p344) target = $region56
        $region55: #{tpu_custom_call.1} parent=39 // pred_region
          %347 = dma.done [#allocation10], 1024
        $region56: #{tpu_custom_call.1} parent=39 // pred_fallthru
          _
        // Predicated region
        $region57: #{tpu_custom_call.1} parent=39 // pred_check
          %p348 = pneg %p164
        $region58: #{tpu_custom_call.1} parent=39 // pred_check_branch
          %350 = sbr.rel (%p348) target = $region60
        $region59: #{tpu_custom_call.1} parent=39 // pred_region
          %351 = dma.done [#allocation10], 1024
        $region60: #{tpu_custom_call.1} parent=39 // pred_fallthru
          _
        %s352 = sand.u32 %s48, 1
        %s353 = scalar_lea.sflag [#allocation4], %s352
        %s354 = sand.u32 %s48, 1
        %s355 = smul.addr %s354, 64
        %s356 = scalar_lea.vmem [#allocation3], %s355
        %p357 = pneg %p61
        %p358 = pneg %p58
        %s359 = sand.u32 %s26, 1
        %s360 = scalar_lea.sflag [#allocation7], %s359
        %s361 = sand.u32 %s76, 1
        %s362 = smul.addr %s361, 64
        %s363 = scalar_lea.vmem [#allocation6], %s362
        %p364 = pneg %p89
        %p365 = pneg %p86
        %s366 = sand.u32 %s26, 1
        %s367 = scalar_lea.sflag [#allocation7], %s366
        %s368 = sand.u32 %s104, 1
        %s369 = smul.addr %s368, 64
        %s370 = scalar_lea.vmem [#allocation8], %s369
        %p371 = pneg %p117
        %p372 = pneg %p114
        %p373 = pneg %p143
        %p374 = pneg %p140
        %p375 = pneg %p164
        %p376 = pneg %p161
        %p377 = pneg %p192
        %p378 = pneg %p189
        %s379 = sand.u32 %s179, 1
        %s380 = scalar_lea.sflag [#allocation5], %s379
        %s381 = sand.u32 %s179, 1
        %s382 = smul.addr %s381, 64
        %s383 = scalar_lea.vmem [#allocation12], %s382
        %s384 = smul.u32 4, %s30
        %s385 = smul.u32 4, %s30
        %s386 = smul.u32 4, %s30
        %s387 = smul.u32 4, %s31
        %s388 = smul.u32 4, %s30
        %v389 = vld [vmem:[#allocation11] sm:$0xff]
        %v390 = vld [vmem:[#allocation11 + $0x8] sm:$0xff]
        %v391 = vld [vmem:[#allocation11 + $0x10] sm:$0xff]
        %v392 = vld [vmem:[#allocation11 + $0x18] sm:$0xff]
        %v393 = vld [vmem:[#allocation11 + $0x20] sm:$0xff]
        %v394 = vld [vmem:[#allocation11 + $0x28] sm:$0xff]
        %v395 = vld [vmem:[#allocation11 + $0x30] sm:$0xff]
        %v396 = vld [vmem:[#allocation11 + $0x38] sm:$0xff]
        %v397 = vld [vmem:[%s321] sm:$0xff]
        %v398 = vld [vmem:[%s321 + $0x8] sm:$0xff]
        %v399 = vld [vmem:[%s321 + $0x10] sm:$0xff]
        %v400 = vld [vmem:[%s321 + $0x18] sm:$0xff]
        %v401 = vld [vmem:[%s321 + $0x20] sm:$0xff]
        %v402 = vld [vmem:[%s321 + $0x28] sm:$0xff]
        %v403 = vld [vmem:[%s321 + $0x30] sm:$0xff]
        %v404 = vld [vmem:[%s321 + $0x38] sm:$0xff]
        %v405 = vmul.f32 %v397, 0.35355338
        %v406 = vmul.f32 %v398, 0.35355338
        %v407 = vmul.f32 %v399, 0.35355338
        %v408 = vmul.f32 %v400, 0.35355338
        %v409 = vmul.f32 %v401, 0.35355338
        %v410 = vmul.f32 %v402, 0.35355338
        %v411 = vmul.f32 %v403, 0.35355338
        %v412 = vmul.f32 %v404, 0.35355338
        %v413 = vld [vmem:[%s330] sm:$0xff]
        %v414 = vld [vmem:[%s330 + $0x8] sm:$0xff]
        %v415 = vld [vmem:[%s330 + $0x10] sm:$0xff]
        %v416 = vld [vmem:[%s330 + $0x18] sm:$0xff]
        %v417 = vld [vmem:[%s330 + $0x20] sm:$0xff]
        %v418 = vld [vmem:[%s330 + $0x28] sm:$0xff]
        %v419 = vld [vmem:[%s330 + $0x30] sm:$0xff]
        %v420 = vld [vmem:[%s330 + $0x38] sm:$0xff]
        %v421 = vld [vmem:[%s339] sm:$0xff]
        %v422 = vld [vmem:[%s339 + $0x8] sm:$0xff]
        %v423 = vld [vmem:[%s339 + $0x10] sm:$0xff]
        %v424 = vld [vmem:[%s339 + $0x18] sm:$0xff]
        %v425 = vld [vmem:[%s339 + $0x20] sm:$0xff]
        %v426 = vld [vmem:[%s339 + $0x28] sm:$0xff]
        %v427 = vld [vmem:[%s339 + $0x30] sm:$0xff]
        %v428 = vld [vmem:[%s339 + $0x38] sm:$0xff]
        %v429 = vld [vmem:[#allocation9] sm:$0xff]
        %v430 = vld [vmem:[#allocation9 + $0x8] sm:$0xff]
        %vm431 = vcmask 64512
        %v433 = vsel %vm431, %v405, 0
        %v436 = vsel %vm431, %v406, 0
        %v439 = vsel %vm431, %v413, 0
        %v442 = vsel %vm431, %v414, 0
        %444 = vmatprep.subr.mxu0 0.0
        %445 = vmatpush1.xpose.msra.mxu0 %v439
        %446 = vmatprep.subr.mxu0 0.0
        %447 = vmatpush1.xpose.msra.mxu0 %v442
        %448 = vmatprep.subr.mxu0 0.0
        %449 = vmatpush1.xpose.msra.mxu0 0.0
        %450 = vmatprep.subr.mxu0 0.0
        %451 = vmatpush1.xpose.msra.mxu0 0.0
        %452 = vmatprep.subr.mxu0 0.0
        %453 = vmatpush1.xpose.msra.mxu0 0.0
        %454 = vmatprep.subr.mxu0 0.0
        %455 = vmatpush1.xpose.msra.mxu0 0.0
        %456 = vmatprep.subr.mxu0 0.0
        %457 = vmatpush1.xpose.msra.mxu0 0.0
        %458 = vmatprep.subr.mxu0 0.0
        %459 = vmatpush1.xpose.msra.mxu0 0.0
        %460 = vmatprep.subr.mxu0 0.0
        %461 = vmatpush1.xpose.msra.mxu0 0.0
        %462 = vmatprep.subr.mxu0 0.0
        %463 = vmatpush1.xpose.msra.mxu0 0.0
        %464 = vmatprep.subr.mxu0 0.0
        %465 = vmatpush1.xpose.msra.mxu0 0.0
        %466 = vmatprep.subr.mxu0 0.0
        %467 = vmatpush1.xpose.msra.mxu0 0.0
        %468 = vmatprep.subr.mxu0 0.0
        %469 = vmatpush1.xpose.msra.mxu0 0.0
        %470 = vmatprep.subr.mxu0 0.0
        %471 = vmatpush1.xpose.msra.mxu0 0.0
        %472 = vmatprep.subr.mxu0 0.0
        %473 = vmatpush1.xpose.msra.mxu0 0.0
        %474 = vmatprep.subr.mxu0 0.0
        %475 = vmatpush1.xpose.msra.mxu0 0.0
        %476 = vmatprep.subr.mxu0 0.0
        %477 = vmatpush1.xpose.msra.mxu0 0.0
        %478 = vmatprep.subr.mxu0 0.0
        %479 = vmatpush1.xpose.msra.mxu0 0.0
        %480 = vmatprep.subr.mxu0 0.0
        %481 = vmatpush1.xpose.msra.mxu0 0.0
        %482 = vmatprep.subr.mxu0 0.0
        %483 = vmatpush1.xpose.msra.mxu0 0.0
        %484 = vmatprep.subr.mxu0 0.0
        %485 = vmatpush1.xpose.msra.mxu0 0.0
        %486 = vmatprep.subr.mxu0 0.0
        %487 = vmatpush1.xpose.msra.mxu0 0.0
        %488 = vmatprep.subr.mxu0 0.0
        %489 = vmatpush1.xpose.msra.mxu0 0.0
        %490 = vmatprep.subr.mxu0 0.0
        %491 = vmatpush1.xpose.msra.mxu0 0.0
        %492 = vmatprep.subr.mxu0 0.0
        %493 = vmatpush1.xpose.msra.mxu0 0.0
        %494 = vmatprep.subr.mxu0 0.0
        %495 = vmatpush1.xpose.msra.mxu0 0.0
        %496 = vmatprep.subr.mxu0 0.0
        %497 = vmatpush1.xpose.msra.mxu0 0.0
        %498 = vmatprep.subr.mxu0 0.0
        %499 = vmatpush1.xpose.msra.mxu0 0.0
        %500 = vmatprep.subr.mxu0 0.0
        %501 = vmatpush1.xpose.msra.mxu0 0.0
        %502 = vmatprep.subr.mxu0 0.0
        %503 = vmatpush1.xpose.msra.mxu0 0.0
        %504 = vmatprep.subr.mxu0 0.0
        %505 = vmatpush1.xpose.msra.mxu0 0.0
        %506 = vmatprep.subr.mxu0 0.0
        %507 = vmatpush1.xpose.msra.mxu0 0.0
        %508 = vmatprep.mubr.f32.mxu0 0.0
        %509 = vmatmul.mubr.f32.gmra.mrb[0].mxu0 %v433
        %v510 = vpop.f32.mrb[0].mxu0
        %v511 = vadd.f32 %v429, %v510
        %v512 = vpop.f32.mrb[0].mxu0
        %513 = vmatprep.mubr.f32.mxu0 0.0
        %514 = vmatmul.mubr.f32.gmra.mrb[0].mxu0 %v436
        %v515 = vpop.f32.mrb[0].mxu0
        %v516 = vadd.f32 %v430, %v515
        %v517 = vpop.f32.mrb[0].mxu0
        %518 = vdwg.mxu0
        %v520 = vsel %vm431, %v407, 0
        %v523 = vsel %vm431, %v408, 0
        %v526 = vsel %vm431, %v415, 0
        %v529 = vsel %vm431, %v416, 0
        %531 = vmatprep.subr.mxu0 0.0
        %532 = vmatpush1.xpose.msra.mxu0 %v526
        %533 = vmatprep.subr.mxu0 0.0
        %534 = vmatpush1.xpose.msra.mxu0 %v529
        %535 = vmatprep.subr.mxu0 0.0
        %536 = vmatpush1.xpose.msra.mxu0 0.0
        %537 = vmatprep.subr.mxu0 0.0
        %538 = vmatpush1.xpose.msra.mxu0 0.0
        %539 = vmatprep.subr.mxu0 0.0
        %540 = vmatpush1.xpose.msra.mxu0 0.0
        %541 = vmatprep.subr.mxu0 0.0
        %542 = vmatpush1.xpose.msra.mxu0 0.0
        %543 = vmatprep.subr.mxu0 0.0
        %544 = vmatpush1.xpose.msra.mxu0 0.0
        %545 = vmatprep.subr.mxu0 0.0
        %546 = vmatpush1.xpose.msra.mxu0 0.0
        %547 = vmatprep.subr.mxu0 0.0
        %548 = vmatpush1.xpose.msra.mxu0 0.0
        %549 = vmatprep.subr.mxu0 0.0
        %550 = vmatpush1.xpose.msra.mxu0 0.0
        %551 = vmatprep.subr.mxu0 0.0
        %552 = vmatpush1.xpose.msra.mxu0 0.0
        %553 = vmatprep.subr.mxu0 0.0
        %554 = vmatpush1.xpose.msra.mxu0 0.0
        %555 = vmatprep.subr.mxu0 0.0
        %556 = vmatpush1.xpose.msra.mxu0 0.0
        %557 = vmatprep.subr.mxu0 0.0
        %558 = vmatpush1.xpose.msra.mxu0 0.0
        %559 = vmatprep.subr.mxu0 0.0
        %560 = vmatpush1.xpose.msra.mxu0 0.0
        %561 = vmatprep.subr.mxu0 0.0
        %562 = vmatpush1.xpose.msra.mxu0 0.0
        %563 = vmatprep.subr.mxu0 0.0
        %564 = vmatpush1.xpose.msra.mxu0 0.0
        %565 = vmatprep.subr.mxu0 0.0
        %566 = vmatpush1.xpose.msra.mxu0 0.0
        %567 = vmatprep.subr.mxu0 0.0
        %568 = vmatpush1.xpose.msra.mxu0 0.0
        %569 = vmatprep.subr.mxu0 0.0
        %570 = vmatpush1.xpose.msra.mxu0 0.0
        %571 = vmatprep.subr.mxu0 0.0
        %572 = vmatpush1.xpose.msra.mxu0 0.0
        %573 = vmatprep.subr.mxu0 0.0
        %574 = vmatpush1.xpose.msra.mxu0 0.0
        %575 = vmatprep.subr.mxu0 0.0
        %576 = vmatpush1.xpose.msra.mxu0 0.0
        %577 = vmatprep.subr.mxu0 0.0
        %578 = vmatpush1.xpose.msra.mxu0 0.0
        %579 = vmatprep.subr.mxu0 0.0
        %580 = vmatpush1.xpose.msra.mxu0 0.0
        %581 = vmatprep.subr.mxu0 0.0
        %582 = vmatpush1.xpose.msra.mxu0 0.0
        %583 = vmatprep.subr.mxu0 0.0
        %584 = vmatpush1.xpose.msra.mxu0 0.0
        %585 = vmatprep.subr.mxu0 0.0
        %586 = vmatpush1.xpose.msra.mxu0 0.0
        %587 = vmatprep.subr.mxu0 0.0
        %588 = vmatpush1.xpose.msra.mxu0 0.0
        %589 = vmatprep.subr.mxu0 0.0
        %590 = vmatpush1.xpose.msra.mxu0 0.0
        %591 = vmatprep.subr.mxu0 0.0
        %592 = vmatpush1.xpose.msra.mxu0 0.0
        %593 = vmatprep.subr.mxu0 0.0
        %594 = vmatpush1.xpose.msra.mxu0 0.0
        %595 = vmatprep.mubr.f32.mxu0 0.0
        %596 = vmatmul.mubr.f32.gmra.mrb[0].mxu0 %v520
        %v597 = vpop.f32.mrb[0].mxu0
        %v598 = vadd.f32 %v429, %v597
        %v599 = vpop.f32.mrb[0].mxu0
        %600 = vmatprep.mubr.f32.mxu0 0.0
        %601 = vmatmul.mubr.f32.gmra.mrb[0].mxu0 %v523
        %v602 = vpop.f32.mrb[0].mxu0
        %v603 = vadd.f32 %v430, %v602
        %v604 = vpop.f32.mrb[0].mxu0
        %605 = vdwg.mxu0
        %v607 = vsel %vm431, %v409, 0
        %v610 = vsel %vm431, %v410, 0
        %v613 = vsel %vm431, %v417, 0
        %v616 = vsel %vm431, %v418, 0
        %618 = vmatprep.subr.mxu0 0.0
        %619 = vmatpush1.xpose.msra.mxu0 %v613
        %620 = vmatprep.subr.mxu0 0.0
        %621 = vmatpush1.xpose.msra.mxu0 %v616
        %622 = vmatprep.subr.mxu0 0.0
        %623 = vmatpush1.xpose.msra.mxu0 0.0
        %624 = vmatprep.subr.mxu0 0.0
        %625 = vmatpush1.xpose.msra.mxu0 0.0
        %626 = vmatprep.subr.mxu0 0.0
        %627 = vmatpush1.xpose.msra.mxu0 0.0
        %628 = vmatprep.subr.mxu0 0.0
        %629 = vmatpush1.xpose.msra.mxu0 0.0
        %630 = vmatprep.subr.mxu0 0.0
        %631 = vmatpush1.xpose.msra.mxu0 0.0
        %632 = vmatprep.subr.mxu0 0.0
        %633 = vmatpush1.xpose.msra.mxu0 0.0
        %634 = vmatprep.subr.mxu0 0.0
        %635 = vmatpush1.xpose.msra.mxu0 0.0
        %636 = vmatprep.subr.mxu0 0.0
        %637 = vmatpush1.xpose.msra.mxu0 0.0
        %638 = vmatprep.subr.mxu0 0.0
        %639 = vmatpush1.xpose.msra.mxu0 0.0
        %640 = vmatprep.subr.mxu0 0.0
        %641 = vmatpush1.xpose.msra.mxu0 0.0
        %642 = vmatprep.subr.mxu0 0.0
        %643 = vmatpush1.xpose.msra.mxu0 0.0
        %644 = vmatprep.subr.mxu0 0.0
        %645 = vmatpush1.xpose.msra.mxu0 0.0
        %646 = vmatprep.subr.mxu0 0.0
        %647 = vmatpush1.xpose.msra.mxu0 0.0
        %648 = vmatprep.subr.mxu0 0.0
        %649 = vmatpush1.xpose.msra.mxu0 0.0
        %650 = vmatprep.subr.mxu0 0.0
        %651 = vmatpush1.xpose.msra.mxu0 0.0
        %652 = vmatprep.subr.mxu0 0.0
        %653 = vmatpush1.xpose.msra.mxu0 0.0
        %654 = vmatprep.subr.mxu0 0.0
        %655 = vmatpush1.xpose.msra.mxu0 0.0
        %656 = vmatprep.subr.mxu0 0.0
        %657 = vmatpush1.xpose.msra.mxu0 0.0
        %658 = vmatprep.subr.mxu0 0.0
        %659 = vmatpush1.xpose.msra.mxu0 0.0
        %660 = vmatprep.subr.mxu0 0.0
        %661 = vmatpush1.xpose.msra.mxu0 0.0
        %662 = vmatprep.subr.mxu0 0.0
        %663 = vmatpush1.xpose.msra.mxu0 0.0
        %664 = vmatprep.subr.mxu0 0.0
        %665 = vmatpush1.xpose.msra.mxu0 0.0
        %666 = vmatprep.subr.mxu0 0.0
        %667 = vmatpush1.xpose.msra.mxu0 0.0
        %668 = vmatprep.subr.mxu0 0.0
        %669 = vmatpush1.xpose.msra.mxu0 0.0
        %670 = vmatprep.subr.mxu0 0.0
        %671 = vmatpush1.xpose.msra.mxu0 0.0
        %672 = vmatprep.subr.mxu0 0.0
        %673 = vmatpush1.xpose.msra.mxu0 0.0
        %674 = vmatprep.subr.mxu0 0.0
        %675 = vmatpush1.xpose.msra.mxu0 0.0
        %676 = vmatprep.subr.mxu0 0.0
        %677 = vmatpush1.xpose.msra.mxu0 0.0
        %678 = vmatprep.subr.mxu0 0.0
        %679 = vmatpush1.xpose.msra.mxu0 0.0
        %680 = vmatprep.subr.mxu0 0.0
        %681 = vmatpush1.xpose.msra.mxu0 0.0
        %682 = vmatprep.mubr.f32.mxu0 0.0
        %683 = vmatmul.mubr.f32.gmra.mrb[0].mxu0 %v607
        %v684 = vpop.f32.mrb[0].mxu0
        %v685 = vadd.f32 %v429, %v684
        %v686 = vpop.f32.mrb[0].mxu0
        %687 = vmatprep.mubr.f32.mxu0 0.0
        %688 = vmatmul.mubr.f32.gmra.mrb[0].mxu0 %v610
        %v689 = vpop.f32.mrb[0].mxu0
        %v690 = vadd.f32 %v430, %v689
        %v691 = vpop.f32.mrb[0].mxu0
        %692 = vdwg.mxu0
        %v694 = vsel %vm431, %v411, 0
        %v697 = vsel %vm431, %v412, 0
        %v700 = vsel %vm431, %v419, 0
        %v703 = vsel %vm431, %v420, 0
        %705 = vmatprep.subr.mxu0 0.0
        %706 = vmatpush1.xpose.msra.mxu0 %v700
        %707 = vmatprep.subr.mxu0 0.0
        %708 = vmatpush1.xpose.msra.mxu0 %v703
        %709 = vmatprep.subr.mxu0 0.0
        %710 = vmatpush1.xpose.msra.mxu0 0.0
        %711 = vmatprep.subr.mxu0 0.0
        %712 = vmatpush1.xpose.msra.mxu0 0.0
        %713 = vmatprep.subr.mxu0 0.0
        %714 = vmatpush1.xpose.msra.mxu0 0.0
        %715 = vmatprep.subr.mxu0 0.0
        %716 = vmatpush1.xpose.msra.mxu0 0.0
        %717 = vmatprep.subr.mxu0 0.0
        %718 = vmatpush1.xpose.msra.mxu0 0.0
        %719 = vmatprep.subr.mxu0 0.0
        %720 = vmatpush1.xpose.msra.mxu0 0.0
        %721 = vmatprep.subr.mxu0 0.0
        %722 = vmatpush1.xpose.msra.mxu0 0.0
        %723 = vmatprep.subr.mxu0 0.0
        %724 = vmatpush1.xpose.msra.mxu0 0.0
        %725 = vmatprep.subr.mxu0 0.0
        %726 = vmatpush1.xpose.msra.mxu0 0.0
        %727 = vmatprep.subr.mxu0 0.0
        %728 = vmatpush1.xpose.msra.mxu0 0.0
        %729 = vmatprep.subr.mxu0 0.0
        %730 = vmatpush1.xpose.msra.mxu0 0.0
        %731 = vmatprep.subr.mxu0 0.0
        %732 = vmatpush1.xpose.msra.mxu0 0.0
        %733 = vmatprep.subr.mxu0 0.0
        %734 = vmatpush1.xpose.msra.mxu0 0.0
        %735 = vmatprep.subr.mxu0 0.0
        %736 = vmatpush1.xpose.msra.mxu0 0.0
        %737 = vmatprep.subr.mxu0 0.0
        %738 = vmatpush1.xpose.msra.mxu0 0.0
        %739 = vmatprep.subr.mxu0 0.0
        %740 = vmatpush1.xpose.msra.mxu0 0.0
        %741 = vmatprep.subr.mxu0 0.0
        %742 = vmatpush1.xpose.msra.mxu0 0.0
        %743 = vmatprep.subr.mxu0 0.0
        %744 = vmatpush1.xpose.msra.mxu0 0.0
        %745 = vmatprep.subr.mxu0 0.0
        %746 = vmatpush1.xpose.msra.mxu0 0.0
        %747 = vmatprep.subr.mxu0 0.0
        %748 = vmatpush1.xpose.msra.mxu0 0.0
        %749 = vmatprep.subr.mxu0 0.0
        %750 = vmatpush1.xpose.msra.mxu0 0.0
        %751 = vmatprep.subr.mxu0 0.0
        %752 = vmatpush1.xpose.msra.mxu0 0.0
        %753 = vmatprep.subr.mxu0 0.0
        %754 = vmatpush1.xpose.msra.mxu0 0.0
        %755 = vmatprep.subr.mxu0 0.0
        %756 = vmatpush1.xpose.msra.mxu0 0.0
        %757 = vmatprep.subr.mxu0 0.0
        %758 = vmatpush1.xpose.msra.mxu0 0.0
        %759 = vmatprep.subr.mxu0 0.0
        %760 = vmatpush1.xpose.msra.mxu0 0.0
        %761 = vmatprep.subr.mxu0 0.0
        %762 = vmatpush1.xpose.msra.mxu0 0.0
        %763 = vmatprep.subr.mxu0 0.0
        %764 = vmatpush1.xpose.msra.mxu0 0.0
        %765 = vmatprep.subr.mxu0 0.0
        %766 = vmatpush1.xpose.msra.mxu0 0.0
        %767 = vmatprep.subr.mxu0 0.0
        %768 = vmatpush1.xpose.msra.mxu0 0.0
        %769 = vmatprep.mubr.f32.mxu0 0.0
        %770 = vmatmul.mubr.f32.gmra.mrb[0].mxu0 %v694
        %v771 = vpop.f32.mrb[0].mxu0
        %v772 = vadd.f32 %v429, %v771
        %v773 = vpop.f32.mrb[0].mxu0
        %774 = vmatprep.mubr.f32.mxu0 0.0
        %775 = vmatmul.mubr.f32.gmra.mrb[0].mxu0 %v697
        %v776 = vpop.f32.mrb[0].mxu0
        %v777 = vadd.f32 %v430, %v776
        %v778 = vpop.f32.mrb[0].mxu0
        %779 = vdwg.mxu0
        %v780 = vadd.f32 %v511, %v389
        %v781 = vadd.f32 %v516, %v390
        %v782 = vadd.f32 %v598, %v391
        %v783 = vadd.f32 %v603, %v392
        %v784 = vadd.f32 %v685, %v393
        %v785 = vadd.f32 %v690, %v394
        %v786 = vadd.f32 %v772, %v395
        %v787 = vadd.f32 %v777, %v396
        %vm788 = vcmask 130048
        %v789 = vsel %vm788, %v780, -inf
        %790 = vmax.xlane.f32.xlu0 %v789
        %v791 = vpop.xlane.xlu0 %790
        %v792 = vsel %vm788, %v781, -inf
        %793 = vmax.xlane.f32.xlu0 %v792
        %v794 = vpop.xlane.xlu0 %793
        %v795 = vsel %vm788, %v782, -inf
        %796 = vmax.xlane.f32.xlu0 %v795
        %v797 = vpop.xlane.xlu0 %796
        %v798 = vsel %vm788, %v783, -inf
        %799 = vmax.xlane.f32.xlu0 %v798
        %v800 = vpop.xlane.xlu0 %799
        %v801 = vsel %vm788, %v784, -inf
        %802 = vmax.xlane.f32.xlu0 %v801
        %v803 = vpop.xlane.xlu0 %802
        %v804 = vsel %vm788, %v785, -inf
        %805 = vmax.xlane.f32.xlu0 %v804
        %v806 = vpop.xlane.xlu0 %805
        %v807 = vsel %vm788, %v786, -inf
        %808 = vmax.xlane.f32.xlu0 %v807
        %v809 = vpop.xlane.xlu0 %808
        %v810 = vsel %vm788, %v787, -inf
        %811 = vmax.xlane.f32.xlu0 %v810
        %v812 = vpop.xlane.xlu0 %811
        %v813 = vsub.f32 %v780, %v791
        %v814 = vsub.f32 %v781, %v794
        %v815 = vsub.f32 %v782, %v797
        %v816 = vsub.f32 %v783, %v800
        %v817 = vsub.f32 %v784, %v803
        %v818 = vsub.f32 %v785, %v806
        %v819 = vsub.f32 %v786, %v809
        %v820 = vsub.f32 %v787, %v812
        %v821 = vmul.f32 %v813, 1.442695
        %v822 = vpow.pop %v821
        %v823 = vmul.f32 %v814, 1.442695
        %v824 = vpow.pop %v823
        %v825 = vmul.f32 %v815, 1.442695
        %v826 = vpow.pop %v825
        %v827 = vmul.f32 %v816, 1.442695
        %v828 = vpow.pop %v827
        %v829 = vmul.f32 %v817, 1.442695
        %v830 = vpow.pop %v829
        %v831 = vmul.f32 %v818, 1.442695
        %v832 = vpow.pop %v831
        %v833 = vmul.f32 %v819, 1.442695
        %v834 = vpow.pop %v833
        %v835 = vmul.f32 %v820, 1.442695
        %v836 = vpow.pop %v835
        %v837 = vsel %vm788, %v822, 0.0
        %838 = vadd.xlane.f32.xlu0 %v837
        %v839 = vpop.xlane.xlu0 %838
        %v840 = vsel %vm788, %v824, 0.0
        %841 = vadd.xlane.f32.xlu0 %v840
        %v842 = vpop.xlane.xlu0 %841
        %v843 = vsel %vm788, %v826, 0.0
        %844 = vadd.xlane.f32.xlu0 %v843
        %v845 = vpop.xlane.xlu0 %844
        %v846 = vsel %vm788, %v828, 0.0
        %847 = vadd.xlane.f32.xlu0 %v846
        %v848 = vpop.xlane.xlu0 %847
        %v849 = vsel %vm788, %v830, 0.0
        %850 = vadd.xlane.f32.xlu0 %v849
        %v851 = vpop.xlane.xlu0 %850
        %v852 = vsel %vm788, %v832, 0.0
        %853 = vadd.xlane.f32.xlu0 %v852
        %v854 = vpop.xlane.xlu0 %853
        %v855 = vsel %vm788, %v834, 0.0
        %856 = vadd.xlane.f32.xlu0 %v855
        %v857 = vpop.xlane.xlu0 %856
        %v858 = vsel %vm788, %v836, 0.0
        %859 = vadd.xlane.f32.xlu0 %v858
        %v860 = vpop.xlane.xlu0 %859
        %v861 = vrcp.pop %v839
        %v862 = vrcp.pop %v842
        %v863 = vrcp.pop %v845
        %v864 = vrcp.pop %v848
        %v865 = vrcp.pop %v851
        %v866 = vrcp.pop %v854
        %v867 = vrcp.pop %v857
        %v868 = vrcp.pop %v860
        %v869 = vmul.f32 %v839, %v861
        %v870 = vmul.f32 %v842, %v862
        %v871 = vmul.f32 %v845, %v863
        %v872 = vmul.f32 %v848, %v864
        %v873 = vmul.f32 %v851, %v865
        %v874 = vmul.f32 %v854, %v866
        %v875 = vmul.f32 %v857, %v867
        %v876 = vmul.f32 %v860, %v868
        %v877 = vsub.f32 2.0, %v869
        %v878 = vsub.f32 2.0, %v870
        %v879 = vsub.f32 2.0, %v871
        %v880 = vsub.f32 2.0, %v872
        %v881 = vsub.f32 2.0, %v873
        %v882 = vsub.f32 2.0, %v874
        %v883 = vsub.f32 2.0, %v875
        %v884 = vsub.f32 2.0, %v876
        %v885 = vmul.f32 %v861, %v877
        %v886 = vmul.f32 %v862, %v878
        %v887 = vmul.f32 %v863, %v879
        %v888 = vmul.f32 %v864, %v880
        %v889 = vmul.f32 %v865, %v881
        %v890 = vmul.f32 %v866, %v882
        %v891 = vmul.f32 %v867, %v883
        %v892 = vmul.f32 %v868, %v884
        %v893 = vmul.f32 %v822, %v885
        %v894 = vmul.f32 %v824, %v886
        %v895 = vmul.f32 %v826, %v887
        %v896 = vmul.f32 %v828, %v888
        %v897 = vmul.f32 %v830, %v889
        %v898 = vmul.f32 %v832, %v890
        %v899 = vmul.f32 %v834, %v891
        %v900 = vmul.f32 %v836, %v892
        %v902 = vsel %vm788, %v893, 0
        %v905 = vsel %vm788, %v894, 0
        %907 = vmatprep.subr.mxu0 0.0
        %908 = vmatpush1.msra.mxu0 %v421
        %909 = vmatprep.subr.mxu0 0.0
        %910 = vmatpush1.msra.mxu0 %v422
        %911 = vmatprep.subr.mxu0 0.0
        %912 = vmatpush1.msra.mxu0 0.0
        %913 = vmatprep.subr.mxu0 0.0
        %914 = vmatpush1.msra.mxu0 0.0
        %915 = vmatprep.subr.mxu0 0.0
        %916 = vmatpush1.msra.mxu0 0.0
        %917 = vmatprep.subr.mxu0 0.0
        %918 = vmatpush1.msra.mxu0 0.0
        %919 = vmatprep.subr.mxu0 0.0
        %920 = vmatpush1.msra.mxu0 0.0
        %921 = vmatprep.subr.mxu0 0.0
        %922 = vmatpush1.msra.mxu0 0.0
        %923 = vmatprep.subr.mxu0 0.0
        %924 = vmatpush1.msra.mxu0 0.0
        %925 = vmatprep.subr.mxu0 0.0
        %926 = vmatpush1.msra.mxu0 0.0
        %927 = vmatprep.subr.mxu0 0.0
        %928 = vmatpush1.msra.mxu0 0.0
        %929 = vmatprep.subr.mxu0 0.0
        %930 = vmatpush1.msra.mxu0 0.0
        %931 = vmatprep.subr.mxu0 0.0
        %932 = vmatpush1.msra.mxu0 0.0
        %933 = vmatprep.subr.mxu0 0.0
        %934 = vmatpush1.msra.mxu0 0.0
        %935 = vmatprep.subr.mxu0 0.0
        %936 = vmatpush1.msra.mxu0 0.0
        %937 = vmatprep.subr.mxu0 0.0
        %938 = vmatpush1.msra.mxu0 0.0
        %939 = vmatprep.subr.mxu0 0.0
        %940 = vmatpush1.msra.mxu0 0.0
        %941 = vmatprep.subr.mxu0 0.0
        %942 = vmatpush1.msra.mxu0 0.0
        %943 = vmatprep.subr.mxu0 0.0
        %944 = vmatpush1.msra.mxu0 0.0
        %945 = vmatprep.subr.mxu0 0.0
        %946 = vmatpush1.msra.mxu0 0.0
        %947 = vmatprep.subr.mxu0 0.0
        %948 = vmatpush1.msra.mxu0 0.0
        %949 = vmatprep.subr.mxu0 0.0
        %950 = vmatpush1.msra.mxu0 0.0
        %951 = vmatprep.subr.mxu0 0.0
        %952 = vmatpush1.msra.mxu0 0.0
        %953 = vmatprep.subr.mxu0 0.0
        %954 = vmatpush1.msra.mxu0 0.0
        %955 = vmatprep.subr.mxu0 0.0
        %956 = vmatpush1.msra.mxu0 0.0
        %957 = vmatprep.subr.mxu0 0.0
        %958 = vmatpush1.msra.mxu0 0.0
        %959 = vmatprep.subr.mxu0 0.0
        %960 = vmatpush1.msra.mxu0 0.0
        %961 = vmatprep.subr.mxu0 0.0
        %962 = vmatpush1.msra.mxu0 0.0
        %963 = vmatprep.subr.mxu0 0.0
        %964 = vmatpush1.msra.mxu0 0.0
        %965 = vmatprep.subr.mxu0 0.0
        %966 = vmatpush1.msra.mxu0 0.0
        %967 = vmatprep.subr.mxu0 0.0
        %968 = vmatpush1.msra.mxu0 0.0
        %969 = vmatprep.subr.mxu0 0.0
        %970 = vmatpush1.msra.mxu0 0.0
        %971 = vmatprep.mubr.f32.mxu0 0.0
        %972 = vmatmul.mubr.f32.gmra.mrb[0].mxu0 %v902
        %v973 = vpop.f32.mrb[0].mxu0
        %v974 = vadd.f32 0.0, %v973
        %v975 = vpop.f32.mrb[0].mxu0
        %976 = vmatprep.mubr.f32.mxu0 0.0
        %977 = vmatmul.mubr.f32.gmra.mrb[0].mxu0 %v905
        %v978 = vpop.f32.mrb[0].mxu0
        %v979 = vadd.f32 0.0, %v978
        %v980 = vpop.f32.mrb[0].mxu0
        %981 = vdwg.mxu0
        %v983 = vsel %vm788, %v895, 0
        %v986 = vsel %vm788, %v896, 0
        %988 = vmatprep.subr.mxu0 0.0
        %989 = vmatpush1.msra.mxu0 %v423
        %990 = vmatprep.subr.mxu0 0.0
        %991 = vmatpush1.msra.mxu0 %v424
        %992 = vmatprep.subr.mxu0 0.0
        %993 = vmatpush1.msra.mxu0 0.0
        %994 = vmatprep.subr.mxu0 0.0
        %995 = vmatpush1.msra.mxu0 0.0
        %996 = vmatprep.subr.mxu0 0.0
        %997 = vmatpush1.msra.mxu0 0.0
        %998 = vmatprep.subr.mxu0 0.0
        %999 = vmatpush1.msra.mxu0 0.0
        %1000 = vmatprep.subr.mxu0 0.0
        %1001 = vmatpush1.msra.mxu0 0.0
        %1002 = vmatprep.subr.mxu0 0.0
        %1003 = vmatpush1.msra.mxu0 0.0
        %1004 = vmatprep.subr.mxu0 0.0
        %1005 = vmatpush1.msra.mxu0 0.0
        %1006 = vmatprep.subr.mxu0 0.0
        %1007 = vmatpush1.msra.mxu0 0.0
        %1008 = vmatprep.subr.mxu0 0.0
        %1009 = vmatpush1.msra.mxu0 0.0
        %1010 = vmatprep.subr.mxu0 0.0
        %1011 = vmatpush1.msra.mxu0 0.0
        %1012 = vmatprep.subr.mxu0 0.0
        %1013 = vmatpush1.msra.mxu0 0.0
        %1014 = vmatprep.subr.mxu0 0.0
        %1015 = vmatpush1.msra.mxu0 0.0
        %1016 = vmatprep.subr.mxu0 0.0
        %1017 = vmatpush1.msra.mxu0 0.0
        %1018 = vmatprep.subr.mxu0 0.0
        %1019 = vmatpush1.msra.mxu0 0.0
        %1020 = vmatprep.subr.mxu0 0.0
        %1021 = vmatpush1.msra.mxu0 0.0
        %1022 = vmatprep.subr.mxu0 0.0
        %1023 = vmatpush1.msra.mxu0 0.0
        %1024 = vmatprep.subr.mxu0 0.0
        %1025 = vmatpush1.msra.mxu0 0.0
        %1026 = vmatprep.subr.mxu0 0.0
        %1027 = vmatpush1.msra.mxu0 0.0
        %1028 = vmatprep.subr.mxu0 0.0
        %1029 = vmatpush1.msra.mxu0 0.0
        %1030 = vmatprep.subr.mxu0 0.0
        %1031 = vmatpush1.msra.mxu0 0.0
        %1032 = vmatprep.subr.mxu0 0.0
        %1033 = vmatpush1.msra.mxu0 0.0
        %1034 = vmatprep.subr.mxu0 0.0
        %1035 = vmatpush1.msra.mxu0 0.0
        %1036 = vmatprep.subr.mxu0 0.0
        %1037 = vmatpush1.msra.mxu0 0.0
        %1038 = vmatprep.subr.mxu0 0.0
        %1039 = vmatpush1.msra.mxu0 0.0
        %1040 = vmatprep.subr.mxu0 0.0
        %1041 = vmatpush1.msra.mxu0 0.0
        %1042 = vmatprep.subr.mxu0 0.0
        %1043 = vmatpush1.msra.mxu0 0.0
        %1044 = vmatprep.subr.mxu0 0.0
        %1045 = vmatpush1.msra.mxu0 0.0
        %1046 = vmatprep.subr.mxu0 0.0
        %1047 = vmatpush1.msra.mxu0 0.0
        %1048 = vmatprep.subr.mxu0 0.0
        %1049 = vmatpush1.msra.mxu0 0.0
        %1050 = vmatprep.subr.mxu0 0.0
        %1051 = vmatpush1.msra.mxu0 0.0
        %1052 = vmatprep.mubr.f32.mxu0 0.0
        %1053 = vmatmul.mubr.f32.gmra.mrb[0].mxu0 %v983
        %v1054 = vpop.f32.mrb[0].mxu0
        %v1055 = vadd.f32 0.0, %v1054
        %v1056 = vpop.f32.mrb[0].mxu0
        %1057 = vmatprep.mubr.f32.mxu0 0.0
        %1058 = vmatmul.mubr.f32.gmra.mrb[0].mxu0 %v986
        %v1059 = vpop.f32.mrb[0].mxu0
        %v1060 = vadd.f32 0.0, %v1059
        %v1061 = vpop.f32.mrb[0].mxu0
        %1062 = vdwg.mxu0
        %v1064 = vsel %vm788, %v897, 0
        %v1067 = vsel %vm788, %v898, 0
        %1069 = vmatprep.subr.mxu0 0.0
        %1070 = vmatpush1.msra.mxu0 %v425
        %1071 = vmatprep.subr.mxu0 0.0
        %1072 = vmatpush1.msra.mxu0 %v426
        %1073 = vmatprep.subr.mxu0 0.0
        %1074 = vmatpush1.msra.mxu0 0.0
        %1075 = vmatprep.subr.mxu0 0.0
        %1076 = vmatpush1.msra.mxu0 0.0
        %1077 = vmatprep.subr.mxu0 0.0
        %1078 = vmatpush1.msra.mxu0 0.0
        %1079 = vmatprep.subr.mxu0 0.0
        %1080 = vmatpush1.msra.mxu0 0.0
        %1081 = vmatprep.subr.mxu0 0.0
        %1082 = vmatpush1.msra.mxu0 0.0
        %1083 = vmatprep.subr.mxu0 0.0
        %1084 = vmatpush1.msra.mxu0 0.0
        %1085 = vmatprep.subr.mxu0 0.0
        %1086 = vmatpush1.msra.mxu0 0.0
        %1087 = vmatprep.subr.mxu0 0.0
        %1088 = vmatpush1.msra.mxu0 0.0
        %1089 = vmatprep.subr.mxu0 0.0
        %1090 = vmatpush1.msra.mxu0 0.0
        %1091 = vmatprep.subr.mxu0 0.0
        %1092 = vmatpush1.msra.mxu0 0.0
        %1093 = vmatprep.subr.mxu0 0.0
        %1094 = vmatpush1.msra.mxu0 0.0
        %1095 = vmatprep.subr.mxu0 0.0
        %1096 = vmatpush1.msra.mxu0 0.0
        %1097 = vmatprep.subr.mxu0 0.0
        %1098 = vmatpush1.msra.mxu0 0.0
        %1099 = vmatprep.subr.mxu0 0.0
        %1100 = vmatpush1.msra.mxu0 0.0
        %1101 = vmatprep.subr.mxu0 0.0
        %1102 = vmatpush1.msra.mxu0 0.0
        %1103 = vmatprep.subr.mxu0 0.0
        %1104 = vmatpush1.msra.mxu0 0.0
        %1105 = vmatprep.subr.mxu0 0.0
        %1106 = vmatpush1.msra.mxu0 0.0
        %1107 = vmatprep.subr.mxu0 0.0
        %1108 = vmatpush1.msra.mxu0 0.0
        %1109 = vmatprep.subr.mxu0 0.0
        %1110 = vmatpush1.msra.mxu0 0.0
        %1111 = vmatprep.subr.mxu0 0.0
        %1112 = vmatpush1.msra.mxu0 0.0
        %1113 = vmatprep.subr.mxu0 0.0
        %1114 = vmatpush1.msra.mxu0 0.0
        %1115 = vmatprep.subr.mxu0 0.0
        %1116 = vmatpush1.msra.mxu0 0.0
        %1117 = vmatprep.subr.mxu0 0.0
        %1118 = vmatpush1.msra.mxu0 0.0
        %1119 = vmatprep.subr.mxu0 0.0
        %1120 = vmatpush1.msra.mxu0 0.0
        %1121 = vmatprep.subr.mxu0 0.0
        %1122 = vmatpush1.msra.mxu0 0.0
        %1123 = vmatprep.subr.mxu0 0.0
        %1124 = vmatpush1.msra.mxu0 0.0
        %1125 = vmatprep.subr.mxu0 0.0
        %1126 = vmatpush1.msra.mxu0 0.0
        %1127 = vmatprep.subr.mxu0 0.0
        %1128 = vmatpush1.msra.mxu0 0.0
        %1129 = vmatprep.subr.mxu0 0.0
        %1130 = vmatpush1.msra.mxu0 0.0
        %1131 = vmatprep.subr.mxu0 0.0
        %1132 = vmatpush1.msra.mxu0 0.0
        %1133 = vmatprep.mubr.f32.mxu0 0.0
        %1134 = vmatmul.mubr.f32.gmra.mrb[0].mxu0 %v1064
        %v1135 = vpop.f32.mrb[0].mxu0
        %v1136 = vadd.f32 0.0, %v1135
        %v1137 = vpop.f32.mrb[0].mxu0
        %1138 = vmatprep.mubr.f32.mxu0 0.0
        %1139 = vmatmul.mubr.f32.gmra.mrb[0].mxu0 %v1067
        %v1140 = vpop.f32.mrb[0].mxu0
        %v1141 = vadd.f32 0.0, %v1140
        %v1142 = vpop.f32.mrb[0].mxu0
        %1143 = vdwg.mxu0
        %v1145 = vsel %vm788, %v899, 0
        %v1148 = vsel %vm788, %v900, 0
        %1150 = vmatprep.subr.mxu0 0.0
        %1151 = vmatpush1.msra.mxu0 %v427
        %1152 = vmatprep.subr.mxu0 0.0
        %1153 = vmatpush1.msra.mxu0 %v428
        %1154 = vmatprep.subr.mxu0 0.0
        %1155 = vmatpush1.msra.mxu0 0.0
        %1156 = vmatprep.subr.mxu0 0.0
        %1157 = vmatpush1.msra.mxu0 0.0
        %1158 = vmatprep.subr.mxu0 0.0
        %1159 = vmatpush1.msra.mxu0 0.0
        %1160 = vmatprep.subr.mxu0 0.0
        %1161 = vmatpush1.msra.mxu0 0.0
        %1162 = vmatprep.subr.mxu0 0.0
        %1163 = vmatpush1.msra.mxu0 0.0
        %1164 = vmatprep.subr.mxu0 0.0
        %1165 = vmatpush1.msra.mxu0 0.0
        %1166 = vmatprep.subr.mxu0 0.0
        %1167 = vmatpush1.msra.mxu0 0.0
        %1168 = vmatprep.subr.mxu0 0.0
        %1169 = vmatpush1.msra.mxu0 0.0
        %1170 = vmatprep.subr.mxu0 0.0
        %1171 = vmatpush1.msra.mxu0 0.0
        %1172 = vmatprep.subr.mxu0 0.0
        %1173 = vmatpush1.msra.mxu0 0.0
        %1174 = vmatprep.subr.mxu0 0.0
        %1175 = vmatpush1.msra.mxu0 0.0
        %1176 = vmatprep.subr.mxu0 0.0
        %1177 = vmatpush1.msra.mxu0 0.0
        %1178 = vmatprep.subr.mxu0 0.0
        %1179 = vmatpush1.msra.mxu0 0.0
        %1180 = vmatprep.subr.mxu0 0.0
        %1181 = vmatpush1.msra.mxu0 0.0
        %1182 = vmatprep.subr.mxu0 0.0
        %1183 = vmatpush1.msra.mxu0 0.0
        %1184 = vmatprep.subr.mxu0 0.0
        %1185 = vmatpush1.msra.mxu0 0.0
        %1186 = vmatprep.subr.mxu0 0.0
        %1187 = vmatpush1.msra.mxu0 0.0
        %1188 = vmatprep.subr.mxu0 0.0
        %1189 = vmatpush1.msra.mxu0 0.0
        %1190 = vmatprep.subr.mxu0 0.0
        %1191 = vmatpush1.msra.mxu0 0.0
        %1192 = vmatprep.subr.mxu0 0.0
        %1193 = vmatpush1.msra.mxu0 0.0
        %1194 = vmatprep.subr.mxu0 0.0
        %1195 = vmatpush1.msra.mxu0 0.0
        %1196 = vmatprep.subr.mxu0 0.0
        %1197 = vmatpush1.msra.mxu0 0.0
        %1198 = vmatprep.subr.mxu0 0.0
        %1199 = vmatpush1.msra.mxu0 0.0
        %1200 = vmatprep.subr.mxu0 0.0
        %1201 = vmatpush1.msra.mxu0 0.0
        %1202 = vmatprep.subr.mxu0 0.0
        %1203 = vmatpush1.msra.mxu0 0.0
        %1204 = vmatprep.subr.mxu0 0.0
        %1205 = vmatpush1.msra.mxu0 0.0
        %1206 = vmatprep.subr.mxu0 0.0
        %1207 = vmatpush1.msra.mxu0 0.0
        %1208 = vmatprep.subr.mxu0 0.0
        %1209 = vmatpush1.msra.mxu0 0.0
        %1210 = vmatprep.subr.mxu0 0.0
        %1211 = vmatpush1.msra.mxu0 0.0
        %1212 = vmatprep.subr.mxu0 0.0
        %1213 = vmatpush1.msra.mxu0 0.0
        %1214 = vmatprep.mubr.f32.mxu0 0.0
        %1215 = vmatmul.mubr.f32.gmra.mrb[0].mxu0 %v1145
        %v1216 = vpop.f32.mrb[0].mxu0
        %v1217 = vadd.f32 0.0, %v1216
        %v1218 = vpop.f32.mrb[0].mxu0
        %1219 = vmatprep.mubr.f32.mxu0 0.0
        %1220 = vmatmul.mubr.f32.gmra.mrb[0].mxu0 %v1148
        %v1221 = vpop.f32.mrb[0].mxu0
        %v1222 = vadd.f32 0.0, %v1221
        %v1223 = vpop.f32.mrb[0].mxu0
        %1224 = vdwg.mxu0
        %1225 = vst.msk [vmem:[#allocation2] sm:$0xff] %vm431, %v974
        %1226 = vst.msk [vmem:[#allocation2 + $0x8] sm:$0xff] %vm431, %v979
        %1227 = vst.msk [vmem:[#allocation2 + $0x10] sm:$0xff] %vm431, %v1055
        %1228 = vst.msk [vmem:[#allocation2 + $0x18] sm:$0xff] %vm431, %v1060
        %1229 = vst.msk [vmem:[#allocation2 + $0x20] sm:$0xff] %vm431, %v1136
        %1230 = vst.msk [vmem:[#allocation2 + $0x28] sm:$0xff] %vm431, %v1141
        %1231 = vst.msk [vmem:[#allocation2 + $0x30] sm:$0xff] %vm431, %v1217
        %1232 = vst.msk [vmem:[#allocation2 + $0x38] sm:$0xff] %vm431, %v1222
        %v1233 = vld [vmem:[%s321] sm:$0xff]
        %v1234 = vld [vmem:[%s321 + $0x8] sm:$0xff]
        %v1235 = vld [vmem:[%s321 + $0x10] sm:$0xff]
        %v1236 = vld [vmem:[%s321 + $0x18] sm:$0xff]
        %v1237 = vld [vmem:[%s321 + $0x20] sm:$0xff]
        %v1238 = vld [vmem:[%s321 + $0x28] sm:$0xff]
        %v1239 = vld [vmem:[%s321 + $0x30] sm:$0xff]
        %v1240 = vld [vmem:[%s321 + $0x38] sm:$0xff]
        %v1241 = vmul.f32 %v1233, 0.35355338
        %v1242 = vmul.f32 %v1234, 0.35355338
        %v1243 = vmul.f32 %v1235, 0.35355338
        %v1244 = vmul.f32 %v1236, 0.35355338
        %v1245 = vmul.f32 %v1237, 0.35355338
        %v1246 = vmul.f32 %v1238, 0.35355338
        %v1247 = vmul.f32 %v1239, 0.35355338
        %v1248 = vmul.f32 %v1240, 0.35355338
        %v1249 = vld [vmem:[%s330] sm:$0xff]
        %v1250 = vld [vmem:[%s330 + $0x8] sm:$0xff]
        %v1251 = vld [vmem:[%s330 + $0x10] sm:$0xff]
        %v1252 = vld [vmem:[%s330 + $0x18] sm:$0xff]
        %v1253 = vld [vmem:[%s330 + $0x20] sm:$0xff]
        %v1254 = vld [vmem:[%s330 + $0x28] sm:$0xff]
        %v1255 = vld [vmem:[%s330 + $0x30] sm:$0xff]
        %v1256 = vld [vmem:[%s330 + $0x38] sm:$0xff]
        %v1257 = vld [vmem:[%s339] sm:$0xff]
        %v1258 = vld [vmem:[%s339 + $0x8] sm:$0xff]
        %v1259 = vld [vmem:[%s339 + $0x10] sm:$0xff]
        %v1260 = vld [vmem:[%s339 + $0x18] sm:$0xff]
        %v1261 = vld [vmem:[%s339 + $0x20] sm:$0xff]
        %v1262 = vld [vmem:[%s339 + $0x28] sm:$0xff]
        %v1263 = vld [vmem:[%s339 + $0x30] sm:$0xff]
        %v1264 = vld [vmem:[%s339 + $0x38] sm:$0xff]
        %s1265 = scalar_lea.vmem [#allocation9], 16
        %v1266 = vld [vmem:[%s1265] sm:$0xff]
        %v1267 = vld [vmem:[%s1265 + $0x8] sm:$0xff]
        %1270 = vrot.lane.b32.xlu0 %v1241, 120
        %v1271 = vpop.permute.xlu0 %1270
        %1272 = vrot.lane.b32.xlu0 %v1242, 120
        %v1273 = vpop.permute.xlu0 %1272
        %1276 = vrot.lane.b32.xlu0 %v1249, 120
        %v1277 = vpop.permute.xlu0 %1276
        %1278 = vrot.lane.b32.xlu0 %v1250, 120
        %v1279 = vpop.permute.xlu0 %1278
        %v1280 = vsel %vm431, %v1271, 0
        %v1282 = vsel %vm431, %v1273, 0
        %v1284 = vsel %vm431, %v1277, 0
        %v1286 = vsel %vm431, %v1279, 0
        %1288 = vmatprep.subr.mxu0 0.0
        %1289 = vmatpush1.xpose.msra.mxu0 %v1284
        %1290 = vmatprep.subr.mxu0 0.0
        %1291 = vmatpush1.xpose.msra.mxu0 %v1286
        %1292 = vmatprep.subr.mxu0 0.0
        %1293 = vmatpush1.xpose.msra.mxu0 0.0
        %1294 = vmatprep.subr.mxu0 0.0
        %1295 = vmatpush1.xpose.msra.mxu0 0.0
        %1296 = vmatprep.subr.mxu0 0.0
        %1297 = vmatpush1.xpose.msra.mxu0 0.0
        %1298 = vmatprep.subr.mxu0 0.0
        %1299 = vmatpush1.xpose.msra.mxu0 0.0
        %1300 = vmatprep.subr.mxu0 0.0
        %1301 = vmatpush1.xpose.msra.mxu0 0.0
        %1302 = vmatprep.subr.mxu0 0.0
        %1303 = vmatpush1.xpose.msra.mxu0 0.0
        %1304 = vmatprep.subr.mxu0 0.0
        %1305 = vmatpush1.xpose.msra.mxu0 0.0
        %1306 = vmatprep.subr.mxu0 0.0
        %1307 = vmatpush1.xpose.msra.mxu0 0.0
        %1308 = vmatprep.subr.mxu0 0.0
        %1309 = vmatpush1.xpose.msra.mxu0 0.0
        %1310 = vmatprep.subr.mxu0 0.0
        %1311 = vmatpush1.xpose.msra.mxu0 0.0
        %1312 = vmatprep.subr.mxu0 0.0
        %1313 = vmatpush1.xpose.msra.mxu0 0.0
        %1314 = vmatprep.subr.mxu0 0.0
        %1315 = vmatpush1.xpose.msra.mxu0 0.0
        %1316 = vmatprep.subr.mxu0 0.0
        %1317 = vmatpush1.xpose.msra.mxu0 0.0
        %1318 = vmatprep.subr.mxu0 0.0
        %1319 = vmatpush1.xpose.msra.mxu0 0.0
        %1320 = vmatprep.subr.mxu0 0.0
        %1321 = vmatpush1.xpose.msra.mxu0 0.0
        %1322 = vmatprep.subr.mxu0 0.0
        %1323 = vmatpush1.xpose.msra.mxu0 0.0
        %1324 = vmatprep.subr.mxu0 0.0
        %1325 = vmatpush1.xpose.msra.mxu0 0.0
        %1326 = vmatprep.subr.mxu0 0.0
        %1327 = vmatpush1.xpose.msra.mxu0 0.0
        %1328 = vmatprep.subr.mxu0 0.0
        %1329 = vmatpush1.xpose.msra.mxu0 0.0
        %1330 = vmatprep.subr.mxu0 0.0
        %1331 = vmatpush1.xpose.msra.mxu0 0.0
        %1332 = vmatprep.subr.mxu0 0.0
        %1333 = vmatpush1.xpose.msra.mxu0 0.0
        %1334 = vmatprep.subr.mxu0 0.0
        %1335 = vmatpush1.xpose.msra.mxu0 0.0
        %1336 = vmatprep.subr.mxu0 0.0
        %1337 = vmatpush1.xpose.msra.mxu0 0.0
        %1338 = vmatprep.subr.mxu0 0.0
        %1339 = vmatpush1.xpose.msra.mxu0 0.0
        %1340 = vmatprep.subr.mxu0 0.0
        %1341 = vmatpush1.xpose.msra.mxu0 0.0
        %1342 = vmatprep.subr.mxu0 0.0
        %1343 = vmatpush1.xpose.msra.mxu0 0.0
        %1344 = vmatprep.subr.mxu0 0.0
        %1345 = vmatpush1.xpose.msra.mxu0 0.0
        %1346 = vmatprep.subr.mxu0 0.0
        %1347 = vmatpush1.xpose.msra.mxu0 0.0
        %1348 = vmatprep.subr.mxu0 0.0
        %1349 = vmatpush1.xpose.msra.mxu0 0.0
        %1350 = vmatprep.subr.mxu0 0.0
        %1351 = vmatpush1.xpose.msra.mxu0 0.0
        %1352 = vmatprep.mubr.f32.mxu0 0.0
        %1353 = vmatmul.mubr.f32.gmra.mrb[0].mxu0 %v1280
        %v1354 = vpop.f32.mrb[0].mxu0
        %v1355 = vadd.f32 %v1266, %v1354
        %v1356 = vpop.f32.mrb[0].mxu0
        %1357 = vmatprep.mubr.f32.mxu0 0.0
        %1358 = vmatmul.mubr.f32.gmra.mrb[0].mxu0 %v1282
        %v1359 = vpop.f32.mrb[0].mxu0
        %v1360 = vadd.f32 %v1267, %v1359
        %v1361 = vpop.f32.mrb[0].mxu0
        %1362 = vdwg.mxu0
        %1365 = vrot.lane.b32.xlu0 %v1243, 120
        %v1366 = vpop.permute.xlu0 %1365
        %1367 = vrot.lane.b32.xlu0 %v1244, 120
        %v1368 = vpop.permute.xlu0 %1367
        %1371 = vrot.lane.b32.xlu0 %v1251, 120
        %v1372 = vpop.permute.xlu0 %1371
        %1373 = vrot.lane.b32.xlu0 %v1252, 120
        %v1374 = vpop.permute.xlu0 %1373
        %v1375 = vsel %vm431, %v1366, 0
        %v1377 = vsel %vm431, %v1368, 0
        %v1379 = vsel %vm431, %v1372, 0
        %v1381 = vsel %vm431, %v1374, 0
        %1383 = vmatprep.subr.mxu0 0.0
        %1384 = vmatpush1.xpose.msra.mxu0 %v1379
        %1385 = vmatprep.subr.mxu0 0.0
        %1386 = vmatpush1.xpose.msra.mxu0 %v1381
        %1387 = vmatprep.subr.mxu0 0.0
        %1388 = vmatpush1.xpose.msra.mxu0 0.0
        %1389 = vmatprep.subr.mxu0 0.0
        %1390 = vmatpush1.xpose.msra.mxu0 0.0
        %1391 = vmatprep.subr.mxu0 0.0
        %1392 = vmatpush1.xpose.msra.mxu0 0.0
        %1393 = vmatprep.subr.mxu0 0.0
        %1394 = vmatpush1.xpose.msra.mxu0 0.0
        %1395 = vmatprep.subr.mxu0 0.0
        %1396 = vmatpush1.xpose.msra.mxu0 0.0
        %1397 = vmatprep.subr.mxu0 0.0
        %1398 = vmatpush1.xpose.msra.mxu0 0.0
        %1399 = vmatprep.subr.mxu0 0.0
        %1400 = vmatpush1.xpose.msra.mxu0 0.0
        %1401 = vmatprep.subr.mxu0 0.0
        %1402 = vmatpush1.xpose.msra.mxu0 0.0
        %1403 = vmatprep.subr.mxu0 0.0
        %1404 = vmatpush1.xpose.msra.mxu0 0.0
        %1405 = vmatprep.subr.mxu0 0.0
        %1406 = vmatpush1.xpose.msra.mxu0 0.0
        %1407 = vmatprep.subr.mxu0 0.0
        %1408 = vmatpush1.xpose.msra.mxu0 0.0
        %1409 = vmatprep.subr.mxu0 0.0
        %1410 = vmatpush1.xpose.msra.mxu0 0.0
        %1411 = vmatprep.subr.mxu0 0.0
        %1412 = vmatpush1.xpose.msra.mxu0 0.0
        %1413 = vmatprep.subr.mxu0 0.0
        %1414 = vmatpush1.xpose.msra.mxu0 0.0
        %1415 = vmatprep.subr.mxu0 0.0
        %1416 = vmatpush1.xpose.msra.mxu0 0.0
        %1417 = vmatprep.subr.mxu0 0.0
        %1418 = vmatpush1.xpose.msra.mxu0 0.0
        %1419 = vmatprep.subr.mxu0 0.0
        %1420 = vmatpush1.xpose.msra.mxu0 0.0
        %1421 = vmatprep.subr.mxu0 0.0
        %1422 = vmatpush1.xpose.msra.mxu0 0.0
        %1423 = vmatprep.subr.mxu0 0.0
        %1424 = vmatpush1.xpose.msra.mxu0 0.0
        %1425 = vmatprep.subr.mxu0 0.0
        %1426 = vmatpush1.xpose.msra.mxu0 0.0
        %1427 = vmatprep.subr.mxu0 0.0
        %1428 = vmatpush1.xpose.msra.mxu0 0.0
        %1429 = vmatprep.subr.mxu0 0.0
        %1430 = vmatpush1.xpose.msra.mxu0 0.0
        %1431 = vmatprep.subr.mxu0 0.0
        %1432 = vmatpush1.xpose.msra.mxu0 0.0
        %1433 = vmatprep.subr.mxu0 0.0
        %1434 = vmatpush1.xpose.msra.mxu0 0.0
        %1435 = vmatprep.subr.mxu0 0.0
        %1436 = vmatpush1.xpose.msra.mxu0 0.0
        %1437 = vmatprep.subr.mxu0 0.0
        %1438 = vmatpush1.xpose.msra.mxu0 0.0
        %1439 = vmatprep.subr.mxu0 0.0
        %1440 = vmatpush1.xpose.msra.mxu0 0.0
        %1441 = vmatprep.subr.mxu0 0.0
        %1442 = vmatpush1.xpose.msra.mxu0 0.0
        %1443 = vmatprep.subr.mxu0 0.0
        %1444 = vmatpush1.xpose.msra.mxu0 0.0
        %1445 = vmatprep.subr.mxu0 0.0
        %1446 = vmatpush1.xpose.msra.mxu0 0.0
        %1447 = vmatprep.mubr.f32.mxu0 0.0
        %1448 = vmatmul.mubr.f32.gmra.mrb[0].mxu0 %v1375
        %v1449 = vpop.f32.mrb[0].mxu0
        %v1450 = vadd.f32 %v1266, %v1449
        %v1451 = vpop.f32.mrb[0].mxu0
        %1452 = vmatprep.mubr.f32.mxu0 0.0
        %1453 = vmatmul.mubr.f32.gmra.mrb[0].mxu0 %v1377
        %v1454 = vpop.f32.mrb[0].mxu0
        %v1455 = vadd.f32 %v1267, %v1454
        %v1456 = vpop.f32.mrb[0].mxu0
        %1457 = vdwg.mxu0
        %1460 = vrot.lane.b32.xlu0 %v1245, 120
        %v1461 = vpop.permute.xlu0 %1460
        %1462 = vrot.lane.b32.xlu0 %v1246, 120
        %v1463 = vpop.permute.xlu0 %1462
        %1466 = vrot.lane.b32.xlu0 %v1253, 120
        %v1467 = vpop.permute.xlu0 %1466
        %1468 = vrot.lane.b32.xlu0 %v1254, 120
        %v1469 = vpop.permute.xlu0 %1468
        %v1470 = vsel %vm431, %v1461, 0
        %v1472 = vsel %vm431, %v1463, 0
        %v1474 = vsel %vm431, %v1467, 0
        %v1476 = vsel %vm431, %v1469, 0
        %1478 = vmatprep.subr.mxu0 0.0
        %1479 = vmatpush1.xpose.msra.mxu0 %v1474
        %1480 = vmatprep.subr.mxu0 0.0
        %1481 = vmatpush1.xpose.msra.mxu0 %v1476
        %1482 = vmatprep.subr.mxu0 0.0
        %1483 = vmatpush1.xpose.msra.mxu0 0.0
        %1484 = vmatprep.subr.mxu0 0.0
        %1485 = vmatpush1.xpose.msra.mxu0 0.0
        %1486 = vmatprep.subr.mxu0 0.0
        %1487 = vmatpush1.xpose.msra.mxu0 0.0
        %1488 = vmatprep.subr.mxu0 0.0
        %1489 = vmatpush1.xpose.msra.mxu0 0.0
        %1490 = vmatprep.subr.mxu0 0.0
        %1491 = vmatpush1.xpose.msra.mxu0 0.0
        %1492 = vmatprep.subr.mxu0 0.0
        %1493 = vmatpush1.xpose.msra.mxu0 0.0
        %1494 = vmatprep.subr.mxu0 0.0
        %1495 = vmatpush1.xpose.msra.mxu0 0.0
        %1496 = vmatprep.subr.mxu0 0.0
        %1497 = vmatpush1.xpose.msra.mxu0 0.0
        %1498 = vmatprep.subr.mxu0 0.0
        %1499 = vmatpush1.xpose.msra.mxu0 0.0
        %1500 = vmatprep.subr.mxu0 0.0
        %1501 = vmatpush1.xpose.msra.mxu0 0.0
        %1502 = vmatprep.subr.mxu0 0.0
        %1503 = vmatpush1.xpose.msra.mxu0 0.0
        %1504 = vmatprep.subr.mxu0 0.0
        %1505 = vmatpush1.xpose.msra.mxu0 0.0
        %1506 = vmatprep.subr.mxu0 0.0
        %1507 = vmatpush1.xpose.msra.mxu0 0.0
        %1508 = vmatprep.subr.mxu0 0.0
        %1509 = vmatpush1.xpose.msra.mxu0 0.0
        %1510 = vmatprep.subr.mxu0 0.0
        %1511 = vmatpush1.xpose.msra.mxu0 0.0
        %1512 = vmatprep.subr.mxu0 0.0
        %1513 = vmatpush1.xpose.msra.mxu0 0.0
        %1514 = vmatprep.subr.mxu0 0.0
        %1515 = vmatpush1.xpose.msra.mxu0 0.0
        %1516 = vmatprep.subr.mxu0 0.0
        %1517 = vmatpush1.xpose.msra.mxu0 0.0
        %1518 = vmatprep.subr.mxu0 0.0
        %1519 = vmatpush1.xpose.msra.mxu0 0.0
        %1520 = vmatprep.subr.mxu0 0.0
        %1521 = vmatpush1.xpose.msra.mxu0 0.0
        %1522 = vmatprep.subr.mxu0 0.0
        %1523 = vmatpush1.xpose.msra.mxu0 0.0
        %1524 = vmatprep.subr.mxu0 0.0
        %1525 = vmatpush1.xpose.msra.mxu0 0.0
        %1526 = vmatprep.subr.mxu0 0.0
        %1527 = vmatpush1.xpose.msra.mxu0 0.0
        %1528 = vmatprep.subr.mxu0 0.0
        %1529 = vmatpush1.xpose.msra.mxu0 0.0
        %1530 = vmatprep.subr.mxu0 0.0
        %1531 = vmatpush1.xpose.msra.mxu0 0.0
        %1532 = vmatprep.subr.mxu0 0.0
        %1533 = vmatpush1.xpose.msra.mxu0 0.0
        %1534 = vmatprep.subr.mxu0 0.0
        %1535 = vmatpush1.xpose.msra.mxu0 0.0
        %1536 = vmatprep.subr.mxu0 0.0
        %1537 = vmatpush1.xpose.msra.mxu0 0.0
        %1538 = vmatprep.subr.mxu0 0.0
        %1539 = vmatpush1.xpose.msra.mxu0 0.0
        %1540 = vmatprep.subr.mxu0 0.0
        %1541 = vmatpush1.xpose.msra.mxu0 0.0
        %1542 = vmatprep.mubr.f32.mxu0 0.0
        %1543 = vmatmul.mubr.f32.gmra.mrb[0].mxu0 %v1470
        %v1544 = vpop.f32.mrb[0].mxu0
        %v1545 = vadd.f32 %v1266, %v1544
        %v1546 = vpop.f32.mrb[0].mxu0
        %1547 = vmatprep.mubr.f32.mxu0 0.0
        %1548 = vmatmul.mubr.f32.gmra.mrb[0].mxu0 %v1472
        %v1549 = vpop.f32.mrb[0].mxu0
        %v1550 = vadd.f32 %v1267, %v1549
        %v1551 = vpop.f32.mrb[0].mxu0
        %1552 = vdwg.mxu0
        %1555 = vrot.lane.b32.xlu0 %v1247, 120
        %v1556 = vpop.permute.xlu0 %1555
        %1557 = vrot.lane.b32.xlu0 %v1248, 120
        %v1558 = vpop.permute.xlu0 %1557
        %1561 = vrot.lane.b32.xlu0 %v1255, 120
        %v1562 = vpop.permute.xlu0 %1561
        %1563 = vrot.lane.b32.xlu0 %v1256, 120
        %v1564 = vpop.permute.xlu0 %1563
        %v1565 = vsel %vm431, %v1556, 0
        %v1567 = vsel %vm431, %v1558, 0
        %v1569 = vsel %vm431, %v1562, 0
        %v1571 = vsel %vm431, %v1564, 0
        %1573 = vmatprep.subr.mxu0 0.0
        %1574 = vmatpush1.xpose.msra.mxu0 %v1569
        %1575 = vmatprep.subr.mxu0 0.0
        %1576 = vmatpush1.xpose.msra.mxu0 %v1571
        %1577 = vmatprep.subr.mxu0 0.0
        %1578 = vmatpush1.xpose.msra.mxu0 0.0
        %1579 = vmatprep.subr.mxu0 0.0
        %1580 = vmatpush1.xpose.msra.mxu0 0.0
        %1581 = vmatprep.subr.mxu0 0.0
        %1582 = vmatpush1.xpose.msra.mxu0 0.0
        %1583 = vmatprep.subr.mxu0 0.0
        %1584 = vmatpush1.xpose.msra.mxu0 0.0
        %1585 = vmatprep.subr.mxu0 0.0
        %1586 = vmatpush1.xpose.msra.mxu0 0.0
        %1587 = vmatprep.subr.mxu0 0.0
        %1588 = vmatpush1.xpose.msra.mxu0 0.0
        %1589 = vmatprep.subr.mxu0 0.0
        %1590 = vmatpush1.xpose.msra.mxu0 0.0
        %1591 = vmatprep.subr.mxu0 0.0
        %1592 = vmatpush1.xpose.msra.mxu0 0.0
        %1593 = vmatprep.subr.mxu0 0.0
        %1594 = vmatpush1.xpose.msra.mxu0 0.0
        %1595 = vmatprep.subr.mxu0 0.0
        %1596 = vmatpush1.xpose.msra.mxu0 0.0
        %1597 = vmatprep.subr.mxu0 0.0
        %1598 = vmatpush1.xpose.msra.mxu0 0.0
        %1599 = vmatprep.subr.mxu0 0.0
        %1600 = vmatpush1.xpose.msra.mxu0 0.0
        %1601 = vmatprep.subr.mxu0 0.0
        %1602 = vmatpush1.xpose.msra.mxu0 0.0
        %1603 = vmatprep.subr.mxu0 0.0
        %1604 = vmatpush1.xpose.msra.mxu0 0.0
        %1605 = vmatprep.subr.mxu0 0.0
        %1606 = vmatpush1.xpose.msra.mxu0 0.0
        %1607 = vmatprep.subr.mxu0 0.0
        %1608 = vmatpush1.xpose.msra.mxu0 0.0
        %1609 = vmatprep.subr.mxu0 0.0
        %1610 = vmatpush1.xpose.msra.mxu0 0.0
        %1611 = vmatprep.subr.mxu0 0.0
        %1612 = vmatpush1.xpose.msra.mxu0 0.0
        %1613 = vmatprep.subr.mxu0 0.0
        %1614 = vmatpush1.xpose.msra.mxu0 0.0
        %1615 = vmatprep.subr.mxu0 0.0
        %1616 = vmatpush1.xpose.msra.mxu0 0.0
        %1617 = vmatprep.subr.mxu0 0.0
        %1618 = vmatpush1.xpose.msra.mxu0 0.0
        %1619 = vmatprep.subr.mxu0 0.0
        %1620 = vmatpush1.xpose.msra.mxu0 0.0
        %1621 = vmatprep.subr.mxu0 0.0
        %1622 = vmatpush1.xpose.msra.mxu0 0.0
        %1623 = vmatprep.subr.mxu0 0.0
        %1624 = vmatpush1.xpose.msra.mxu0 0.0
        %1625 = vmatprep.subr.mxu0 0.0
        %1626 = vmatpush1.xpose.msra.mxu0 0.0
        %1627 = vmatprep.subr.mxu0 0.0
        %1628 = vmatpush1.xpose.msra.mxu0 0.0
        %1629 = vmatprep.subr.mxu0 0.0
        %1630 = vmatpush1.xpose.msra.mxu0 0.0
        %1631 = vmatprep.subr.mxu0 0.0
        %1632 = vmatpush1.xpose.msra.mxu0 0.0
        %1633 = vmatprep.subr.mxu0 0.0
        %1634 = vmatpush1.xpose.msra.mxu0 0.0
        %1635 = vmatprep.subr.mxu0 0.0
        %1636 = vmatpush1.xpose.msra.mxu0 0.0
        %1637 = vmatprep.mubr.f32.mxu0 0.0
        %1638 = vmatmul.mubr.f32.gmra.mrb[0].mxu0 %v1565
        %v1639 = vpop.f32.mrb[0].mxu0
        %v1640 = vadd.f32 %v1266, %v1639
        %v1641 = vpop.f32.mrb[0].mxu0
        %1642 = vmatprep.mubr.f32.mxu0 0.0
        %1643 = vmatmul.mubr.f32.gmra.mrb[0].mxu0 %v1567
        %v1644 = vpop.f32.mrb[0].mxu0
        %v1645 = vadd.f32 %v1267, %v1644
        %v1646 = vpop.f32.mrb[0].mxu0
        %1647 = vdwg.mxu0
        %v1648 = vadd.f32 %v1355, %v389
        %v1649 = vadd.f32 %v1360, %v390
        %v1650 = vadd.f32 %v1450, %v391
        %v1651 = vadd.f32 %v1455, %v392
        %v1652 = vadd.f32 %v1545, %v393
        %v1653 = vadd.f32 %v1550, %v394
        %v1654 = vadd.f32 %v1640, %v395
        %v1655 = vadd.f32 %v1645, %v396
        %v1656 = vsel %vm788, %v1648, -inf
        %1657 = vmax.xlane.f32.xlu0 %v1656
        %v1658 = vpop.xlane.xlu0 %1657
        %v1659 = vsel %vm788, %v1649, -inf
        %1660 = vmax.xlane.f32.xlu0 %v1659
        %v1661 = vpop.xlane.xlu0 %1660
        %v1662 = vsel %vm788, %v1650, -inf
        %1663 = vmax.xlane.f32.xlu0 %v1662
        %v1664 = vpop.xlane.xlu0 %1663
        %v1665 = vsel %vm788, %v1651, -inf
        %1666 = vmax.xlane.f32.xlu0 %v1665
        %v1667 = vpop.xlane.xlu0 %1666
        %v1668 = vsel %vm788, %v1652, -inf
        %1669 = vmax.xlane.f32.xlu0 %v1668
        %v1670 = vpop.xlane.xlu0 %1669
        %v1671 = vsel %vm788, %v1653, -inf
        %1672 = vmax.xlane.f32.xlu0 %v1671
        %v1673 = vpop.xlane.xlu0 %1672
        %v1674 = vsel %vm788, %v1654, -inf
        %1675 = vmax.xlane.f32.xlu0 %v1674
        %v1676 = vpop.xlane.xlu0 %1675
        %v1677 = vsel %vm788, %v1655, -inf
        %1678 = vmax.xlane.f32.xlu0 %v1677
        %v1679 = vpop.xlane.xlu0 %1678
        %v1680 = vsub.f32 %v1648, %v1658
        %v1681 = vsub.f32 %v1649, %v1661
        %v1682 = vsub.f32 %v1650, %v1664
        %v1683 = vsub.f32 %v1651, %v1667
        %v1684 = vsub.f32 %v1652, %v1670
        %v1685 = vsub.f32 %v1653, %v1673
        %v1686 = vsub.f32 %v1654, %v1676
        %v1687 = vsub.f32 %v1655, %v1679
        %v1688 = vmul.f32 %v1680, 1.442695
        %v1689 = vpow.pop %v1688
        %v1690 = vmul.f32 %v1681, 1.442695
        %v1691 = vpow.pop %v1690
        %v1692 = vmul.f32 %v1682, 1.442695
        %v1693 = vpow.pop %v1692
        %v1694 = vmul.f32 %v1683, 1.442695
        %v1695 = vpow.pop %v1694
        %v1696 = vmul.f32 %v1684, 1.442695
        %v1697 = vpow.pop %v1696
        %v1698 = vmul.f32 %v1685, 1.442695
        %v1699 = vpow.pop %v1698
        %v1700 = vmul.f32 %v1686, 1.442695
        %v1701 = vpow.pop %v1700
        %v1702 = vmul.f32 %v1687, 1.442695
        %v1703 = vpow.pop %v1702
        %v1704 = vsel %vm788, %v1689, 0.0
        %1705 = vadd.xlane.f32.xlu0 %v1704
        %v1706 = vpop.xlane.xlu0 %1705
        %v1707 = vsel %vm788, %v1691, 0.0
        %1708 = vadd.xlane.f32.xlu0 %v1707
        %v1709 = vpop.xlane.xlu0 %1708
        %v1710 = vsel %vm788, %v1693, 0.0
        %1711 = vadd.xlane.f32.xlu0 %v1710
        %v1712 = vpop.xlane.xlu0 %1711
        %v1713 = vsel %vm788, %v1695, 0.0
        %1714 = vadd.xlane.f32.xlu0 %v1713
        %v1715 = vpop.xlane.xlu0 %1714
        %v1716 = vsel %vm788, %v1697, 0.0
        %1717 = vadd.xlane.f32.xlu0 %v1716
        %v1718 = vpop.xlane.xlu0 %1717
        %v1719 = vsel %vm788, %v1699, 0.0
        %1720 = vadd.xlane.f32.xlu0 %v1719
        %v1721 = vpop.xlane.xlu0 %1720
        %v1722 = vsel %vm788, %v1701, 0.0
        %1723 = vadd.xlane.f32.xlu0 %v1722
        %v1724 = vpop.xlane.xlu0 %1723
        %v1725 = vsel %vm788, %v1703, 0.0
        %1726 = vadd.xlane.f32.xlu0 %v1725
        %v1727 = vpop.xlane.xlu0 %1726
        %v1728 = vrcp.pop %v1706
        %v1729 = vrcp.pop %v1709
        %v1730 = vrcp.pop %v1712
        %v1731 = vrcp.pop %v1715
        %v1732 = vrcp.pop %v1718
        %v1733 = vrcp.pop %v1721
        %v1734 = vrcp.pop %v1724
        %v1735 = vrcp.pop %v1727
        %v1736 = vmul.f32 %v1706, %v1728
        %v1737 = vmul.f32 %v1709, %v1729
        %v1738 = vmul.f32 %v1712, %v1730
        %v1739 = vmul.f32 %v1715, %v1731
        %v1740 = vmul.f32 %v1718, %v1732
        %v1741 = vmul.f32 %v1721, %v1733
        %v1742 = vmul.f32 %v1724, %v1734
        %v1743 = vmul.f32 %v1727, %v1735
        %v1744 = vsub.f32 2.0, %v1736
        %v1745 = vsub.f32 2.0, %v1737
        %v1746 = vsub.f32 2.0, %v1738
        %v1747 = vsub.f32 2.0, %v1739
        %v1748 = vsub.f32 2.0, %v1740
        %v1749 = vsub.f32 2.0, %v1741
        %v1750 = vsub.f32 2.0, %v1742
        %v1751 = vsub.f32 2.0, %v1743
        %v1752 = vmul.f32 %v1728, %v1744
        %v1753 = vmul.f32 %v1729, %v1745
        %v1754 = vmul.f32 %v1730, %v1746
        %v1755 = vmul.f32 %v1731, %v1747
        %v1756 = vmul.f32 %v1732, %v1748
        %v1757 = vmul.f32 %v1733, %v1749
        %v1758 = vmul.f32 %v1734, %v1750
        %v1759 = vmul.f32 %v1735, %v1751
        %v1760 = vmul.f32 %v1689, %v1752
        %v1761 = vmul.f32 %v1691, %v1753
        %v1762 = vmul.f32 %v1693, %v1754
        %v1763 = vmul.f32 %v1695, %v1755
        %v1764 = vmul.f32 %v1697, %v1756
        %v1765 = vmul.f32 %v1699, %v1757
        %v1766 = vmul.f32 %v1701, %v1758
        %v1767 = vmul.f32 %v1703, %v1759
        %1770 = vrot.lane.b32.xlu0 %v1257, 120
        %v1771 = vpop.permute.xlu0 %1770
        %1772 = vrot.lane.b32.xlu0 %v1258, 120
        %v1773 = vpop.permute.xlu0 %1772
        %v1777 = vsel %vm788, %v1760, 0
        %v1780 = vsel %vm788, %v1761, 0
        %1782 = vmatprep.subr.mxu0 0.0
        %1783 = vmatpush1.msra.mxu0 %v1771
        %1784 = vmatprep.subr.mxu0 0.0
        %1785 = vmatpush1.msra.mxu0 %v1773
        %1786 = vmatprep.subr.mxu0 0.0
        %1787 = vmatpush1.msra.mxu0 0.0
        %1788 = vmatprep.subr.mxu0 0.0
        %1789 = vmatpush1.msra.mxu0 0.0
        %1790 = vmatprep.subr.mxu0 0.0
        %1791 = vmatpush1.msra.mxu0 0.0
        %1792 = vmatprep.subr.mxu0 0.0
        %1793 = vmatpush1.msra.mxu0 0.0
        %1794 = vmatprep.subr.mxu0 0.0
        %1795 = vmatpush1.msra.mxu0 0.0
        %1796 = vmatprep.subr.mxu0 0.0
        %1797 = vmatpush1.msra.mxu0 0.0
        %1798 = vmatprep.subr.mxu0 0.0
        %1799 = vmatpush1.msra.mxu0 0.0
        %1800 = vmatprep.subr.mxu0 0.0
        %1801 = vmatpush1.msra.mxu0 0.0
        %1802 = vmatprep.subr.mxu0 0.0
        %1803 = vmatpush1.msra.mxu0 0.0
        %1804 = vmatprep.subr.mxu0 0.0
        %1805 = vmatpush1.msra.mxu0 0.0
        %1806 = vmatprep.subr.mxu0 0.0
        %1807 = vmatpush1.msra.mxu0 0.0
        %1808 = vmatprep.subr.mxu0 0.0
        %1809 = vmatpush1.msra.mxu0 0.0
        %1810 = vmatprep.subr.mxu0 0.0
        %1811 = vmatpush1.msra.mxu0 0.0
        %1812 = vmatprep.subr.mxu0 0.0
        %1813 = vmatpush1.msra.mxu0 0.0
        %1814 = vmatprep.subr.mxu0 0.0
        %1815 = vmatpush1.msra.mxu0 0.0
        %1816 = vmatprep.subr.mxu0 0.0
        %1817 = vmatpush1.msra.mxu0 0.0
        %1818 = vmatprep.subr.mxu0 0.0
        %1819 = vmatpush1.msra.mxu0 0.0
        %1820 = vmatprep.subr.mxu0 0.0
        %1821 = vmatpush1.msra.mxu0 0.0
        %1822 = vmatprep.subr.mxu0 0.0
        %1823 = vmatpush1.msra.mxu0 0.0
        %1824 = vmatprep.subr.mxu0 0.0
        %1825 = vmatpush1.msra.mxu0 0.0
        %1826 = vmatprep.subr.mxu0 0.0
        %1827 = vmatpush1.msra.mxu0 0.0
        %1828 = vmatprep.subr.mxu0 0.0
        %1829 = vmatpush1.msra.mxu0 0.0
        %1830 = vmatprep.subr.mxu0 0.0
        %1831 = vmatpush1.msra.mxu0 0.0
        %1832 = vmatprep.subr.mxu0 0.0
        %1833 = vmatpush1.msra.mxu0 0.0
        %1834 = vmatprep.subr.mxu0 0.0
        %1835 = vmatpush1.msra.mxu0 0.0
        %1836 = vmatprep.subr.mxu0 0.0
        %1837 = vmatpush1.msra.mxu0 0.0
        %1838 = vmatprep.subr.mxu0 0.0
        %1839 = vmatpush1.msra.mxu0 0.0
        %1840 = vmatprep.subr.mxu0 0.0
        %1841 = vmatpush1.msra.mxu0 0.0
        %1842 = vmatprep.subr.mxu0 0.0
        %1843 = vmatpush1.msra.mxu0 0.0
        %1844 = vmatprep.subr.mxu0 0.0
        %1845 = vmatpush1.msra.mxu0 0.0
        %1846 = vmatprep.mubr.f32.mxu0 0.0
        %1847 = vmatmul.mubr.f32.gmra.mrb[0].mxu0 %v1777
        %v1848 = vpop.f32.mrb[0].mxu0
        %v1849 = vadd.f32 0.0, %v1848
        %v1850 = vpop.f32.mrb[0].mxu0
        %1851 = vmatprep.mubr.f32.mxu0 0.0
        %1852 = vmatmul.mubr.f32.gmra.mrb[0].mxu0 %v1780
        %v1853 = vpop.f32.mrb[0].mxu0
        %v1854 = vadd.f32 0.0, %v1853
        %v1855 = vpop.f32.mrb[0].mxu0
        %1856 = vdwg.mxu0
        %1859 = vrot.lane.b32.xlu0 %v1259, 120
        %v1860 = vpop.permute.xlu0 %1859
        %1861 = vrot.lane.b32.xlu0 %v1260, 120
        %v1862 = vpop.permute.xlu0 %1861
        %v1866 = vsel %vm788, %v1762, 0
        %v1869 = vsel %vm788, %v1763, 0
        %1871 = vmatprep.subr.mxu0 0.0
        %1872 = vmatpush1.msra.mxu0 %v1860
        %1873 = vmatprep.subr.mxu0 0.0
        %1874 = vmatpush1.msra.mxu0 %v1862
        %1875 = vmatprep.subr.mxu0 0.0
        %1876 = vmatpush1.msra.mxu0 0.0
        %1877 = vmatprep.subr.mxu0 0.0
        %1878 = vmatpush1.msra.mxu0 0.0
        %1879 = vmatprep.subr.mxu0 0.0
        %1880 = vmatpush1.msra.mxu0 0.0
        %1881 = vmatprep.subr.mxu0 0.0
        %1882 = vmatpush1.msra.mxu0 0.0
        %1883 = vmatprep.subr.mxu0 0.0
        %1884 = vmatpush1.msra.mxu0 0.0
        %1885 = vmatprep.subr.mxu0 0.0
        %1886 = vmatpush1.msra.mxu0 0.0
        %1887 = vmatprep.subr.mxu0 0.0
        %1888 = vmatpush1.msra.mxu0 0.0
        %1889 = vmatprep.subr.mxu0 0.0
        %1890 = vmatpush1.msra.mxu0 0.0
        %1891 = vmatprep.subr.mxu0 0.0
        %1892 = vmatpush1.msra.mxu0 0.0
        %1893 = vmatprep.subr.mxu0 0.0
        %1894 = vmatpush1.msra.mxu0 0.0
        %1895 = vmatprep.subr.mxu0 0.0
        %1896 = vmatpush1.msra.mxu0 0.0
        %1897 = vmatprep.subr.mxu0 0.0
        %1898 = vmatpush1.msra.mxu0 0.0
        %1899 = vmatprep.subr.mxu0 0.0
        %1900 = vmatpush1.msra.mxu0 0.0
        %1901 = vmatprep.subr.mxu0 0.0
        %1902 = vmatpush1.msra.mxu0 0.0
        %1903 = vmatprep.subr.mxu0 0.0
        %1904 = vmatpush1.msra.mxu0 0.0
        %1905 = vmatprep.subr.mxu0 0.0
        %1906 = vmatpush1.msra.mxu0 0.0
        %1907 = vmatprep.subr.mxu0 0.0
        %1908 = vmatpush1.msra.mxu0 0.0
        %1909 = vmatprep.subr.mxu0 0.0
        %1910 = vmatpush1.msra.mxu0 0.0
        %1911 = vmatprep.subr.mxu0 0.0
        %1912 = vmatpush1.msra.mxu0 0.0
        %1913 = vmatprep.subr.mxu0 0.0
        %1914 = vmatpush1.msra.mxu0 0.0
        %1915 = vmatprep.subr.mxu0 0.0
        %1916 = vmatpush1.msra.mxu0 0.0
        %1917 = vmatprep.subr.mxu0 0.0
        %1918 = vmatpush1.msra.mxu0 0.0
        %1919 = vmatprep.subr.mxu0 0.0
        %1920 = vmatpush1.msra.mxu0 0.0
        %1921 = vmatprep.subr.mxu0 0.0
        %1922 = vmatpush1.msra.mxu0 0.0
        %1923 = vmatprep.subr.mxu0 0.0
        %1924 = vmatpush1.msra.mxu0 0.0
        %1925 = vmatprep.subr.mxu0 0.0
        %1926 = vmatpush1.msra.mxu0 0.0
        %1927 = vmatprep.subr.mxu0 0.0
        %1928 = vmatpush1.msra.mxu0 0.0
        %1929 = vmatprep.subr.mxu0 0.0
        %1930 = vmatpush1.msra.mxu0 0.0
        %1931 = vmatprep.subr.mxu0 0.0
        %1932 = vmatpush1.msra.mxu0 0.0
        %1933 = vmatprep.subr.mxu0 0.0
        %1934 = vmatpush1.msra.mxu0 0.0
        %1935 = vmatprep.mubr.f32.mxu0 0.0
        %1936 = vmatmul.mubr.f32.gmra.mrb[0].mxu0 %v1866
        %v1937 = vpop.f32.mrb[0].mxu0
        %v1938 = vadd.f32 0.0, %v1937
        %v1939 = vpop.f32.mrb[0].mxu0
        %1940 = vmatprep.mubr.f32.mxu0 0.0
        %1941 = vmatmul.mubr.f32.gmra.mrb[0].mxu0 %v1869
        %v1942 = vpop.f32.mrb[0].mxu0
        %v1943 = vadd.f32 0.0, %v1942
        %v1944 = vpop.f32.mrb[0].mxu0
        %1945 = vdwg.mxu0
        %1948 = vrot.lane.b32.xlu0 %v1261, 120
        %v1949 = vpop.permute.xlu0 %1948
        %1950 = vrot.lane.b32.xlu0 %v1262, 120
        %v1951 = vpop.permute.xlu0 %1950
        %v1955 = vsel %vm788, %v1764, 0
        %v1958 = vsel %vm788, %v1765, 0
        %1960 = vmatprep.subr.mxu0 0.0
        %1961 = vmatpush1.msra.mxu0 %v1949
        %1962 = vmatprep.subr.mxu0 0.0
        %1963 = vmatpush1.msra.mxu0 %v1951
        %1964 = vmatprep.subr.mxu0 0.0
        %1965 = vmatpush1.msra.mxu0 0.0
        %1966 = vmatprep.subr.mxu0 0.0
        %1967 = vmatpush1.msra.mxu0 0.0
        %1968 = vmatprep.subr.mxu0 0.0
        %1969 = vmatpush1.msra.mxu0 0.0
        %1970 = vmatprep.subr.mxu0 0.0
        %1971 = vmatpush1.msra.mxu0 0.0
        %1972 = vmatprep.subr.mxu0 0.0
        %1973 = vmatpush1.msra.mxu0 0.0
        %1974 = vmatprep.subr.mxu0 0.0
        %1975 = vmatpush1.msra.mxu0 0.0
        %1976 = vmatprep.subr.mxu0 0.0
        %1977 = vmatpush1.msra.mxu0 0.0
        %1978 = vmatprep.subr.mxu0 0.0
        %1979 = vmatpush1.msra.mxu0 0.0
        %1980 = vmatprep.subr.mxu0 0.0
        %1981 = vmatpush1.msra.mxu0 0.0
        %1982 = vmatprep.subr.mxu0 0.0
        %1983 = vmatpush1.msra.mxu0 0.0
        %1984 = vmatprep.subr.mxu0 0.0
        %1985 = vmatpush1.msra.mxu0 0.0
        %1986 = vmatprep.subr.mxu0 0.0
        %1987 = vmatpush1.msra.mxu0 0.0
        %1988 = vmatprep.subr.mxu0 0.0
        %1989 = vmatpush1.msra.mxu0 0.0
        %1990 = vmatprep.subr.mxu0 0.0
        %1991 = vmatpush1.msra.mxu0 0.0
        %1992 = vmatprep.subr.mxu0 0.0
        %1993 = vmatpush1.msra.mxu0 0.0
        %1994 = vmatprep.subr.mxu0 0.0
        %1995 = vmatpush1.msra.mxu0 0.0
        %1996 = vmatprep.subr.mxu0 0.0
        %1997 = vmatpush1.msra.mxu0 0.0
        %1998 = vmatprep.subr.mxu0 0.0
        %1999 = vmatpush1.msra.mxu0 0.0
        %2000 = vmatprep.subr.mxu0 0.0
        %2001 = vmatpush1.msra.mxu0 0.0
        %2002 = vmatprep.subr.mxu0 0.0
        %2003 = vmatpush1.msra.mxu0 0.0
        %2004 = vmatprep.subr.mxu0 0.0
        %2005 = vmatpush1.msra.mxu0 0.0
        %2006 = vmatprep.subr.mxu0 0.0
        %2007 = vmatpush1.msra.mxu0 0.0
        %2008 = vmatprep.subr.mxu0 0.0
        %2009 = vmatpush1.msra.mxu0 0.0
        %2010 = vmatprep.subr.mxu0 0.0
        %2011 = vmatpush1.msra.mxu0 0.0
        %2012 = vmatprep.subr.mxu0 0.0
        %2013 = vmatpush1.msra.mxu0 0.0
        %2014 = vmatprep.subr.mxu0 0.0
        %2015 = vmatpush1.msra.mxu0 0.0
        %2016 = vmatprep.subr.mxu0 0.0
        %2017 = vmatpush1.msra.mxu0 0.0
        %2018 = vmatprep.subr.mxu0 0.0
        %2019 = vmatpush1.msra.mxu0 0.0
        %2020 = vmatprep.subr.mxu0 0.0
        %2021 = vmatpush1.msra.mxu0 0.0
        %2022 = vmatprep.subr.mxu0 0.0
        %2023 = vmatpush1.msra.mxu0 0.0
        %2024 = vmatprep.mubr.f32.mxu0 0.0
        %2025 = vmatmul.mubr.f32.gmra.mrb[0].mxu0 %v1955
        %v2026 = vpop.f32.mrb[0].mxu0
        %v2027 = vadd.f32 0.0, %v2026
        %v2028 = vpop.f32.mrb[0].mxu0
        %2029 = vmatprep.mubr.f32.mxu0 0.0
        %2030 = vmatmul.mubr.f32.gmra.mrb[0].mxu0 %v1958
        %v2031 = vpop.f32.mrb[0].mxu0
        %v2032 = vadd.f32 0.0, %v2031
        %v2033 = vpop.f32.mrb[0].mxu0
        %2034 = vdwg.mxu0
        %2037 = vrot.lane.b32.xlu0 %v1263, 120
        %v2038 = vpop.permute.xlu0 %2037
        %2039 = vrot.lane.b32.xlu0 %v1264, 120
        %v2040 = vpop.permute.xlu0 %2039
        %v2044 = vsel %vm788, %v1766, 0
        %v2047 = vsel %vm788, %v1767, 0
        %2049 = vmatprep.subr.mxu0 0.0
        %2050 = vmatpush1.msra.mxu0 %v2038
        %2051 = vmatprep.subr.mxu0 0.0
        %2052 = vmatpush1.msra.mxu0 %v2040
        %2053 = vmatprep.subr.mxu0 0.0
        %2054 = vmatpush1.msra.mxu0 0.0
        %2055 = vmatprep.subr.mxu0 0.0
        %2056 = vmatpush1.msra.mxu0 0.0
        %2057 = vmatprep.subr.mxu0 0.0
        %2058 = vmatpush1.msra.mxu0 0.0
        %2059 = vmatprep.subr.mxu0 0.0
        %2060 = vmatpush1.msra.mxu0 0.0
        %2061 = vmatprep.subr.mxu0 0.0
        %2062 = vmatpush1.msra.mxu0 0.0
        %2063 = vmatprep.subr.mxu0 0.0
        %2064 = vmatpush1.msra.mxu0 0.0
        %2065 = vmatprep.subr.mxu0 0.0
        %2066 = vmatpush1.msra.mxu0 0.0
        %2067 = vmatprep.subr.mxu0 0.0
        %2068 = vmatpush1.msra.mxu0 0.0
        %2069 = vmatprep.subr.mxu0 0.0
        %2070 = vmatpush1.msra.mxu0 0.0
        %2071 = vmatprep.subr.mxu0 0.0
        %2072 = vmatpush1.msra.mxu0 0.0
        %2073 = vmatprep.subr.mxu0 0.0
        %2074 = vmatpush1.msra.mxu0 0.0
        %2075 = vmatprep.subr.mxu0 0.0
        %2076 = vmatpush1.msra.mxu0 0.0
        %2077 = vmatprep.subr.mxu0 0.0
        %2078 = vmatpush1.msra.mxu0 0.0
        %2079 = vmatprep.subr.mxu0 0.0
        %2080 = vmatpush1.msra.mxu0 0.0
        %2081 = vmatprep.subr.mxu0 0.0
        %2082 = vmatpush1.msra.mxu0 0.0
        %2083 = vmatprep.subr.mxu0 0.0
        %2084 = vmatpush1.msra.mxu0 0.0
        %2085 = vmatprep.subr.mxu0 0.0
        %2086 = vmatpush1.msra.mxu0 0.0
        %2087 = vmatprep.subr.mxu0 0.0
        %2088 = vmatpush1.msra.mxu0 0.0
        %2089 = vmatprep.subr.mxu0 0.0
        %2090 = vmatpush1.msra.mxu0 0.0
        %2091 = vmatprep.subr.mxu0 0.0
        %2092 = vmatpush1.msra.mxu0 0.0
        %2093 = vmatprep.subr.mxu0 0.0
        %2094 = vmatpush1.msra.mxu0 0.0
        %2095 = vmatprep.subr.mxu0 0.0
        %2096 = vmatpush1.msra.mxu0 0.0
        %2097 = vmatprep.subr.mxu0 0.0
        %2098 = vmatpush1.msra.mxu0 0.0
        %2099 = vmatprep.subr.mxu0 0.0
        %2100 = vmatpush1.msra.mxu0 0.0
        %2101 = vmatprep.subr.mxu0 0.0
        %2102 = vmatpush1.msra.mxu0 0.0
        %2103 = vmatprep.subr.mxu0 0.0
        %2104 = vmatpush1.msra.mxu0 0.0
        %2105 = vmatprep.subr.mxu0 0.0
        %2106 = vmatpush1.msra.mxu0 0.0
        %2107 = vmatprep.subr.mxu0 0.0
        %2108 = vmatpush1.msra.mxu0 0.0
        %2109 = vmatprep.subr.mxu0 0.0
        %2110 = vmatpush1.msra.mxu0 0.0
        %2111 = vmatprep.subr.mxu0 0.0
        %2112 = vmatpush1.msra.mxu0 0.0
        %2113 = vmatprep.mubr.f32.mxu0 0.0
        %2114 = vmatmul.mubr.f32.gmra.mrb[0].mxu0 %v2044
        %v2115 = vpop.f32.mrb[0].mxu0
        %v2116 = vadd.f32 0.0, %v2115
        %v2117 = vpop.f32.mrb[0].mxu0
        %2118 = vmatprep.mubr.f32.mxu0 0.0
        %2119 = vmatmul.mubr.f32.gmra.mrb[0].mxu0 %v2047
        %v2120 = vpop.f32.mrb[0].mxu0
        %v2121 = vadd.f32 0.0, %v2120
        %v2122 = vpop.f32.mrb[0].mxu0
        %2123 = vdwg.mxu0
        %2132 = vrot.lane.b32.xlu0 %v1849, 8
        %v2133 = vpop.permute.xlu0 %2132
        %2134 = vrot.lane.b32.xlu0 %v1854, 8
        %v2135 = vpop.permute.xlu0 %2134
        %2136 = vrot.lane.b32.xlu0 %v1938, 8
        %v2137 = vpop.permute.xlu0 %2136
        %2138 = vrot.lane.b32.xlu0 %v1943, 8
        %v2139 = vpop.permute.xlu0 %2138
        %2140 = vrot.lane.b32.xlu0 %v2027, 8
        %v2141 = vpop.permute.xlu0 %2140
        %2142 = vrot.lane.b32.xlu0 %v2032, 8
        %v2143 = vpop.permute.xlu0 %2142
        %2144 = vrot.lane.b32.xlu0 %v2116, 8
        %v2145 = vpop.permute.xlu0 %2144
        %2146 = vrot.lane.b32.xlu0 %v2121, 8
        %v2147 = vpop.permute.xlu0 %2146
        %vm2156 = vcmask 130112
        %2157 = vst.msk [vmem:[#allocation2] sm:$0xff] %vm2156, %v2133
        %2158 = vst.msk [vmem:[#allocation2 + $0x8] sm:$0xff] %vm2156, %v2135
        %2159 = vst.msk [vmem:[#allocation2 + $0x10] sm:$0xff] %vm2156, %v2137
        %2160 = vst.msk [vmem:[#allocation2 + $0x18] sm:$0xff] %vm2156, %v2139
        %2161 = vst.msk [vmem:[#allocation2 + $0x20] sm:$0xff] %vm2156, %v2141
        %2162 = vst.msk [vmem:[#allocation2 + $0x28] sm:$0xff] %vm2156, %v2143
        %2163 = vst.msk [vmem:[#allocation2 + $0x30] sm:$0xff] %vm2156, %v2145
        %2164 = vst.msk [vmem:[#allocation2 + $0x38] sm:$0xff] %vm2156, %v2147
        %v2165 = vld [vmem:[%s321] sm:$0xff]
        %v2166 = vld [vmem:[%s321 + $0x8] sm:$0xff]
        %v2167 = vld [vmem:[%s321 + $0x10] sm:$0xff]
        %v2168 = vld [vmem:[%s321 + $0x18] sm:$0xff]
        %v2169 = vld [vmem:[%s321 + $0x20] sm:$0xff]
        %v2170 = vld [vmem:[%s321 + $0x28] sm:$0xff]
        %v2171 = vld [vmem:[%s321 + $0x30] sm:$0xff]
        %v2172 = vld [vmem:[%s321 + $0x38] sm:$0xff]
        %v2173 = vmul.f32 %v2165, 0.35355338
        %v2174 = vmul.f32 %v2166, 0.35355338
        %v2175 = vmul.f32 %v2167, 0.35355338
        %v2176 = vmul.f32 %v2168, 0.35355338
        %v2177 = vmul.f32 %v2169, 0.35355338
        %v2178 = vmul.f32 %v2170, 0.35355338
        %v2179 = vmul.f32 %v2171, 0.35355338
        %v2180 = vmul.f32 %v2172, 0.35355338
        %v2181 = vld [vmem:[%s330] sm:$0xff]
        %v2182 = vld [vmem:[%s330 + $0x8] sm:$0xff]
        %v2183 = vld [vmem:[%s330 + $0x10] sm:$0xff]
        %v2184 = vld [vmem:[%s330 + $0x18] sm:$0xff]
        %v2185 = vld [vmem:[%s330 + $0x20] sm:$0xff]
        %v2186 = vld [vmem:[%s330 + $0x28] sm:$0xff]
        %v2187 = vld [vmem:[%s330 + $0x30] sm:$0xff]
        %v2188 = vld [vmem:[%s330 + $0x38] sm:$0xff]
        %v2189 = vld [vmem:[%s339] sm:$0xff]
        %v2190 = vld [vmem:[%s339 + $0x8] sm:$0xff]
        %v2191 = vld [vmem:[%s339 + $0x10] sm:$0xff]
        %v2192 = vld [vmem:[%s339 + $0x18] sm:$0xff]
        %v2193 = vld [vmem:[%s339 + $0x20] sm:$0xff]
        %v2194 = vld [vmem:[%s339 + $0x28] sm:$0xff]
        %v2195 = vld [vmem:[%s339 + $0x30] sm:$0xff]
        %v2196 = vld [vmem:[%s339 + $0x38] sm:$0xff]
        %s2197 = scalar_lea.vmem [#allocation9], 32
        %v2198 = vld [vmem:[%s2197] sm:$0xff]
        %v2199 = vld [vmem:[%s2197 + $0x8] sm:$0xff]
        %2202 = vrot.lane.b32.xlu0 %v2173, 112
        %v2203 = vpop.permute.xlu0 %2202
        %2204 = vrot.lane.b32.xlu0 %v2174, 112
        %v2205 = vpop.permute.xlu0 %2204
        %2208 = vrot.lane.b32.xlu0 %v2181, 112
        %v2209 = vpop.permute.xlu0 %2208
        %2210 = vrot.lane.b32.xlu0 %v2182, 112
        %v2211 = vpop.permute.xlu0 %2210
        %v2212 = vsel %vm431, %v2203, 0
        %v2214 = vsel %vm431, %v2205, 0
        %v2216 = vsel %vm431, %v2209, 0
        %v2218 = vsel %vm431, %v2211, 0
        %2220 = vmatprep.subr.mxu0 0.0
        %2221 = vmatpush1.xpose.msra.mxu0 %v2216
        %2222 = vmatprep.subr.mxu0 0.0
        %2223 = vmatpush1.xpose.msra.mxu0 %v2218
        %2224 = vmatprep.subr.mxu0 0.0
        %2225 = vmatpush1.xpose.msra.mxu0 0.0
        %2226 = vmatprep.subr.mxu0 0.0
        %2227 = vmatpush1.xpose.msra.mxu0 0.0
        %2228 = vmatprep.subr.mxu0 0.0
        %2229 = vmatpush1.xpose.msra.mxu0 0.0
        %2230 = vmatprep.subr.mxu0 0.0
        %2231 = vmatpush1.xpose.msra.mxu0 0.0
        %2232 = vmatprep.subr.mxu0 0.0
        %2233 = vmatpush1.xpose.msra.mxu0 0.0
        %2234 = vmatprep.subr.mxu0 0.0
        %2235 = vmatpush1.xpose.msra.mxu0 0.0
        %2236 = vmatprep.subr.mxu0 0.0
        %2237 = vmatpush1.xpose.msra.mxu0 0.0
        %2238 = vmatprep.subr.mxu0 0.0
        %2239 = vmatpush1.xpose.msra.mxu0 0.0
        %2240 = vmatprep.subr.mxu0 0.0
        %2241 = vmatpush1.xpose.msra.mxu0 0.0
        %2242 = vmatprep.subr.mxu0 0.0
        %2243 = vmatpush1.xpose.msra.mxu0 0.0
        %2244 = vmatprep.subr.mxu0 0.0
        %2245 = vmatpush1.xpose.msra.mxu0 0.0
        %2246 = vmatprep.subr.mxu0 0.0
        %2247 = vmatpush1.xpose.msra.mxu0 0.0
        %2248 = vmatprep.subr.mxu0 0.0
        %2249 = vmatpush1.xpose.msra.mxu0 0.0
        %2250 = vmatprep.subr.mxu0 0.0
        %2251 = vmatpush1.xpose.msra.mxu0 0.0
        %2252 = vmatprep.subr.mxu0 0.0
        %2253 = vmatpush1.xpose.msra.mxu0 0.0
        %2254 = vmatprep.subr.mxu0 0.0
        %2255 = vmatpush1.xpose.msra.mxu0 0.0
        %2256 = vmatprep.subr.mxu0 0.0
        %2257 = vmatpush1.xpose.msra.mxu0 0.0
        %2258 = vmatprep.subr.mxu0 0.0
        %2259 = vmatpush1.xpose.msra.mxu0 0.0
        %2260 = vmatprep.subr.mxu0 0.0
        %2261 = vmatpush1.xpose.msra.mxu0 0.0
        %2262 = vmatprep.subr.mxu0 0.0
        %2263 = vmatpush1.xpose.msra.mxu0 0.0
        %2264 = vmatprep.subr.mxu0 0.0
        %2265 = vmatpush1.xpose.msra.mxu0 0.0
        %2266 = vmatprep.subr.mxu0 0.0
        %2267 = vmatpush1.xpose.msra.mxu0 0.0
        %2268 = vmatprep.subr.mxu0 0.0
        %2269 = vmatpush1.xpose.msra.mxu0 0.0
        %2270 = vmatprep.subr.mxu0 0.0
        %2271 = vmatpush1.xpose.msra.mxu0 0.0
        %2272 = vmatprep.subr.mxu0 0.0
        %2273 = vmatpush1.xpose.msra.mxu0 0.0
        %2274 = vmatprep.subr.mxu0 0.0
        %2275 = vmatpush1.xpose.msra.mxu0 0.0
        %2276 = vmatprep.subr.mxu0 0.0
        %2277 = vmatpush1.xpose.msra.mxu0 0.0
        %2278 = vmatprep.subr.mxu0 0.0
        %2279 = vmatpush1.xpose.msra.mxu0 0.0
        %2280 = vmatprep.subr.mxu0 0.0
        %2281 = vmatpush1.xpose.msra.mxu0 0.0
        %2282 = vmatprep.subr.mxu0 0.0
        %2283 = vmatpush1.xpose.msra.mxu0 0.0
        %2284 = vmatprep.mubr.f32.mxu0 0.0
        %2285 = vmatmul.mubr.f32.gmra.mrb[0].mxu0 %v2212
        %v2286 = vpop.f32.mrb[0].mxu0
        %v2287 = vadd.f32 %v2198, %v2286
        %v2288 = vpop.f32.mrb[0].mxu0
        %2289 = vmatprep.mubr.f32.mxu0 0.0
        %2290 = vmatmul.mubr.f32.gmra.mrb[0].mxu0 %v2214
        %v2291 = vpop.f32.mrb[0].mxu0
        %v2292 = vadd.f32 %v2199, %v2291
        %v2293 = vpop.f32.mrb[0].mxu0
        %2294 = vdwg.mxu0
        %2297 = vrot.lane.b32.xlu0 %v2175, 112
        %v2298 = vpop.permute.xlu0 %2297
        %2299 = vrot.lane.b32.xlu0 %v2176, 112
        %v2300 = vpop.permute.xlu0 %2299
        %2303 = vrot.lane.b32.xlu0 %v2183, 112
        %v2304 = vpop.permute.xlu0 %2303
        %2305 = vrot.lane.b32.xlu0 %v2184, 112
        %v2306 = vpop.permute.xlu0 %2305
        %v2307 = vsel %vm431, %v2298, 0
        %v2309 = vsel %vm431, %v2300, 0
        %v2311 = vsel %vm431, %v2304, 0
        %v2313 = vsel %vm431, %v2306, 0
        %2315 = vmatprep.subr.mxu0 0.0
        %2316 = vmatpush1.xpose.msra.mxu0 %v2311
        %2317 = vmatprep.subr.mxu0 0.0
        %2318 = vmatpush1.xpose.msra.mxu0 %v2313
        %2319 = vmatprep.subr.mxu0 0.0
        %2320 = vmatpush1.xpose.msra.mxu0 0.0
        %2321 = vmatprep.subr.mxu0 0.0
        %2322 = vmatpush1.xpose.msra.mxu0 0.0
        %2323 = vmatprep.subr.mxu0 0.0
        %2324 = vmatpush1.xpose.msra.mxu0 0.0
        %2325 = vmatprep.subr.mxu0 0.0
        %2326 = vmatpush1.xpose.msra.mxu0 0.0
        %2327 = vmatprep.subr.mxu0 0.0
        %2328 = vmatpush1.xpose.msra.mxu0 0.0
        %2329 = vmatprep.subr.mxu0 0.0
        %2330 = vmatpush1.xpose.msra.mxu0 0.0
        %2331 = vmatprep.subr.mxu0 0.0
        %2332 = vmatpush1.xpose.msra.mxu0 0.0
        %2333 = vmatprep.subr.mxu0 0.0
        %2334 = vmatpush1.xpose.msra.mxu0 0.0
        %2335 = vmatprep.subr.mxu0 0.0
        %2336 = vmatpush1.xpose.msra.mxu0 0.0
        %2337 = vmatprep.subr.mxu0 0.0
        %2338 = vmatpush1.xpose.msra.mxu0 0.0
        %2339 = vmatprep.subr.mxu0 0.0
        %2340 = vmatpush1.xpose.msra.mxu0 0.0
        %2341 = vmatprep.subr.mxu0 0.0
        %2342 = vmatpush1.xpose.msra.mxu0 0.0
        %2343 = vmatprep.subr.mxu0 0.0
        %2344 = vmatpush1.xpose.msra.mxu0 0.0
        %2345 = vmatprep.subr.mxu0 0.0
        %2346 = vmatpush1.xpose.msra.mxu0 0.0
        %2347 = vmatprep.subr.mxu0 0.0
        %2348 = vmatpush1.xpose.msra.mxu0 0.0
        %2349 = vmatprep.subr.mxu0 0.0
        %2350 = vmatpush1.xpose.msra.mxu0 0.0
        %2351 = vmatprep.subr.mxu0 0.0
        %2352 = vmatpush1.xpose.msra.mxu0 0.0
        %2353 = vmatprep.subr.mxu0 0.0
        %2354 = vmatpush1.xpose.msra.mxu0 0.0
        %2355 = vmatprep.subr.mxu0 0.0
        %2356 = vmatpush1.xpose.msra.mxu0 0.0
        %2357 = vmatprep.subr.mxu0 0.0
        %2358 = vmatpush1.xpose.msra.mxu0 0.0
        %2359 = vmatprep.subr.mxu0 0.0
        %2360 = vmatpush1.xpose.msra.mxu0 0.0
        %2361 = vmatprep.subr.mxu0 0.0
        %2362 = vmatpush1.xpose.msra.mxu0 0.0
        %2363 = vmatprep.subr.mxu0 0.0
        %2364 = vmatpush1.xpose.msra.mxu0 0.0
        %2365 = vmatprep.subr.mxu0 0.0
        %2366 = vmatpush1.xpose.msra.mxu0 0.0
        %2367 = vmatprep.subr.mxu0 0.0
        %2368 = vmatpush1.xpose.msra.mxu0 0.0
        %2369 = vmatprep.subr.mxu0 0.0
        %2370 = vmatpush1.xpose.msra.mxu0 0.0
        %2371 = vmatprep.subr.mxu0 0.0
        %2372 = vmatpush1.xpose.msra.mxu0 0.0
        %2373 = vmatprep.subr.mxu0 0.0
        %2374 = vmatpush1.xpose.msra.mxu0 0.0
        %2375 = vmatprep.subr.mxu0 0.0
        %2376 = vmatpush1.xpose.msra.mxu0 0.0
        %2377 = vmatprep.subr.mxu0 0.0
        %2378 = vmatpush1.xpose.msra.mxu0 0.0
        %2379 = vmatprep.mubr.f32.mxu0 0.0
        %2380 = vmatmul.mubr.f32.gmra.mrb[0].mxu0 %v2307
        %v2381 = vpop.f32.mrb[0].mxu0
        %v2382 = vadd.f32 %v2198, %v2381
        %v2383 = vpop.f32.mrb[0].mxu0
        %2384 = vmatprep.mubr.f32.mxu0 0.0
        %2385 = vmatmul.mubr.f32.gmra.mrb[0].mxu0 %v2309
        %v2386 = vpop.f32.mrb[0].mxu0
        %v2387 = vadd.f32 %v2199, %v2386
        %v2388 = vpop.f32.mrb[0].mxu0
        %2389 = vdwg.mxu0
        %2392 = vrot.lane.b32.xlu0 %v2177, 112
        %v2393 = vpop.permute.xlu0 %2392
        %2394 = vrot.lane.b32.xlu0 %v2178, 112
        %v2395 = vpop.permute.xlu0 %2394
        %2398 = vrot.lane.b32.xlu0 %v2185, 112
        %v2399 = vpop.permute.xlu0 %2398
        %2400 = vrot.lane.b32.xlu0 %v2186, 112
        %v2401 = vpop.permute.xlu0 %2400
        %v2402 = vsel %vm431, %v2393, 0
        %v2404 = vsel %vm431, %v2395, 0
        %v2406 = vsel %vm431, %v2399, 0
        %v2408 = vsel %vm431, %v2401, 0
        %2410 = vmatprep.subr.mxu0 0.0
        %2411 = vmatpush1.xpose.msra.mxu0 %v2406
        %2412 = vmatprep.subr.mxu0 0.0
        %2413 = vmatpush1.xpose.msra.mxu0 %v2408
        %2414 = vmatprep.subr.mxu0 0.0
        %2415 = vmatpush1.xpose.msra.mxu0 0.0
        %2416 = vmatprep.subr.mxu0 0.0
        %2417 = vmatpush1.xpose.msra.mxu0 0.0
        %2418 = vmatprep.subr.mxu0 0.0
        %2419 = vmatpush1.xpose.msra.mxu0 0.0
        %2420 = vmatprep.subr.mxu0 0.0
        %2421 = vmatpush1.xpose.msra.mxu0 0.0
        %2422 = vmatprep.subr.mxu0 0.0
        %2423 = vmatpush1.xpose.msra.mxu0 0.0
        %2424 = vmatprep.subr.mxu0 0.0
        %2425 = vmatpush1.xpose.msra.mxu0 0.0
        %2426 = vmatprep.subr.mxu0 0.0
        %2427 = vmatpush1.xpose.msra.mxu0 0.0
        %2428 = vmatprep.subr.mxu0 0.0
        %2429 = vmatpush1.xpose.msra.mxu0 0.0
        %2430 = vmatprep.subr.mxu0 0.0
        %2431 = vmatpush1.xpose.msra.mxu0 0.0
        %2432 = vmatprep.subr.mxu0 0.0
        %2433 = vmatpush1.xpose.msra.mxu0 0.0
        %2434 = vmatprep.subr.mxu0 0.0
        %2435 = vmatpush1.xpose.msra.mxu0 0.0
        %2436 = vmatprep.subr.mxu0 0.0
        %2437 = vmatpush1.xpose.msra.mxu0 0.0
        %2438 = vmatprep.subr.mxu0 0.0
        %2439 = vmatpush1.xpose.msra.mxu0 0.0
        %2440 = vmatprep.subr.mxu0 0.0
        %2441 = vmatpush1.xpose.msra.mxu0 0.0
        %2442 = vmatprep.subr.mxu0 0.0
        %2443 = vmatpush1.xpose.msra.mxu0 0.0
        %2444 = vmatprep.subr.mxu0 0.0
        %2445 = vmatpush1.xpose.msra.mxu0 0.0
        %2446 = vmatprep.subr.mxu0 0.0
        %2447 = vmatpush1.xpose.msra.mxu0 0.0
        %2448 = vmatprep.subr.mxu0 0.0
        %2449 = vmatpush1.xpose.msra.mxu0 0.0
        %2450 = vmatprep.subr.mxu0 0.0
        %2451 = vmatpush1.xpose.msra.mxu0 0.0
        %2452 = vmatprep.subr.mxu0 0.0
        %2453 = vmatpush1.xpose.msra.mxu0 0.0
        %2454 = vmatprep.subr.mxu0 0.0
        %2455 = vmatpush1.xpose.msra.mxu0 0.0
        %2456 = vmatprep.subr.mxu0 0.0
        %2457 = vmatpush1.xpose.msra.mxu0 0.0
        %2458 = vmatprep.subr.mxu0 0.0
        %2459 = vmatpush1.xpose.msra.mxu0 0.0
        %2460 = vmatprep.subr.mxu0 0.0
        %2461 = vmatpush1.xpose.msra.mxu0 0.0
        %2462 = vmatprep.subr.mxu0 0.0
        %2463 = vmatpush1.xpose.msra.mxu0 0.0
        %2464 = vmatprep.subr.mxu0 0.0
        %2465 = vmatpush1.xpose.msra.mxu0 0.0
        %2466 = vmatprep.subr.mxu0 0.0
        %2467 = vmatpush1.xpose.msra.mxu0 0.0
        %2468 = vmatprep.subr.mxu0 0.0
        %2469 = vmatpush1.xpose.msra.mxu0 0.0
        %2470 = vmatprep.subr.mxu0 0.0
        %2471 = vmatpush1.xpose.msra.mxu0 0.0
        %2472 = vmatprep.subr.mxu0 0.0
        %2473 = vmatpush1.xpose.msra.mxu0 0.0
        %2474 = vmatprep.mubr.f32.mxu0 0.0
        %2475 = vmatmul.mubr.f32.gmra.mrb[0].mxu0 %v2402
        %v2476 = vpop.f32.mrb[0].mxu0
        %v2477 = vadd.f32 %v2198, %v2476
        %v2478 = vpop.f32.mrb[0].mxu0
        %2479 = vmatprep.mubr.f32.mxu0 0.0
        %2480 = vmatmul.mubr.f32.gmra.mrb[0].mxu0 %v2404
        %v2481 = vpop.f32.mrb[0].mxu0
        %v2482 = vadd.f32 %v2199, %v2481
        %v2483 = vpop.f32.mrb[0].mxu0
        %2484 = vdwg.mxu0
        %2487 = vrot.lane.b32.xlu0 %v2179, 112
        %v2488 = vpop.permute.xlu0 %2487
        %2489 = vrot.lane.b32.xlu0 %v2180, 112
        %v2490 = vpop.permute.xlu0 %2489
        %2493 = vrot.lane.b32.xlu0 %v2187, 112
        %v2494 = vpop.permute.xlu0 %2493
        %2495 = vrot.lane.b32.xlu0 %v2188, 112
        %v2496 = vpop.permute.xlu0 %2495
        %v2497 = vsel %vm431, %v2488, 0
        %v2499 = vsel %vm431, %v2490, 0
        %v2501 = vsel %vm431, %v2494, 0
        %v2503 = vsel %vm431, %v2496, 0
        %2505 = vmatprep.subr.mxu0 0.0
        %2506 = vmatpush1.xpose.msra.mxu0 %v2501
        %2507 = vmatprep.subr.mxu0 0.0
        %2508 = vmatpush1.xpose.msra.mxu0 %v2503
        %2509 = vmatprep.subr.mxu0 0.0
        %2510 = vmatpush1.xpose.msra.mxu0 0.0
        %2511 = vmatprep.subr.mxu0 0.0
        %2512 = vmatpush1.xpose.msra.mxu0 0.0
        %2513 = vmatprep.subr.mxu0 0.0
        %2514 = vmatpush1.xpose.msra.mxu0 0.0
        %2515 = vmatprep.subr.mxu0 0.0
        %2516 = vmatpush1.xpose.msra.mxu0 0.0
        %2517 = vmatprep.subr.mxu0 0.0
        %2518 = vmatpush1.xpose.msra.mxu0 0.0
        %2519 = vmatprep.subr.mxu0 0.0
        %2520 = vmatpush1.xpose.msra.mxu0 0.0
        %2521 = vmatprep.subr.mxu0 0.0
        %2522 = vmatpush1.xpose.msra.mxu0 0.0
        %2523 = vmatprep.subr.mxu0 0.0
        %2524 = vmatpush1.xpose.msra.mxu0 0.0
        %2525 = vmatprep.subr.mxu0 0.0
        %2526 = vmatpush1.xpose.msra.mxu0 0.0
        %2527 = vmatprep.subr.mxu0 0.0
        %2528 = vmatpush1.xpose.msra.mxu0 0.0
        %2529 = vmatprep.subr.mxu0 0.0
        %2530 = vmatpush1.xpose.msra.mxu0 0.0
        %2531 = vmatprep.subr.mxu0 0.0
        %2532 = vmatpush1.xpose.msra.mxu0 0.0
        %2533 = vmatprep.subr.mxu0 0.0
        %2534 = vmatpush1.xpose.msra.mxu0 0.0
        %2535 = vmatprep.subr.mxu0 0.0
        %2536 = vmatpush1.xpose.msra.mxu0 0.0
        %2537 = vmatprep.subr.mxu0 0.0
        %2538 = vmatpush1.xpose.msra.mxu0 0.0
        %2539 = vmatprep.subr.mxu0 0.0
        %2540 = vmatpush1.xpose.msra.mxu0 0.0
        %2541 = vmatprep.subr.mxu0 0.0
        %2542 = vmatpush1.xpose.msra.mxu0 0.0
        %2543 = vmatprep.subr.mxu0 0.0
        %2544 = vmatpush1.xpose.msra.mxu0 0.0
        %2545 = vmatprep.subr.mxu0 0.0
        %2546 = vmatpush1.xpose.msra.mxu0 0.0
        %2547 = vmatprep.subr.mxu0 0.0
        %2548 = vmatpush1.xpose.msra.mxu0 0.0
        %2549 = vmatprep.subr.mxu0 0.0
        %2550 = vmatpush1.xpose.msra.mxu0 0.0
        %2551 = vmatprep.subr.mxu0 0.0
        %2552 = vmatpush1.xpose.msra.mxu0 0.0
        %2553 = vmatprep.subr.mxu0 0.0
        %2554 = vmatpush1.xpose.msra.mxu0 0.0
        %2555 = vmatprep.subr.mxu0 0.0
        %2556 = vmatpush1.xpose.msra.mxu0 0.0
        %2557 = vmatprep.subr.mxu0 0.0
        %2558 = vmatpush1.xpose.msra.mxu0 0.0
        %2559 = vmatprep.subr.mxu0 0.0
        %2560 = vmatpush1.xpose.msra.mxu0 0.0
        %2561 = vmatprep.subr.mxu0 0.0
        %2562 = vmatpush1.xpose.msra.mxu0 0.0
        %2563 = vmatprep.subr.mxu0 0.0
        %2564 = vmatpush1.xpose.msra.mxu0 0.0
        %2565 = vmatprep.subr.mxu0 0.0
        %2566 = vmatpush1.xpose.msra.mxu0 0.0
        %2567 = vmatprep.subr.mxu0 0.0
        %2568 = vmatpush1.xpose.msra.mxu0 0.0
        %2569 = vmatprep.mubr.f32.mxu0 0.0
        %2570 = vmatmul.mubr.f32.gmra.mrb[0].mxu0 %v2497
        %v2571 = vpop.f32.mrb[0].mxu0
        %v2572 = vadd.f32 %v2198, %v2571
        %v2573 = vpop.f32.mrb[0].mxu0
        %2574 = vmatprep.mubr.f32.mxu0 0.0
        %2575 = vmatmul.mubr.f32.gmra.mrb[0].mxu0 %v2499
        %v2576 = vpop.f32.mrb[0].mxu0
        %v2577 = vadd.f32 %v2199, %v2576
        %v2578 = vpop.f32.mrb[0].mxu0
        %2579 = vdwg.mxu0
        %v2580 = vadd.f32 %v2287, %v389
        %v2581 = vadd.f32 %v2292, %v390
        %v2582 = vadd.f32 %v2382, %v391
        %v2583 = vadd.f32 %v2387, %v392
        %v2584 = vadd.f32 %v2477, %v393
        %v2585 = vadd.f32 %v2482, %v394
        %v2586 = vadd.f32 %v2572, %v395
        %v2587 = vadd.f32 %v2577, %v396
        %v2588 = vsel %vm788, %v2580, -inf
        %2589 = vmax.xlane.f32.xlu0 %v2588
        %v2590 = vpop.xlane.xlu0 %2589
        %v2591 = vsel %vm788, %v2581, -inf
        %2592 = vmax.xlane.f32.xlu0 %v2591
        %v2593 = vpop.xlane.xlu0 %2592
        %v2594 = vsel %vm788, %v2582, -inf
        %2595 = vmax.xlane.f32.xlu0 %v2594
        %v2596 = vpop.xlane.xlu0 %2595
        %v2597 = vsel %vm788, %v2583, -inf
        %2598 = vmax.xlane.f32.xlu0 %v2597
        %v2599 = vpop.xlane.xlu0 %2598
        %v2600 = vsel %vm788, %v2584, -inf
        %2601 = vmax.xlane.f32.xlu0 %v2600
        %v2602 = vpop.xlane.xlu0 %2601
        %v2603 = vsel %vm788, %v2585, -inf
        %2604 = vmax.xlane.f32.xlu0 %v2603
        %v2605 = vpop.xlane.xlu0 %2604
        %v2606 = vsel %vm788, %v2586, -inf
        %2607 = vmax.xlane.f32.xlu0 %v2606
        %v2608 = vpop.xlane.xlu0 %2607
        %v2609 = vsel %vm788, %v2587, -inf
        %2610 = vmax.xlane.f32.xlu0 %v2609
        %v2611 = vpop.xlane.xlu0 %2610
        %v2612 = vsub.f32 %v2580, %v2590
        %v2613 = vsub.f32 %v2581, %v2593
        %v2614 = vsub.f32 %v2582, %v2596
        %v2615 = vsub.f32 %v2583, %v2599
        %v2616 = vsub.f32 %v2584, %v2602
        %v2617 = vsub.f32 %v2585, %v2605
        %v2618 = vsub.f32 %v2586, %v2608
        %v2619 = vsub.f32 %v2587, %v2611
        %v2620 = vmul.f32 %v2612, 1.442695
        %v2621 = vpow.pop %v2620
        %v2622 = vmul.f32 %v2613, 1.442695
        %v2623 = vpow.pop %v2622
        %v2624 = vmul.f32 %v2614, 1.442695
        %v2625 = vpow.pop %v2624
        %v2626 = vmul.f32 %v2615, 1.442695
        %v2627 = vpow.pop %v2626
        %v2628 = vmul.f32 %v2616, 1.442695
        %v2629 = vpow.pop %v2628
        %v2630 = vmul.f32 %v2617, 1.442695
        %v2631 = vpow.pop %v2630
        %v2632 = vmul.f32 %v2618, 1.442695
        %v2633 = vpow.pop %v2632
        %v2634 = vmul.f32 %v2619, 1.442695
        %v2635 = vpow.pop %v2634
        %v2636 = vsel %vm788, %v2621, 0.0
        %2637 = vadd.xlane.f32.xlu0 %v2636
        %v2638 = vpop.xlane.xlu0 %2637
        %v2639 = vsel %vm788, %v2623, 0.0
        %2640 = vadd.xlane.f32.xlu0 %v2639
        %v2641 = vpop.xlane.xlu0 %2640
        %v2642 = vsel %vm788, %v2625, 0.0
        %2643 = vadd.xlane.f32.xlu0 %v2642
        %v2644 = vpop.xlane.xlu0 %2643
        %v2645 = vsel %vm788, %v2627, 0.0
        %2646 = vadd.xlane.f32.xlu0 %v2645
        %v2647 = vpop.xlane.xlu0 %2646
        %v2648 = vsel %vm788, %v2629, 0.0
        %2649 = vadd.xlane.f32.xlu0 %v2648
        %v2650 = vpop.xlane.xlu0 %2649
        %v2651 = vsel %vm788, %v2631, 0.0
        %2652 = vadd.xlane.f32.xlu0 %v2651
        %v2653 = vpop.xlane.xlu0 %2652
        %v2654 = vsel %vm788, %v2633, 0.0
        %2655 = vadd.xlane.f32.xlu0 %v2654
        %v2656 = vpop.xlane.xlu0 %2655
        %v2657 = vsel %vm788, %v2635, 0.0
        %2658 = vadd.xlane.f32.xlu0 %v2657
        %v2659 = vpop.xlane.xlu0 %2658
        %v2660 = vrcp.pop %v2638
        %v2661 = vrcp.pop %v2641
        %v2662 = vrcp.pop %v2644
        %v2663 = vrcp.pop %v2647
        %v2664 = vrcp.pop %v2650
        %v2665 = vrcp.pop %v2653
        %v2666 = vrcp.pop %v2656
        %v2667 = vrcp.pop %v2659
        %v2668 = vmul.f32 %v2638, %v2660
        %v2669 = vmul.f32 %v2641, %v2661
        %v2670 = vmul.f32 %v2644, %v2662
        %v2671 = vmul.f32 %v2647, %v2663
        %v2672 = vmul.f32 %v2650, %v2664
        %v2673 = vmul.f32 %v2653, %v2665
        %v2674 = vmul.f32 %v2656, %v2666
        %v2675 = vmul.f32 %v2659, %v2667
        %v2676 = vsub.f32 2.0, %v2668
        %v2677 = vsub.f32 2.0, %v2669
        %v2678 = vsub.f32 2.0, %v2670
        %v2679 = vsub.f32 2.0, %v2671
        %v2680 = vsub.f32 2.0, %v2672
        %v2681 = vsub.f32 2.0, %v2673
        %v2682 = vsub.f32 2.0, %v2674
        %v2683 = vsub.f32 2.0, %v2675
        %v2684 = vmul.f32 %v2660, %v2676
        %v2685 = vmul.f32 %v2661, %v2677
        %v2686 = vmul.f32 %v2662, %v2678
        %v2687 = vmul.f32 %v2663, %v2679
        %v2688 = vmul.f32 %v2664, %v2680
        %v2689 = vmul.f32 %v2665, %v2681
        %v2690 = vmul.f32 %v2666, %v2682
        %v2691 = vmul.f32 %v2667, %v2683
        %v2692 = vmul.f32 %v2621, %v2684
        %v2693 = vmul.f32 %v2623, %v2685
        %v2694 = vmul.f32 %v2625, %v2686
        %v2695 = vmul.f32 %v2627, %v2687
        %v2696 = vmul.f32 %v2629, %v2688
        %v2697 = vmul.f32 %v2631, %v2689
        %v2698 = vmul.f32 %v2633, %v2690
        %v2699 = vmul.f32 %v2635, %v2691
        %2702 = vrot.lane.b32.xlu0 %v2189, 112
        %v2703 = vpop.permute.xlu0 %2702
        %2704 = vrot.lane.b32.xlu0 %v2190, 112
        %v2705 = vpop.permute.xlu0 %2704
        %v2709 = vsel %vm788, %v2692, 0
        %v2712 = vsel %vm788, %v2693, 0
        %2714 = vmatprep.subr.mxu0 0.0
        %2715 = vmatpush1.msra.mxu0 %v2703
        %2716 = vmatprep.subr.mxu0 0.0
        %2717 = vmatpush1.msra.mxu0 %v2705
        %2718 = vmatprep.subr.mxu0 0.0
        %2719 = vmatpush1.msra.mxu0 0.0
        %2720 = vmatprep.subr.mxu0 0.0
        %2721 = vmatpush1.msra.mxu0 0.0
        %2722 = vmatprep.subr.mxu0 0.0
        %2723 = vmatpush1.msra.mxu0 0.0
        %2724 = vmatprep.subr.mxu0 0.0
        %2725 = vmatpush1.msra.mxu0 0.0
        %2726 = vmatprep.subr.mxu0 0.0
        %2727 = vmatpush1.msra.mxu0 0.0
        %2728 = vmatprep.subr.mxu0 0.0
        %2729 = vmatpush1.msra.mxu0 0.0
        %2730 = vmatprep.subr.mxu0 0.0
        %2731 = vmatpush1.msra.mxu0 0.0
        %2732 = vmatprep.subr.mxu0 0.0
        %2733 = vmatpush1.msra.mxu0 0.0
        %2734 = vmatprep.subr.mxu0 0.0
        %2735 = vmatpush1.msra.mxu0 0.0
        %2736 = vmatprep.subr.mxu0 0.0
        %2737 = vmatpush1.msra.mxu0 0.0
        %2738 = vmatprep.subr.mxu0 0.0
        %2739 = vmatpush1.msra.mxu0 0.0
        %2740 = vmatprep.subr.mxu0 0.0
        %2741 = vmatpush1.msra.mxu0 0.0
        %2742 = vmatprep.subr.mxu0 0.0
        %2743 = vmatpush1.msra.mxu0 0.0
        %2744 = vmatprep.subr.mxu0 0.0
        %2745 = vmatpush1.msra.mxu0 0.0
        %2746 = vmatprep.subr.mxu0 0.0
        %2747 = vmatpush1.msra.mxu0 0.0
        %2748 = vmatprep.subr.mxu0 0.0
        %2749 = vmatpush1.msra.mxu0 0.0
        %2750 = vmatprep.subr.mxu0 0.0
        %2751 = vmatpush1.msra.mxu0 0.0
        %2752 = vmatprep.subr.mxu0 0.0
        %2753 = vmatpush1.msra.mxu0 0.0
        %2754 = vmatprep.subr.mxu0 0.0
        %2755 = vmatpush1.msra.mxu0 0.0
        %2756 = vmatprep.subr.mxu0 0.0
        %2757 = vmatpush1.msra.mxu0 0.0
        %2758 = vmatprep.subr.mxu0 0.0
        %2759 = vmatpush1.msra.mxu0 0.0
        %2760 = vmatprep.subr.mxu0 0.0
        %2761 = vmatpush1.msra.mxu0 0.0
        %2762 = vmatprep.subr.mxu0 0.0
        %2763 = vmatpush1.msra.mxu0 0.0
        %2764 = vmatprep.subr.mxu0 0.0
        %2765 = vmatpush1.msra.mxu0 0.0
        %2766 = vmatprep.subr.mxu0 0.0
        %2767 = vmatpush1.msra.mxu0 0.0
        %2768 = vmatprep.subr.mxu0 0.0
        %2769 = vmatpush1.msra.mxu0 0.0
        %2770 = vmatprep.subr.mxu0 0.0
        %2771 = vmatpush1.msra.mxu0 0.0
        %2772 = vmatprep.subr.mxu0 0.0
        %2773 = vmatpush1.msra.mxu0 0.0
        %2774 = vmatprep.subr.mxu0 0.0
        %2775 = vmatpush1.msra.mxu0 0.0
        %2776 = vmatprep.subr.mxu0 0.0
        %2777 = vmatpush1.msra.mxu0 0.0
        %2778 = vmatprep.mubr.f32.mxu0 0.0
        %2779 = vmatmul.mubr.f32.gmra.mrb[0].mxu0 %v2709
        %v2780 = vpop.f32.mrb[0].mxu0
        %v2781 = vadd.f32 0.0, %v2780
        %v2782 = vpop.f32.mrb[0].mxu0
        %2783 = vmatprep.mubr.f32.mxu0 0.0
        %2784 = vmatmul.mubr.f32.gmra.mrb[0].mxu0 %v2712
        %v2785 = vpop.f32.mrb[0].mxu0
        %v2786 = vadd.f32 0.0, %v2785
        %v2787 = vpop.f32.mrb[0].mxu0
        %2788 = vdwg.mxu0
        %2791 = vrot.lane.b32.xlu0 %v2191, 112
        %v2792 = vpop.permute.xlu0 %2791
        %2793 = vrot.lane.b32.xlu0 %v2192, 112
        %v2794 = vpop.permute.xlu0 %2793
        %v2798 = vsel %vm788, %v2694, 0
        %v2801 = vsel %vm788, %v2695, 0
        %2803 = vmatprep.subr.mxu0 0.0
        %2804 = vmatpush1.msra.mxu0 %v2792
        %2805 = vmatprep.subr.mxu0 0.0
        %2806 = vmatpush1.msra.mxu0 %v2794
        %2807 = vmatprep.subr.mxu0 0.0
        %2808 = vmatpush1.msra.mxu0 0.0
        %2809 = vmatprep.subr.mxu0 0.0
        %2810 = vmatpush1.msra.mxu0 0.0
        %2811 = vmatprep.subr.mxu0 0.0
        %2812 = vmatpush1.msra.mxu0 0.0
        %2813 = vmatprep.subr.mxu0 0.0
        %2814 = vmatpush1.msra.mxu0 0.0
        %2815 = vmatprep.subr.mxu0 0.0
        %2816 = vmatpush1.msra.mxu0 0.0
        %2817 = vmatprep.subr.mxu0 0.0
        %2818 = vmatpush1.msra.mxu0 0.0
        %2819 = vmatprep.subr.mxu0 0.0
        %2820 = vmatpush1.msra.mxu0 0.0
        %2821 = vmatprep.subr.mxu0 0.0
        %2822 = vmatpush1.msra.mxu0 0.0
        %2823 = vmatprep.subr.mxu0 0.0
        %2824 = vmatpush1.msra.mxu0 0.0
        %2825 = vmatprep.subr.mxu0 0.0
        %2826 = vmatpush1.msra.mxu0 0.0
        %2827 = vmatprep.subr.mxu0 0.0
        %2828 = vmatpush1.msra.mxu0 0.0
        %2829 = vmatprep.subr.mxu0 0.0
        %2830 = vmatpush1.msra.mxu0 0.0
        %2831 = vmatprep.subr.mxu0 0.0
        %2832 = vmatpush1.msra.mxu0 0.0
        %2833 = vmatprep.subr.mxu0 0.0
        %2834 = vmatpush1.msra.mxu0 0.0
        %2835 = vmatprep.subr.mxu0 0.0
        %2836 = vmatpush1.msra.mxu0 0.0
        %2837 = vmatprep.subr.mxu0 0.0
        %2838 = vmatpush1.msra.mxu0 0.0
        %2839 = vmatprep.subr.mxu0 0.0
        %2840 = vmatpush1.msra.mxu0 0.0
        %2841 = vmatprep.subr.mxu0 0.0
        %2842 = vmatpush1.msra.mxu0 0.0
        %2843 = vmatprep.subr.mxu0 0.0
        %2844 = vmatpush1.msra.mxu0 0.0
        %2845 = vmatprep.subr.mxu0 0.0
        %2846 = vmatpush1.msra.mxu0 0.0
        %2847 = vmatprep.subr.mxu0 0.0
        %2848 = vmatpush1.msra.mxu0 0.0
        %2849 = vmatprep.subr.mxu0 0.0
        %2850 = vmatpush1.msra.mxu0 0.0
        %2851 = vmatprep.subr.mxu0 0.0
        %2852 = vmatpush1.msra.mxu0 0.0
        %2853 = vmatprep.subr.mxu0 0.0
        %2854 = vmatpush1.msra.mxu0 0.0
        %2855 = vmatprep.subr.mxu0 0.0
        %2856 = vmatpush1.msra.mxu0 0.0
        %2857 = vmatprep.subr.mxu0 0.0
        %2858 = vmatpush1.msra.mxu0 0.0
        %2859 = vmatprep.subr.mxu0 0.0
        %2860 = vmatpush1.msra.mxu0 0.0
        %2861 = vmatprep.subr.mxu0 0.0
        %2862 = vmatpush1.msra.mxu0 0.0
        %2863 = vmatprep.subr.mxu0 0.0
        %2864 = vmatpush1.msra.mxu0 0.0
        %2865 = vmatprep.subr.mxu0 0.0
        %2866 = vmatpush1.msra.mxu0 0.0
        %2867 = vmatprep.mubr.f32.mxu0 0.0
        %2868 = vmatmul.mubr.f32.gmra.mrb[0].mxu0 %v2798
        %v2869 = vpop.f32.mrb[0].mxu0
        %v2870 = vadd.f32 0.0, %v2869
        %v2871 = vpop.f32.mrb[0].mxu0
        %2872 = vmatprep.mubr.f32.mxu0 0.0
        %2873 = vmatmul.mubr.f32.gmra.mrb[0].mxu0 %v2801
        %v2874 = vpop.f32.mrb[0].mxu0
        %v2875 = vadd.f32 0.0, %v2874
        %v2876 = vpop.f32.mrb[0].mxu0
        %2877 = vdwg.mxu0
        %2880 = vrot.lane.b32.xlu0 %v2193, 112
        %v2881 = vpop.permute.xlu0 %2880
        %2882 = vrot.lane.b32.xlu0 %v2194, 112
        %v2883 = vpop.permute.xlu0 %2882
        %v2887 = vsel %vm788, %v2696, 0
        %v2890 = vsel %vm788, %v2697, 0
        %2892 = vmatprep.subr.mxu0 0.0
        %2893 = vmatpush1.msra.mxu0 %v2881
        %2894 = vmatprep.subr.mxu0 0.0
        %2895 = vmatpush1.msra.mxu0 %v2883
        %2896 = vmatprep.subr.mxu0 0.0
        %2897 = vmatpush1.msra.mxu0 0.0
        %2898 = vmatprep.subr.mxu0 0.0
        %2899 = vmatpush1.msra.mxu0 0.0
        %2900 = vmatprep.subr.mxu0 0.0
        %2901 = vmatpush1.msra.mxu0 0.0
        %2902 = vmatprep.subr.mxu0 0.0
        %2903 = vmatpush1.msra.mxu0 0.0
        %2904 = vmatprep.subr.mxu0 0.0
        %2905 = vmatpush1.msra.mxu0 0.0
        %2906 = vmatprep.subr.mxu0 0.0
        %2907 = vmatpush1.msra.mxu0 0.0
        %2908 = vmatprep.subr.mxu0 0.0
        %2909 = vmatpush1.msra.mxu0 0.0
        %2910 = vmatprep.subr.mxu0 0.0
        %2911 = vmatpush1.msra.mxu0 0.0
        %2912 = vmatprep.subr.mxu0 0.0
        %2913 = vmatpush1.msra.mxu0 0.0
        %2914 = vmatprep.subr.mxu0 0.0
        %2915 = vmatpush1.msra.mxu0 0.0
        %2916 = vmatprep.subr.mxu0 0.0
        %2917 = vmatpush1.msra.mxu0 0.0
        %2918 = vmatprep.subr.mxu0 0.0
        %2919 = vmatpush1.msra.mxu0 0.0
        %2920 = vmatprep.subr.mxu0 0.0
        %2921 = vmatpush1.msra.mxu0 0.0
        %2922 = vmatprep.subr.mxu0 0.0
        %2923 = vmatpush1.msra.mxu0 0.0
        %2924 = vmatprep.subr.mxu0 0.0
        %2925 = vmatpush1.msra.mxu0 0.0
        %2926 = vmatprep.subr.mxu0 0.0
        %2927 = vmatpush1.msra.mxu0 0.0
        %2928 = vmatprep.subr.mxu0 0.0
        %2929 = vmatpush1.msra.mxu0 0.0
        %2930 = vmatprep.subr.mxu0 0.0
        %2931 = vmatpush1.msra.mxu0 0.0
        %2932 = vmatprep.subr.mxu0 0.0
        %2933 = vmatpush1.msra.mxu0 0.0
        %2934 = vmatprep.subr.mxu0 0.0
        %2935 = vmatpush1.msra.mxu0 0.0
        %2936 = vmatprep.subr.mxu0 0.0
        %2937 = vmatpush1.msra.mxu0 0.0
        %2938 = vmatprep.subr.mxu0 0.0
        %2939 = vmatpush1.msra.mxu0 0.0
        %2940 = vmatprep.subr.mxu0 0.0
        %2941 = vmatpush1.msra.mxu0 0.0
        %2942 = vmatprep.subr.mxu0 0.0
        %2943 = vmatpush1.msra.mxu0 0.0
        %2944 = vmatprep.subr.mxu0 0.0
        %2945 = vmatpush1.msra.mxu0 0.0
        %2946 = vmatprep.subr.mxu0 0.0
        %2947 = vmatpush1.msra.mxu0 0.0
        %2948 = vmatprep.subr.mxu0 0.0
        %2949 = vmatpush1.msra.mxu0 0.0
        %2950 = vmatprep.subr.mxu0 0.0
        %2951 = vmatpush1.msra.mxu0 0.0
        %2952 = vmatprep.subr.mxu0 0.0
        %2953 = vmatpush1.msra.mxu0 0.0
        %2954 = vmatprep.subr.mxu0 0.0
        %2955 = vmatpush1.msra.mxu0 0.0
        %2956 = vmatprep.mubr.f32.mxu0 0.0
        %2957 = vmatmul.mubr.f32.gmra.mrb[0].mxu0 %v2887
        %v2958 = vpop.f32.mrb[0].mxu0
        %v2959 = vadd.f32 0.0, %v2958
        %v2960 = vpop.f32.mrb[0].mxu0
        %2961 = vmatprep.mubr.f32.mxu0 0.0
        %2962 = vmatmul.mubr.f32.gmra.mrb[0].mxu0 %v2890
        %v2963 = vpop.f32.mrb[0].mxu0
        %v2964 = vadd.f32 0.0, %v2963
        %v2965 = vpop.f32.mrb[0].mxu0
        %2966 = vdwg.mxu0
        %2969 = vrot.lane.b32.xlu0 %v2195, 112
        %v2970 = vpop.permute.xlu0 %2969
        %2971 = vrot.lane.b32.xlu0 %v2196, 112
        %v2972 = vpop.permute.xlu0 %2971
        %v2976 = vsel %vm788, %v2698, 0
        %v2979 = vsel %vm788, %v2699, 0
        %2981 = vmatprep.subr.mxu0 0.0
        %2982 = vmatpush1.msra.mxu0 %v2970
        %2983 = vmatprep.subr.mxu0 0.0
        %2984 = vmatpush1.msra.mxu0 %v2972
        %2985 = vmatprep.subr.mxu0 0.0
        %2986 = vmatpush1.msra.mxu0 0.0
        %2987 = vmatprep.subr.mxu0 0.0
        %2988 = vmatpush1.msra.mxu0 0.0
        %2989 = vmatprep.subr.mxu0 0.0
        %2990 = vmatpush1.msra.mxu0 0.0
        %2991 = vmatprep.subr.mxu0 0.0
        %2992 = vmatpush1.msra.mxu0 0.0
        %2993 = vmatprep.subr.mxu0 0.0
        %2994 = vmatpush1.msra.mxu0 0.0
        %2995 = vmatprep.subr.mxu0 0.0
        %2996 = vmatpush1.msra.mxu0 0.0
        %2997 = vmatprep.subr.mxu0 0.0
        %2998 = vmatpush1.msra.mxu0 0.0
        %2999 = vmatprep.subr.mxu0 0.0
        %3000 = vmatpush1.msra.mxu0 0.0
        %3001 = vmatprep.subr.mxu0 0.0
        %3002 = vmatpush1.msra.mxu0 0.0
        %3003 = vmatprep.subr.mxu0 0.0
        %3004 = vmatpush1.msra.mxu0 0.0
        %3005 = vmatprep.subr.mxu0 0.0
        %3006 = vmatpush1.msra.mxu0 0.0
        %3007 = vmatprep.subr.mxu0 0.0
        %3008 = vmatpush1.msra.mxu0 0.0
        %3009 = vmatprep.subr.mxu0 0.0
        %3010 = vmatpush1.msra.mxu0 0.0
        %3011 = vmatprep.subr.mxu0 0.0
        %3012 = vmatpush1.msra.mxu0 0.0
        %3013 = vmatprep.subr.mxu0 0.0
        %3014 = vmatpush1.msra.mxu0 0.0
        %3015 = vmatprep.subr.mxu0 0.0
        %3016 = vmatpush1.msra.mxu0 0.0
        %3017 = vmatprep.subr.mxu0 0.0
        %3018 = vmatpush1.msra.mxu0 0.0
        %3019 = vmatprep.subr.mxu0 0.0
        %3020 = vmatpush1.msra.mxu0 0.0
        %3021 = vmatprep.subr.mxu0 0.0
        %3022 = vmatpush1.msra.mxu0 0.0
        %3023 = vmatprep.subr.mxu0 0.0
        %3024 = vmatpush1.msra.mxu0 0.0
        %3025 = vmatprep.subr.mxu0 0.0
        %3026 = vmatpush1.msra.mxu0 0.0
        %3027 = vmatprep.subr.mxu0 0.0
        %3028 = vmatpush1.msra.mxu0 0.0
        %3029 = vmatprep.subr.mxu0 0.0
        %3030 = vmatpush1.msra.mxu0 0.0
        %3031 = vmatprep.subr.mxu0 0.0
        %3032 = vmatpush1.msra.mxu0 0.0
        %3033 = vmatprep.subr.mxu0 0.0
        %3034 = vmatpush1.msra.mxu0 0.0
        %3035 = vmatprep.subr.mxu0 0.0
        %3036 = vmatpush1.msra.mxu0 0.0
        %3037 = vmatprep.subr.mxu0 0.0
        %3038 = vmatpush1.msra.mxu0 0.0
        %3039 = vmatprep.subr.mxu0 0.0
        %3040 = vmatpush1.msra.mxu0 0.0
        %3041 = vmatprep.subr.mxu0 0.0
        %3042 = vmatpush1.msra.mxu0 0.0
        %3043 = vmatprep.subr.mxu0 0.0
        %3044 = vmatpush1.msra.mxu0 0.0
        %3045 = vmatprep.mubr.f32.mxu0 0.0
        %3046 = vmatmul.mubr.f32.gmra.mrb[0].mxu0 %v2976
        %v3047 = vpop.f32.mrb[0].mxu0
        %v3048 = vadd.f32 0.0, %v3047
        %v3049 = vpop.f32.mrb[0].mxu0
        %3050 = vmatprep.mubr.f32.mxu0 0.0
        %3051 = vmatmul.mubr.f32.gmra.mrb[0].mxu0 %v2979
        %v3052 = vpop.f32.mrb[0].mxu0
        %v3053 = vadd.f32 0.0, %v3052
        %v3054 = vpop.f32.mrb[0].mxu0
        %3055 = vdwg.mxu0
        %3064 = vrot.lane.b32.xlu0 %v2781, 16
        %v3065 = vpop.permute.xlu0 %3064
        %3066 = vrot.lane.b32.xlu0 %v2786, 16
        %v3067 = vpop.permute.xlu0 %3066
        %3068 = vrot.lane.b32.xlu0 %v2870, 16
        %v3069 = vpop.permute.xlu0 %3068
        %3070 = vrot.lane.b32.xlu0 %v2875, 16
        %v3071 = vpop.permute.xlu0 %3070
        %3072 = vrot.lane.b32.xlu0 %v2959, 16
        %v3073 = vpop.permute.xlu0 %3072
        %3074 = vrot.lane.b32.xlu0 %v2964, 16
        %v3075 = vpop.permute.xlu0 %3074
        %3076 = vrot.lane.b32.xlu0 %v3048, 16
        %v3077 = vpop.permute.xlu0 %3076
        %3078 = vrot.lane.b32.xlu0 %v3053, 16
        %v3079 = vpop.permute.xlu0 %3078
        %vm3088 = vcmask 195712
        %3089 = vst.msk [vmem:[#allocation2] sm:$0xff] %vm3088, %v3065
        %3090 = vst.msk [vmem:[#allocation2 + $0x8] sm:$0xff] %vm3088, %v3067
        %3091 = vst.msk [vmem:[#allocation2 + $0x10] sm:$0xff] %vm3088, %v3069
        %3092 = vst.msk [vmem:[#allocation2 + $0x18] sm:$0xff] %vm3088, %v3071
        %3093 = vst.msk [vmem:[#allocation2 + $0x20] sm:$0xff] %vm3088, %v3073
        %3094 = vst.msk [vmem:[#allocation2 + $0x28] sm:$0xff] %vm3088, %v3075
        %3095 = vst.msk [vmem:[#allocation2 + $0x30] sm:$0xff] %vm3088, %v3077
        %3096 = vst.msk [vmem:[#allocation2 + $0x38] sm:$0xff] %vm3088, %v3079
        %v3097 = vld [vmem:[%s321] sm:$0xff]
        %v3098 = vld [vmem:[%s321 + $0x8] sm:$0xff]
        %v3099 = vld [vmem:[%s321 + $0x10] sm:$0xff]
        %v3100 = vld [vmem:[%s321 + $0x18] sm:$0xff]
        %v3101 = vld [vmem:[%s321 + $0x20] sm:$0xff]
        %v3102 = vld [vmem:[%s321 + $0x28] sm:$0xff]
        %v3103 = vld [vmem:[%s321 + $0x30] sm:$0xff]
        %v3104 = vld [vmem:[%s321 + $0x38] sm:$0xff]
        %v3105 = vmul.f32 %v3097, 0.35355338
        %v3106 = vmul.f32 %v3098, 0.35355338
        %v3107 = vmul.f32 %v3099, 0.35355338
        %v3108 = vmul.f32 %v3100, 0.35355338
        %v3109 = vmul.f32 %v3101, 0.35355338
        %v3110 = vmul.f32 %v3102, 0.35355338
        %v3111 = vmul.f32 %v3103, 0.35355338
        %v3112 = vmul.f32 %v3104, 0.35355338
        %v3113 = vld [vmem:[%s330] sm:$0xff]
        %v3114 = vld [vmem:[%s330 + $0x8] sm:$0xff]
        %v3115 = vld [vmem:[%s330 + $0x10] sm:$0xff]
        %v3116 = vld [vmem:[%s330 + $0x18] sm:$0xff]
        %v3117 = vld [vmem:[%s330 + $0x20] sm:$0xff]
        %v3118 = vld [vmem:[%s330 + $0x28] sm:$0xff]
        %v3119 = vld [vmem:[%s330 + $0x30] sm:$0xff]
        %v3120 = vld [vmem:[%s330 + $0x38] sm:$0xff]
        %v3121 = vld [vmem:[%s339] sm:$0xff]
        %v3122 = vld [vmem:[%s339 + $0x8] sm:$0xff]
        %v3123 = vld [vmem:[%s339 + $0x10] sm:$0xff]
        %v3124 = vld [vmem:[%s339 + $0x18] sm:$0xff]
        %v3125 = vld [vmem:[%s339 + $0x20] sm:$0xff]
        %v3126 = vld [vmem:[%s339 + $0x28] sm:$0xff]
        %v3127 = vld [vmem:[%s339 + $0x30] sm:$0xff]
        %v3128 = vld [vmem:[%s339 + $0x38] sm:$0xff]
        %s3129 = scalar_lea.vmem [#allocation9], 48
        %v3130 = vld [vmem:[%s3129] sm:$0xff]
        %v3131 = vld [vmem:[%s3129 + $0x8] sm:$0xff]
        %3134 = vrot.lane.b32.xlu0 %v3105, 104
        %v3135 = vpop.permute.xlu0 %3134
        %3136 = vrot.lane.b32.xlu0 %v3106, 104
        %v3137 = vpop.permute.xlu0 %3136
        %3140 = vrot.lane.b32.xlu0 %v3113, 104
        %v3141 = vpop.permute.xlu0 %3140
        %3142 = vrot.lane.b32.xlu0 %v3114, 104
        %v3143 = vpop.permute.xlu0 %3142
        %v3144 = vsel %vm431, %v3135, 0
        %v3146 = vsel %vm431, %v3137, 0
        %v3148 = vsel %vm431, %v3141, 0
        %v3150 = vsel %vm431, %v3143, 0
        %3152 = vmatprep.subr.mxu0 0.0
        %3153 = vmatpush1.xpose.msra.mxu0 %v3148
        %3154 = vmatprep.subr.mxu0 0.0
        %3155 = vmatpush1.xpose.msra.mxu0 %v3150
        %3156 = vmatprep.subr.mxu0 0.0
        %3157 = vmatpush1.xpose.msra.mxu0 0.0
        %3158 = vmatprep.subr.mxu0 0.0
        %3159 = vmatpush1.xpose.msra.mxu0 0.0
        %3160 = vmatprep.subr.mxu0 0.0
        %3161 = vmatpush1.xpose.msra.mxu0 0.0
        %3162 = vmatprep.subr.mxu0 0.0
        %3163 = vmatpush1.xpose.msra.mxu0 0.0
        %3164 = vmatprep.subr.mxu0 0.0
        %3165 = vmatpush1.xpose.msra.mxu0 0.0
        %3166 = vmatprep.subr.mxu0 0.0
        %3167 = vmatpush1.xpose.msra.mxu0 0.0
        %3168 = vmatprep.subr.mxu0 0.0
        %3169 = vmatpush1.xpose.msra.mxu0 0.0
        %3170 = vmatprep.subr.mxu0 0.0
        %3171 = vmatpush1.xpose.msra.mxu0 0.0
        %3172 = vmatprep.subr.mxu0 0.0
        %3173 = vmatpush1.xpose.msra.mxu0 0.0
        %3174 = vmatprep.subr.mxu0 0.0
        %3175 = vmatpush1.xpose.msra.mxu0 0.0
        %3176 = vmatprep.subr.mxu0 0.0
        %3177 = vmatpush1.xpose.msra.mxu0 0.0
        %3178 = vmatprep.subr.mxu0 0.0
        %3179 = vmatpush1.xpose.msra.mxu0 0.0
        %3180 = vmatprep.subr.mxu0 0.0
        %3181 = vmatpush1.xpose.msra.mxu0 0.0
        %3182 = vmatprep.subr.mxu0 0.0
        %3183 = vmatpush1.xpose.msra.mxu0 0.0
        %3184 = vmatprep.subr.mxu0 0.0
        %3185 = vmatpush1.xpose.msra.mxu0 0.0
        %3186 = vmatprep.subr.mxu0 0.0
        %3187 = vmatpush1.xpose.msra.mxu0 0.0
        %3188 = vmatprep.subr.mxu0 0.0
        %3189 = vmatpush1.xpose.msra.mxu0 0.0
        %3190 = vmatprep.subr.mxu0 0.0
        %3191 = vmatpush1.xpose.msra.mxu0 0.0
        %3192 = vmatprep.subr.mxu0 0.0
        %3193 = vmatpush1.xpose.msra.mxu0 0.0
        %3194 = vmatprep.subr.mxu0 0.0
        %3195 = vmatpush1.xpose.msra.mxu0 0.0
        %3196 = vmatprep.subr.mxu0 0.0
        %3197 = vmatpush1.xpose.msra.mxu0 0.0
        %3198 = vmatprep.subr.mxu0 0.0
        %3199 = vmatpush1.xpose.msra.mxu0 0.0
        %3200 = vmatprep.subr.mxu0 0.0
        %3201 = vmatpush1.xpose.msra.mxu0 0.0
        %3202 = vmatprep.subr.mxu0 0.0
        %3203 = vmatpush1.xpose.msra.mxu0 0.0
        %3204 = vmatprep.subr.mxu0 0.0
        %3205 = vmatpush1.xpose.msra.mxu0 0.0
        %3206 = vmatprep.subr.mxu0 0.0
        %3207 = vmatpush1.xpose.msra.mxu0 0.0
        %3208 = vmatprep.subr.mxu0 0.0
        %3209 = vmatpush1.xpose.msra.mxu0 0.0
        %3210 = vmatprep.subr.mxu0 0.0
        %3211 = vmatpush1.xpose.msra.mxu0 0.0
        %3212 = vmatprep.subr.mxu0 0.0
        %3213 = vmatpush1.xpose.msra.mxu0 0.0
        %3214 = vmatprep.subr.mxu0 0.0
        %3215 = vmatpush1.xpose.msra.mxu0 0.0
        %3216 = vmatprep.mubr.f32.mxu0 0.0
        %3217 = vmatmul.mubr.f32.gmra.mrb[0].mxu0 %v3144
        %v3218 = vpop.f32.mrb[0].mxu0
        %v3219 = vadd.f32 %v3130, %v3218
        %v3220 = vpop.f32.mrb[0].mxu0
        %3221 = vmatprep.mubr.f32.mxu0 0.0
        %3222 = vmatmul.mubr.f32.gmra.mrb[0].mxu0 %v3146
        %v3223 = vpop.f32.mrb[0].mxu0
        %v3224 = vadd.f32 %v3131, %v3223
        %v3225 = vpop.f32.mrb[0].mxu0
        %3226 = vdwg.mxu0
        %3229 = vrot.lane.b32.xlu0 %v3107, 104
        %v3230 = vpop.permute.xlu0 %3229
        %3231 = vrot.lane.b32.xlu0 %v3108, 104
        %v3232 = vpop.permute.xlu0 %3231
        %3235 = vrot.lane.b32.xlu0 %v3115, 104
        %v3236 = vpop.permute.xlu0 %3235
        %3237 = vrot.lane.b32.xlu0 %v3116, 104
        %v3238 = vpop.permute.xlu0 %3237
        %v3239 = vsel %vm431, %v3230, 0
        %v3241 = vsel %vm431, %v3232, 0
        %v3243 = vsel %vm431, %v3236, 0
        %v3245 = vsel %vm431, %v3238, 0
        %3247 = vmatprep.subr.mxu0 0.0
        %3248 = vmatpush1.xpose.msra.mxu0 %v3243
        %3249 = vmatprep.subr.mxu0 0.0
        %3250 = vmatpush1.xpose.msra.mxu0 %v3245
        %3251 = vmatprep.subr.mxu0 0.0
        %3252 = vmatpush1.xpose.msra.mxu0 0.0
        %3253 = vmatprep.subr.mxu0 0.0
        %3254 = vmatpush1.xpose.msra.mxu0 0.0
        %3255 = vmatprep.subr.mxu0 0.0
        %3256 = vmatpush1.xpose.msra.mxu0 0.0
        %3257 = vmatprep.subr.mxu0 0.0
        %3258 = vmatpush1.xpose.msra.mxu0 0.0
        %3259 = vmatprep.subr.mxu0 0.0
        %3260 = vmatpush1.xpose.msra.mxu0 0.0
        %3261 = vmatprep.subr.mxu0 0.0
        %3262 = vmatpush1.xpose.msra.mxu0 0.0
        %3263 = vmatprep.subr.mxu0 0.0
        %3264 = vmatpush1.xpose.msra.mxu0 0.0
        %3265 = vmatprep.subr.mxu0 0.0
        %3266 = vmatpush1.xpose.msra.mxu0 0.0
        %3267 = vmatprep.subr.mxu0 0.0
        %3268 = vmatpush1.xpose.msra.mxu0 0.0
        %3269 = vmatprep.subr.mxu0 0.0
        %3270 = vmatpush1.xpose.msra.mxu0 0.0
        %3271 = vmatprep.subr.mxu0 0.0
        %3272 = vmatpush1.xpose.msra.mxu0 0.0
        %3273 = vmatprep.subr.mxu0 0.0
        %3274 = vmatpush1.xpose.msra.mxu0 0.0
        %3275 = vmatprep.subr.mxu0 0.0
        %3276 = vmatpush1.xpose.msra.mxu0 0.0
        %3277 = vmatprep.subr.mxu0 0.0
        %3278 = vmatpush1.xpose.msra.mxu0 0.0
        %3279 = vmatprep.subr.mxu0 0.0
        %3280 = vmatpush1.xpose.msra.mxu0 0.0
        %3281 = vmatprep.subr.mxu0 0.0
        %3282 = vmatpush1.xpose.msra.mxu0 0.0
        %3283 = vmatprep.subr.mxu0 0.0
        %3284 = vmatpush1.xpose.msra.mxu0 0.0
        %3285 = vmatprep.subr.mxu0 0.0
        %3286 = vmatpush1.xpose.msra.mxu0 0.0
        %3287 = vmatprep.subr.mxu0 0.0
        %3288 = vmatpush1.xpose.msra.mxu0 0.0
        %3289 = vmatprep.subr.mxu0 0.0
        %3290 = vmatpush1.xpose.msra.mxu0 0.0
        %3291 = vmatprep.subr.mxu0 0.0
        %3292 = vmatpush1.xpose.msra.mxu0 0.0
        %3293 = vmatprep.subr.mxu0 0.0
        %3294 = vmatpush1.xpose.msra.mxu0 0.0
        %3295 = vmatprep.subr.mxu0 0.0
        %3296 = vmatpush1.xpose.msra.mxu0 0.0
        %3297 = vmatprep.subr.mxu0 0.0
        %3298 = vmatpush1.xpose.msra.mxu0 0.0
        %3299 = vmatprep.subr.mxu0 0.0
        %3300 = vmatpush1.xpose.msra.mxu0 0.0
        %3301 = vmatprep.subr.mxu0 0.0
        %3302 = vmatpush1.xpose.msra.mxu0 0.0
        %3303 = vmatprep.subr.mxu0 0.0
        %3304 = vmatpush1.xpose.msra.mxu0 0.0
        %3305 = vmatprep.subr.mxu0 0.0
        %3306 = vmatpush1.xpose.msra.mxu0 0.0
        %3307 = vmatprep.subr.mxu0 0.0
        %3308 = vmatpush1.xpose.msra.mxu0 0.0
        %3309 = vmatprep.subr.mxu0 0.0
        %3310 = vmatpush1.xpose.msra.mxu0 0.0
        %3311 = vmatprep.mubr.f32.mxu0 0.0
        %3312 = vmatmul.mubr.f32.gmra.mrb[0].mxu0 %v3239
        %v3313 = vpop.f32.mrb[0].mxu0
        %v3314 = vadd.f32 %v3130, %v3313
        %v3315 = vpop.f32.mrb[0].mxu0
        %3316 = vmatprep.mubr.f32.mxu0 0.0
        %3317 = vmatmul.mubr.f32.gmra.mrb[0].mxu0 %v3241
        %v3318 = vpop.f32.mrb[0].mxu0
        %v3319 = vadd.f32 %v3131, %v3318
        %v3320 = vpop.f32.mrb[0].mxu0
        %3321 = vdwg.mxu0
        %3324 = vrot.lane.b32.xlu0 %v3109, 104
        %v3325 = vpop.permute.xlu0 %3324
        %3326 = vrot.lane.b32.xlu0 %v3110, 104
        %v3327 = vpop.permute.xlu0 %3326
        %3330 = vrot.lane.b32.xlu0 %v3117, 104
        %v3331 = vpop.permute.xlu0 %3330
        %3332 = vrot.lane.b32.xlu0 %v3118, 104
        %v3333 = vpop.permute.xlu0 %3332
        %v3334 = vsel %vm431, %v3325, 0
        %v3336 = vsel %vm431, %v3327, 0
        %v3338 = vsel %vm431, %v3331, 0
        %v3340 = vsel %vm431, %v3333, 0
        %3342 = vmatprep.subr.mxu0 0.0
        %3343 = vmatpush1.xpose.msra.mxu0 %v3338
        %3344 = vmatprep.subr.mxu0 0.0
        %3345 = vmatpush1.xpose.msra.mxu0 %v3340
        %3346 = vmatprep.subr.mxu0 0.0
        %3347 = vmatpush1.xpose.msra.mxu0 0.0
        %3348 = vmatprep.subr.mxu0 0.0
        %3349 = vmatpush1.xpose.msra.mxu0 0.0
        %3350 = vmatprep.subr.mxu0 0.0
        %3351 = vmatpush1.xpose.msra.mxu0 0.0
        %3352 = vmatprep.subr.mxu0 0.0
        %3353 = vmatpush1.xpose.msra.mxu0 0.0
        %3354 = vmatprep.subr.mxu0 0.0
        %3355 = vmatpush1.xpose.msra.mxu0 0.0
        %3356 = vmatprep.subr.mxu0 0.0
        %3357 = vmatpush1.xpose.msra.mxu0 0.0
        %3358 = vmatprep.subr.mxu0 0.0
        %3359 = vmatpush1.xpose.msra.mxu0 0.0
        %3360 = vmatprep.subr.mxu0 0.0
        %3361 = vmatpush1.xpose.msra.mxu0 0.0
        %3362 = vmatprep.subr.mxu0 0.0
        %3363 = vmatpush1.xpose.msra.mxu0 0.0
        %3364 = vmatprep.subr.mxu0 0.0
        %3365 = vmatpush1.xpose.msra.mxu0 0.0
        %3366 = vmatprep.subr.mxu0 0.0
        %3367 = vmatpush1.xpose.msra.mxu0 0.0
        %3368 = vmatprep.subr.mxu0 0.0
        %3369 = vmatpush1.xpose.msra.mxu0 0.0
        %3370 = vmatprep.subr.mxu0 0.0
        %3371 = vmatpush1.xpose.msra.mxu0 0.0
        %3372 = vmatprep.subr.mxu0 0.0
        %3373 = vmatpush1.xpose.msra.mxu0 0.0
        %3374 = vmatprep.subr.mxu0 0.0
        %3375 = vmatpush1.xpose.msra.mxu0 0.0
        %3376 = vmatprep.subr.mxu0 0.0
        %3377 = vmatpush1.xpose.msra.mxu0 0.0
        %3378 = vmatprep.subr.mxu0 0.0
        %3379 = vmatpush1.xpose.msra.mxu0 0.0
        %3380 = vmatprep.subr.mxu0 0.0
        %3381 = vmatpush1.xpose.msra.mxu0 0.0
        %3382 = vmatprep.subr.mxu0 0.0
        %3383 = vmatpush1.xpose.msra.mxu0 0.0
        %3384 = vmatprep.subr.mxu0 0.0
        %3385 = vmatpush1.xpose.msra.mxu0 0.0
        %3386 = vmatprep.subr.mxu0 0.0
        %3387 = vmatpush1.xpose.msra.mxu0 0.0
        %3388 = vmatprep.subr.mxu0 0.0
        %3389 = vmatpush1.xpose.msra.mxu0 0.0
        %3390 = vmatprep.subr.mxu0 0.0
        %3391 = vmatpush1.xpose.msra.mxu0 0.0
        %3392 = vmatprep.subr.mxu0 0.0
        %3393 = vmatpush1.xpose.msra.mxu0 0.0
        %3394 = vmatprep.subr.mxu0 0.0
        %3395 = vmatpush1.xpose.msra.mxu0 0.0
        %3396 = vmatprep.subr.mxu0 0.0
        %3397 = vmatpush1.xpose.msra.mxu0 0.0
        %3398 = vmatprep.subr.mxu0 0.0
        %3399 = vmatpush1.xpose.msra.mxu0 0.0
        %3400 = vmatprep.subr.mxu0 0.0
        %3401 = vmatpush1.xpose.msra.mxu0 0.0
        %3402 = vmatprep.subr.mxu0 0.0
        %3403 = vmatpush1.xpose.msra.mxu0 0.0
        %3404 = vmatprep.subr.mxu0 0.0
        %3405 = vmatpush1.xpose.msra.mxu0 0.0
        %3406 = vmatprep.mubr.f32.mxu0 0.0
        %3407 = vmatmul.mubr.f32.gmra.mrb[0].mxu0 %v3334
        %v3408 = vpop.f32.mrb[0].mxu0
        %v3409 = vadd.f32 %v3130, %v3408
        %v3410 = vpop.f32.mrb[0].mxu0
        %3411 = vmatprep.mubr.f32.mxu0 0.0
        %3412 = vmatmul.mubr.f32.gmra.mrb[0].mxu0 %v3336
        %v3413 = vpop.f32.mrb[0].mxu0
        %v3414 = vadd.f32 %v3131, %v3413
        %v3415 = vpop.f32.mrb[0].mxu0
        %3416 = vdwg.mxu0
        %3419 = vrot.lane.b32.xlu0 %v3111, 104
        %v3420 = vpop.permute.xlu0 %3419
        %3421 = vrot.lane.b32.xlu0 %v3112, 104
        %v3422 = vpop.permute.xlu0 %3421
        %3425 = vrot.lane.b32.xlu0 %v3119, 104
        %v3426 = vpop.permute.xlu0 %3425
        %3427 = vrot.lane.b32.xlu0 %v3120, 104
        %v3428 = vpop.permute.xlu0 %3427
        %v3429 = vsel %vm431, %v3420, 0
        %v3431 = vsel %vm431, %v3422, 0
        %v3433 = vsel %vm431, %v3426, 0
        %v3435 = vsel %vm431, %v3428, 0
        %3437 = vmatprep.subr.mxu0 0.0
        %3438 = vmatpush1.xpose.msra.mxu0 %v3433
        %3439 = vmatprep.subr.mxu0 0.0
        %3440 = vmatpush1.xpose.msra.mxu0 %v3435
        %3441 = vmatprep.subr.mxu0 0.0
        %3442 = vmatpush1.xpose.msra.mxu0 0.0
        %3443 = vmatprep.subr.mxu0 0.0
        %3444 = vmatpush1.xpose.msra.mxu0 0.0
        %3445 = vmatprep.subr.mxu0 0.0
        %3446 = vmatpush1.xpose.msra.mxu0 0.0
        %3447 = vmatprep.subr.mxu0 0.0
        %3448 = vmatpush1.xpose.msra.mxu0 0.0
        %3449 = vmatprep.subr.mxu0 0.0
        %3450 = vmatpush1.xpose.msra.mxu0 0.0
        %3451 = vmatprep.subr.mxu0 0.0
        %3452 = vmatpush1.xpose.msra.mxu0 0.0
        %3453 = vmatprep.subr.mxu0 0.0
        %3454 = vmatpush1.xpose.msra.mxu0 0.0
        %3455 = vmatprep.subr.mxu0 0.0
        %3456 = vmatpush1.xpose.msra.mxu0 0.0
        %3457 = vmatprep.subr.mxu0 0.0
        %3458 = vmatpush1.xpose.msra.mxu0 0.0
        %3459 = vmatprep.subr.mxu0 0.0
        %3460 = vmatpush1.xpose.msra.mxu0 0.0
        %3461 = vmatprep.subr.mxu0 0.0
        %3462 = vmatpush1.xpose.msra.mxu0 0.0
        %3463 = vmatprep.subr.mxu0 0.0
        %3464 = vmatpush1.xpose.msra.mxu0 0.0
        %3465 = vmatprep.subr.mxu0 0.0
        %3466 = vmatpush1.xpose.msra.mxu0 0.0
        %3467 = vmatprep.subr.mxu0 0.0
        %3468 = vmatpush1.xpose.msra.mxu0 0.0
        %3469 = vmatprep.subr.mxu0 0.0
        %3470 = vmatpush1.xpose.msra.mxu0 0.0
        %3471 = vmatprep.subr.mxu0 0.0
        %3472 = vmatpush1.xpose.msra.mxu0 0.0
        %3473 = vmatprep.subr.mxu0 0.0
        %3474 = vmatpush1.xpose.msra.mxu0 0.0
        %3475 = vmatprep.subr.mxu0 0.0
        %3476 = vmatpush1.xpose.msra.mxu0 0.0
        %3477 = vmatprep.subr.mxu0 0.0
        %3478 = vmatpush1.xpose.msra.mxu0 0.0
        %3479 = vmatprep.subr.mxu0 0.0
        %3480 = vmatpush1.xpose.msra.mxu0 0.0
        %3481 = vmatprep.subr.mxu0 0.0
        %3482 = vmatpush1.xpose.msra.mxu0 0.0
        %3483 = vmatprep.subr.mxu0 0.0
        %3484 = vmatpush1.xpose.msra.mxu0 0.0
        %3485 = vmatprep.subr.mxu0 0.0
        %3486 = vmatpush1.xpose.msra.mxu0 0.0
        %3487 = vmatprep.subr.mxu0 0.0
        %3488 = vmatpush1.xpose.msra.mxu0 0.0
        %3489 = vmatprep.subr.mxu0 0.0
        %3490 = vmatpush1.xpose.msra.mxu0 0.0
        %3491 = vmatprep.subr.mxu0 0.0
        %3492 = vmatpush1.xpose.msra.mxu0 0.0
        %3493 = vmatprep.subr.mxu0 0.0
        %3494 = vmatpush1.xpose.msra.mxu0 0.0
        %3495 = vmatprep.subr.mxu0 0.0
        %3496 = vmatpush1.xpose.msra.mxu0 0.0
        %3497 = vmatprep.subr.mxu0 0.0
        %3498 = vmatpush1.xpose.msra.mxu0 0.0
        %3499 = vmatprep.subr.mxu0 0.0
        %3500 = vmatpush1.xpose.msra.mxu0 0.0
        %3501 = vmatprep.mubr.f32.mxu0 0.0
        %3502 = vmatmul.mubr.f32.gmra.mrb[0].mxu0 %v3429
        %v3503 = vpop.f32.mrb[0].mxu0
        %v3504 = vadd.f32 %v3130, %v3503
        %v3505 = vpop.f32.mrb[0].mxu0
        %3506 = vmatprep.mubr.f32.mxu0 0.0
        %3507 = vmatmul.mubr.f32.gmra.mrb[0].mxu0 %v3431
        %v3508 = vpop.f32.mrb[0].mxu0
        %v3509 = vadd.f32 %v3131, %v3508
        %v3510 = vpop.f32.mrb[0].mxu0
        %3511 = vdwg.mxu0
        %v3512 = vadd.f32 %v3219, %v389
        %v3513 = vadd.f32 %v3224, %v390
        %v3514 = vadd.f32 %v3314, %v391
        %v3515 = vadd.f32 %v3319, %v392
        %v3516 = vadd.f32 %v3409, %v393
        %v3517 = vadd.f32 %v3414, %v394
        %v3518 = vadd.f32 %v3504, %v395
        %v3519 = vadd.f32 %v3509, %v396
        %v3520 = vsel %vm788, %v3512, -inf
        %3521 = vmax.xlane.f32.xlu0 %v3520
        %v3522 = vpop.xlane.xlu0 %3521
        %v3523 = vsel %vm788, %v3513, -inf
        %3524 = vmax.xlane.f32.xlu0 %v3523
        %v3525 = vpop.xlane.xlu0 %3524
        %v3526 = vsel %vm788, %v3514, -inf
        %3527 = vmax.xlane.f32.xlu0 %v3526
        %v3528 = vpop.xlane.xlu0 %3527
        %v3529 = vsel %vm788, %v3515, -inf
        %3530 = vmax.xlane.f32.xlu0 %v3529
        %v3531 = vpop.xlane.xlu0 %3530
        %v3532 = vsel %vm788, %v3516, -inf
        %3533 = vmax.xlane.f32.xlu0 %v3532
        %v3534 = vpop.xlane.xlu0 %3533
        %v3535 = vsel %vm788, %v3517, -inf
        %3536 = vmax.xlane.f32.xlu0 %v3535
        %v3537 = vpop.xlane.xlu0 %3536
        %v3538 = vsel %vm788, %v3518, -inf
        %3539 = vmax.xlane.f32.xlu0 %v3538
        %v3540 = vpop.xlane.xlu0 %3539
        %v3541 = vsel %vm788, %v3519, -inf
        %3542 = vmax.xlane.f32.xlu0 %v3541
        %v3543 = vpop.xlane.xlu0 %3542
        %v3544 = vsub.f32 %v3512, %v3522
        %v3545 = vsub.f32 %v3513, %v3525
        %v3546 = vsub.f32 %v3514, %v3528
        %v3547 = vsub.f32 %v3515, %v3531
        %v3548 = vsub.f32 %v3516, %v3534
        %v3549 = vsub.f32 %v3517, %v3537
        %v3550 = vsub.f32 %v3518, %v3540
        %v3551 = vsub.f32 %v3519, %v3543
        %v3552 = vmul.f32 %v3544, 1.442695
        %v3553 = vpow.pop %v3552
        %v3554 = vmul.f32 %v3545, 1.442695
        %v3555 = vpow.pop %v3554
        %v3556 = vmul.f32 %v3546, 1.442695
        %v3557 = vpow.pop %v3556
        %v3558 = vmul.f32 %v3547, 1.442695
        %v3559 = vpow.pop %v3558
        %v3560 = vmul.f32 %v3548, 1.442695
        %v3561 = vpow.pop %v3560
        %v3562 = vmul.f32 %v3549, 1.442695
        %v3563 = vpow.pop %v3562
        %v3564 = vmul.f32 %v3550, 1.442695
        %v3565 = vpow.pop %v3564
        %v3566 = vmul.f32 %v3551, 1.442695
        %v3567 = vpow.pop %v3566
        %v3568 = vsel %vm788, %v3553, 0.0
        %3569 = vadd.xlane.f32.xlu0 %v3568
        %v3570 = vpop.xlane.xlu0 %3569
        %v3571 = vsel %vm788, %v3555, 0.0
        %3572 = vadd.xlane.f32.xlu0 %v3571
        %v3573 = vpop.xlane.xlu0 %3572
        %v3574 = vsel %vm788, %v3557, 0.0
        %3575 = vadd.xlane.f32.xlu0 %v3574
        %v3576 = vpop.xlane.xlu0 %3575
        %v3577 = vsel %vm788, %v3559, 0.0
        %3578 = vadd.xlane.f32.xlu0 %v3577
        %v3579 = vpop.xlane.xlu0 %3578
        %v3580 = vsel %vm788, %v3561, 0.0
        %3581 = vadd.xlane.f32.xlu0 %v3580
        %v3582 = vpop.xlane.xlu0 %3581
        %v3583 = vsel %vm788, %v3563, 0.0
        %3584 = vadd.xlane.f32.xlu0 %v3583
        %v3585 = vpop.xlane.xlu0 %3584
        %v3586 = vsel %vm788, %v3565, 0.0
        %3587 = vadd.xlane.f32.xlu0 %v3586
        %v3588 = vpop.xlane.xlu0 %3587
        %v3589 = vsel %vm788, %v3567, 0.0
        %3590 = vadd.xlane.f32.xlu0 %v3589
        %v3591 = vpop.xlane.xlu0 %3590
        %v3592 = vrcp.pop %v3570
        %v3593 = vrcp.pop %v3573
        %v3594 = vrcp.pop %v3576
        %v3595 = vrcp.pop %v3579
        %v3596 = vrcp.pop %v3582
        %v3597 = vrcp.pop %v3585
        %v3598 = vrcp.pop %v3588
        %v3599 = vrcp.pop %v3591
        %v3600 = vmul.f32 %v3570, %v3592
        %v3601 = vmul.f32 %v3573, %v3593
        %v3602 = vmul.f32 %v3576, %v3594
        %v3603 = vmul.f32 %v3579, %v3595
        %v3604 = vmul.f32 %v3582, %v3596
        %v3605 = vmul.f32 %v3585, %v3597
        %v3606 = vmul.f32 %v3588, %v3598
        %v3607 = vmul.f32 %v3591, %v3599
        %v3608 = vsub.f32 2.0, %v3600
        %v3609 = vsub.f32 2.0, %v3601
        %v3610 = vsub.f32 2.0, %v3602
        %v3611 = vsub.f32 2.0, %v3603
        %v3612 = vsub.f32 2.0, %v3604
        %v3613 = vsub.f32 2.0, %v3605
        %v3614 = vsub.f32 2.0, %v3606
        %v3615 = vsub.f32 2.0, %v3607
        %v3616 = vmul.f32 %v3592, %v3608
        %v3617 = vmul.f32 %v3593, %v3609
        %v3618 = vmul.f32 %v3594, %v3610
        %v3619 = vmul.f32 %v3595, %v3611
        %v3620 = vmul.f32 %v3596, %v3612
        %v3621 = vmul.f32 %v3597, %v3613
        %v3622 = vmul.f32 %v3598, %v3614
        %v3623 = vmul.f32 %v3599, %v3615
        %v3624 = vmul.f32 %v3553, %v3616
        %v3625 = vmul.f32 %v3555, %v3617
        %v3626 = vmul.f32 %v3557, %v3618
        %v3627 = vmul.f32 %v3559, %v3619
        %v3628 = vmul.f32 %v3561, %v3620
        %v3629 = vmul.f32 %v3563, %v3621
        %v3630 = vmul.f32 %v3565, %v3622
        %v3631 = vmul.f32 %v3567, %v3623
        %3634 = vrot.lane.b32.xlu0 %v3121, 104
        %v3635 = vpop.permute.xlu0 %3634
        %3636 = vrot.lane.b32.xlu0 %v3122, 104
        %v3637 = vpop.permute.xlu0 %3636
        %v3641 = vsel %vm788, %v3624, 0
        %v3644 = vsel %vm788, %v3625, 0
        %3646 = vmatprep.subr.mxu0 0.0
        %3647 = vmatpush1.msra.mxu0 %v3635
        %3648 = vmatprep.subr.mxu0 0.0
        %3649 = vmatpush1.msra.mxu0 %v3637
        %3650 = vmatprep.subr.mxu0 0.0
        %3651 = vmatpush1.msra.mxu0 0.0
        %3652 = vmatprep.subr.mxu0 0.0
        %3653 = vmatpush1.msra.mxu0 0.0
        %3654 = vmatprep.subr.mxu0 0.0
        %3655 = vmatpush1.msra.mxu0 0.0
        %3656 = vmatprep.subr.mxu0 0.0
        %3657 = vmatpush1.msra.mxu0 0.0
        %3658 = vmatprep.subr.mxu0 0.0
        %3659 = vmatpush1.msra.mxu0 0.0
        %3660 = vmatprep.subr.mxu0 0.0
        %3661 = vmatpush1.msra.mxu0 0.0
        %3662 = vmatprep.subr.mxu0 0.0
        %3663 = vmatpush1.msra.mxu0 0.0
        %3664 = vmatprep.subr.mxu0 0.0
        %3665 = vmatpush1.msra.mxu0 0.0
        %3666 = vmatprep.subr.mxu0 0.0
        %3667 = vmatpush1.msra.mxu0 0.0
        %3668 = vmatprep.subr.mxu0 0.0
        %3669 = vmatpush1.msra.mxu0 0.0
        %3670 = vmatprep.subr.mxu0 0.0
        %3671 = vmatpush1.msra.mxu0 0.0
        %3672 = vmatprep.subr.mxu0 0.0
        %3673 = vmatpush1.msra.mxu0 0.0
        %3674 = vmatprep.subr.mxu0 0.0
        %3675 = vmatpush1.msra.mxu0 0.0
        %3676 = vmatprep.subr.mxu0 0.0
        %3677 = vmatpush1.msra.mxu0 0.0
        %3678 = vmatprep.subr.mxu0 0.0
        %3679 = vmatpush1.msra.mxu0 0.0
        %3680 = vmatprep.subr.mxu0 0.0
        %3681 = vmatpush1.msra.mxu0 0.0
        %3682 = vmatprep.subr.mxu0 0.0
        %3683 = vmatpush1.msra.mxu0 0.0
        %3684 = vmatprep.subr.mxu0 0.0
        %3685 = vmatpush1.msra.mxu0 0.0
        %3686 = vmatprep.subr.mxu0 0.0
        %3687 = vmatpush1.msra.mxu0 0.0
        %3688 = vmatprep.subr.mxu0 0.0
        %3689 = vmatpush1.msra.mxu0 0.0
        %3690 = vmatprep.subr.mxu0 0.0
        %3691 = vmatpush1.msra.mxu0 0.0
        %3692 = vmatprep.subr.mxu0 0.0
        %3693 = vmatpush1.msra.mxu0 0.0
        %3694 = vmatprep.subr.mxu0 0.0
        %3695 = vmatpush1.msra.mxu0 0.0
        %3696 = vmatprep.subr.mxu0 0.0
        %3697 = vmatpush1.msra.mxu0 0.0
        %3698 = vmatprep.subr.mxu0 0.0
        %3699 = vmatpush1.msra.mxu0 0.0
        %3700 = vmatprep.subr.mxu0 0.0
        %3701 = vmatpush1.msra.mxu0 0.0
        %3702 = vmatprep.subr.mxu0 0.0
        %3703 = vmatpush1.msra.mxu0 0.0
        %3704 = vmatprep.subr.mxu0 0.0
        %3705 = vmatpush1.msra.mxu0 0.0
        %3706 = vmatprep.subr.mxu0 0.0
        %3707 = vmatpush1.msra.mxu0 0.0
        %3708 = vmatprep.subr.mxu0 0.0
        %3709 = vmatpush1.msra.mxu0 0.0
        %3710 = vmatprep.mubr.f32.mxu0 0.0
        %3711 = vmatmul.mubr.f32.gmra.mrb[0].mxu0 %v3641
        %v3712 = vpop.f32.mrb[0].mxu0
        %v3713 = vadd.f32 0.0, %v3712
        %v3714 = vpop.f32.mrb[0].mxu0
        %3715 = vmatprep.mubr.f32.mxu0 0.0
        %3716 = vmatmul.mubr.f32.gmra.mrb[0].mxu0 %v3644
        %v3717 = vpop.f32.mrb[0].mxu0
        %v3718 = vadd.f32 0.0, %v3717
        %v3719 = vpop.f32.mrb[0].mxu0
        %3720 = vdwg.mxu0
        %3723 = vrot.lane.b32.xlu0 %v3123, 104
        %v3724 = vpop.permute.xlu0 %3723
        %3725 = vrot.lane.b32.xlu0 %v3124, 104
        %v3726 = vpop.permute.xlu0 %3725
        %v3730 = vsel %vm788, %v3626, 0
        %v3733 = vsel %vm788, %v3627, 0
        %3735 = vmatprep.subr.mxu0 0.0
        %3736 = vmatpush1.msra.mxu0 %v3724
        %3737 = vmatprep.subr.mxu0 0.0
        %3738 = vmatpush1.msra.mxu0 %v3726
        %3739 = vmatprep.subr.mxu0 0.0
        %3740 = vmatpush1.msra.mxu0 0.0
        %3741 = vmatprep.subr.mxu0 0.0
        %3742 = vmatpush1.msra.mxu0 0.0
        %3743 = vmatprep.subr.mxu0 0.0
        %3744 = vmatpush1.msra.mxu0 0.0
        %3745 = vmatprep.subr.mxu0 0.0
        %3746 = vmatpush1.msra.mxu0 0.0
        %3747 = vmatprep.subr.mxu0 0.0
        %3748 = vmatpush1.msra.mxu0 0.0
        %3749 = vmatprep.subr.mxu0 0.0
        %3750 = vmatpush1.msra.mxu0 0.0
        %3751 = vmatprep.subr.mxu0 0.0
        %3752 = vmatpush1.msra.mxu0 0.0
        %3753 = vmatprep.subr.mxu0 0.0
        %3754 = vmatpush1.msra.mxu0 0.0
        %3755 = vmatprep.subr.mxu0 0.0
        %3756 = vmatpush1.msra.mxu0 0.0
        %3757 = vmatprep.subr.mxu0 0.0
        %3758 = vmatpush1.msra.mxu0 0.0
        %3759 = vmatprep.subr.mxu0 0.0
        %3760 = vmatpush1.msra.mxu0 0.0
        %3761 = vmatprep.subr.mxu0 0.0
        %3762 = vmatpush1.msra.mxu0 0.0
        %3763 = vmatprep.subr.mxu0 0.0
        %3764 = vmatpush1.msra.mxu0 0.0
        %3765 = vmatprep.subr.mxu0 0.0
        %3766 = vmatpush1.msra.mxu0 0.0
        %3767 = vmatprep.subr.mxu0 0.0
        %3768 = vmatpush1.msra.mxu0 0.0
        %3769 = vmatprep.subr.mxu0 0.0
        %3770 = vmatpush1.msra.mxu0 0.0
        %3771 = vmatprep.subr.mxu0 0.0
        %3772 = vmatpush1.msra.mxu0 0.0
        %3773 = vmatprep.subr.mxu0 0.0
        %3774 = vmatpush1.msra.mxu0 0.0
        %3775 = vmatprep.subr.mxu0 0.0
        %3776 = vmatpush1.msra.mxu0 0.0
        %3777 = vmatprep.subr.mxu0 0.0
        %3778 = vmatpush1.msra.mxu0 0.0
        %3779 = vmatprep.subr.mxu0 0.0
        %3780 = vmatpush1.msra.mxu0 0.0
        %3781 = vmatprep.subr.mxu0 0.0
        %3782 = vmatpush1.msra.mxu0 0.0
        %3783 = vmatprep.subr.mxu0 0.0
        %3784 = vmatpush1.msra.mxu0 0.0
        %3785 = vmatprep.subr.mxu0 0.0
        %3786 = vmatpush1.msra.mxu0 0.0
        %3787 = vmatprep.subr.mxu0 0.0
        %3788 = vmatpush1.msra.mxu0 0.0
        %3789 = vmatprep.subr.mxu0 0.0
        %3790 = vmatpush1.msra.mxu0 0.0
        %3791 = vmatprep.subr.mxu0 0.0
        %3792 = vmatpush1.msra.mxu0 0.0
        %3793 = vmatprep.subr.mxu0 0.0
        %3794 = vmatpush1.msra.mxu0 0.0
        %3795 = vmatprep.subr.mxu0 0.0
        %3796 = vmatpush1.msra.mxu0 0.0
        %3797 = vmatprep.subr.mxu0 0.0
        %3798 = vmatpush1.msra.mxu0 0.0
        %3799 = vmatprep.mubr.f32.mxu0 0.0
        %3800 = vmatmul.mubr.f32.gmra.mrb[0].mxu0 %v3730
        %v3801 = vpop.f32.mrb[0].mxu0
        %v3802 = vadd.f32 0.0, %v3801
        %v3803 = vpop.f32.mrb[0].mxu0
        %3804 = vmatprep.mubr.f32.mxu0 0.0
        %3805 = vmatmul.mubr.f32.gmra.mrb[0].mxu0 %v3733
        %v3806 = vpop.f32.mrb[0].mxu0
        %v3807 = vadd.f32 0.0, %v3806
        %v3808 = vpop.f32.mrb[0].mxu0
        %3809 = vdwg.mxu0
        %3812 = vrot.lane.b32.xlu0 %v3125, 104
        %v3813 = vpop.permute.xlu0 %3812
        %3814 = vrot.lane.b32.xlu0 %v3126, 104
        %v3815 = vpop.permute.xlu0 %3814
        %v3819 = vsel %vm788, %v3628, 0
        %v3822 = vsel %vm788, %v3629, 0
        %3824 = vmatprep.subr.mxu0 0.0
        %3825 = vmatpush1.msra.mxu0 %v3813
        %3826 = vmatprep.subr.mxu0 0.0
        %3827 = vmatpush1.msra.mxu0 %v3815
        %3828 = vmatprep.subr.mxu0 0.0
        %3829 = vmatpush1.msra.mxu0 0.0
        %3830 = vmatprep.subr.mxu0 0.0
        %3831 = vmatpush1.msra.mxu0 0.0
        %3832 = vmatprep.subr.mxu0 0.0
        %3833 = vmatpush1.msra.mxu0 0.0
        %3834 = vmatprep.subr.mxu0 0.0
        %3835 = vmatpush1.msra.mxu0 0.0
        %3836 = vmatprep.subr.mxu0 0.0
        %3837 = vmatpush1.msra.mxu0 0.0
        %3838 = vmatprep.subr.mxu0 0.0
        %3839 = vmatpush1.msra.mxu0 0.0
        %3840 = vmatprep.subr.mxu0 0.0
        %3841 = vmatpush1.msra.mxu0 0.0
        %3842 = vmatprep.subr.mxu0 0.0
        %3843 = vmatpush1.msra.mxu0 0.0
        %3844 = vmatprep.subr.mxu0 0.0
        %3845 = vmatpush1.msra.mxu0 0.0
        %3846 = vmatprep.subr.mxu0 0.0
        %3847 = vmatpush1.msra.mxu0 0.0
        %3848 = vmatprep.subr.mxu0 0.0
        %3849 = vmatpush1.msra.mxu0 0.0
        %3850 = vmatprep.subr.mxu0 0.0
        %3851 = vmatpush1.msra.mxu0 0.0
        %3852 = vmatprep.subr.mxu0 0.0
        %3853 = vmatpush1.msra.mxu0 0.0
        %3854 = vmatprep.subr.mxu0 0.0
        %3855 = vmatpush1.msra.mxu0 0.0
        %3856 = vmatprep.subr.mxu0 0.0
        %3857 = vmatpush1.msra.mxu0 0.0
        %3858 = vmatprep.subr.mxu0 0.0
        %3859 = vmatpush1.msra.mxu0 0.0
        %3860 = vmatprep.subr.mxu0 0.0
        %3861 = vmatpush1.msra.mxu0 0.0
        %3862 = vmatprep.subr.mxu0 0.0
        %3863 = vmatpush1.msra.mxu0 0.0
        %3864 = vmatprep.subr.mxu0 0.0
        %3865 = vmatpush1.msra.mxu0 0.0
        %3866 = vmatprep.subr.mxu0 0.0
        %3867 = vmatpush1.msra.mxu0 0.0
        %3868 = vmatprep.subr.mxu0 0.0
        %3869 = vmatpush1.msra.mxu0 0.0
        %3870 = vmatprep.subr.mxu0 0.0
        %3871 = vmatpush1.msra.mxu0 0.0
        %3872 = vmatprep.subr.mxu0 0.0
        %3873 = vmatpush1.msra.mxu0 0.0
        %3874 = vmatprep.subr.mxu0 0.0
        %3875 = vmatpush1.msra.mxu0 0.0
        %3876 = vmatprep.subr.mxu0 0.0
        %3877 = vmatpush1.msra.mxu0 0.0
        %3878 = vmatprep.subr.mxu0 0.0
        %3879 = vmatpush1.msra.mxu0 0.0
        %3880 = vmatprep.subr.mxu0 0.0
        %3881 = vmatpush1.msra.mxu0 0.0
        %3882 = vmatprep.subr.mxu0 0.0
        %3883 = vmatpush1.msra.mxu0 0.0
        %3884 = vmatprep.subr.mxu0 0.0
        %3885 = vmatpush1.msra.mxu0 0.0
        %3886 = vmatprep.subr.mxu0 0.0
        %3887 = vmatpush1.msra.mxu0 0.0
        %3888 = vmatprep.mubr.f32.mxu0 0.0
        %3889 = vmatmul.mubr.f32.gmra.mrb[0].mxu0 %v3819
        %v3890 = vpop.f32.mrb[0].mxu0
        %v3891 = vadd.f32 0.0, %v3890
        %v3892 = vpop.f32.mrb[0].mxu0
        %3893 = vmatprep.mubr.f32.mxu0 0.0
        %3894 = vmatmul.mubr.f32.gmra.mrb[0].mxu0 %v3822
        %v3895 = vpop.f32.mrb[0].mxu0
        %v3896 = vadd.f32 0.0, %v3895
        %v3897 = vpop.f32.mrb[0].mxu0
        %3898 = vdwg.mxu0
        %3901 = vrot.lane.b32.xlu0 %v3127, 104
        %v3902 = vpop.permute.xlu0 %3901
        %3903 = vrot.lane.b32.xlu0 %v3128, 104
        %v3904 = vpop.permute.xlu0 %3903
        %v3908 = vsel %vm788, %v3630, 0
        %v3911 = vsel %vm788, %v3631, 0
        %3913 = vmatprep.subr.mxu0 0.0
        %3914 = vmatpush1.msra.mxu0 %v3902
        %3915 = vmatprep.subr.mxu0 0.0
        %3916 = vmatpush1.msra.mxu0 %v3904
        %3917 = vmatprep.subr.mxu0 0.0
        %3918 = vmatpush1.msra.mxu0 0.0
        %3919 = vmatprep.subr.mxu0 0.0
        %3920 = vmatpush1.msra.mxu0 0.0
        %3921 = vmatprep.subr.mxu0 0.0
        %3922 = vmatpush1.msra.mxu0 0.0
        %3923 = vmatprep.subr.mxu0 0.0
        %3924 = vmatpush1.msra.mxu0 0.0
        %3925 = vmatprep.subr.mxu0 0.0
        %3926 = vmatpush1.msra.mxu0 0.0
        %3927 = vmatprep.subr.mxu0 0.0
        %3928 = vmatpush1.msra.mxu0 0.0
        %3929 = vmatprep.subr.mxu0 0.0
        %3930 = vmatpush1.msra.mxu0 0.0
        %3931 = vmatprep.subr.mxu0 0.0
        %3932 = vmatpush1.msra.mxu0 0.0
        %3933 = vmatprep.subr.mxu0 0.0
        %3934 = vmatpush1.msra.mxu0 0.0
        %3935 = vmatprep.subr.mxu0 0.0
        %3936 = vmatpush1.msra.mxu0 0.0
        %3937 = vmatprep.subr.mxu0 0.0
        %3938 = vmatpush1.msra.mxu0 0.0
        %3939 = vmatprep.subr.mxu0 0.0
        %3940 = vmatpush1.msra.mxu0 0.0
        %3941 = vmatprep.subr.mxu0 0.0
        %3942 = vmatpush1.msra.mxu0 0.0
        %3943 = vmatprep.subr.mxu0 0.0
        %3944 = vmatpush1.msra.mxu0 0.0
        %3945 = vmatprep.subr.mxu0 0.0
        %3946 = vmatpush1.msra.mxu0 0.0
        %3947 = vmatprep.subr.mxu0 0.0
        %3948 = vmatpush1.msra.mxu0 0.0
        %3949 = vmatprep.subr.mxu0 0.0
        %3950 = vmatpush1.msra.mxu0 0.0
        %3951 = vmatprep.subr.mxu0 0.0
        %3952 = vmatpush1.msra.mxu0 0.0
        %3953 = vmatprep.subr.mxu0 0.0
        %3954 = vmatpush1.msra.mxu0 0.0
        %3955 = vmatprep.subr.mxu0 0.0
        %3956 = vmatpush1.msra.mxu0 0.0
        %3957 = vmatprep.subr.mxu0 0.0
        %3958 = vmatpush1.msra.mxu0 0.0
        %3959 = vmatprep.subr.mxu0 0.0
        %3960 = vmatpush1.msra.mxu0 0.0
        %3961 = vmatprep.subr.mxu0 0.0
        %3962 = vmatpush1.msra.mxu0 0.0
        %3963 = vmatprep.subr.mxu0 0.0
        %3964 = vmatpush1.msra.mxu0 0.0
        %3965 = vmatprep.subr.mxu0 0.0
        %3966 = vmatpush1.msra.mxu0 0.0
        %3967 = vmatprep.subr.mxu0 0.0
        %3968 = vmatpush1.msra.mxu0 0.0
        %3969 = vmatprep.subr.mxu0 0.0
        %3970 = vmatpush1.msra.mxu0 0.0
        %3971 = vmatprep.subr.mxu0 0.0
        %3972 = vmatpush1.msra.mxu0 0.0
        %3973 = vmatprep.subr.mxu0 0.0
        %3974 = vmatpush1.msra.mxu0 0.0
        %3975 = vmatprep.subr.mxu0 0.0
        %3976 = vmatpush1.msra.mxu0 0.0
        %3977 = vmatprep.mubr.f32.mxu0 0.0
        %3978 = vmatmul.mubr.f32.gmra.mrb[0].mxu0 %v3908
        %v3979 = vpop.f32.mrb[0].mxu0
        %v3980 = vadd.f32 0.0, %v3979
        %v3981 = vpop.f32.mrb[0].mxu0
        %3982 = vmatprep.mubr.f32.mxu0 0.0
        %3983 = vmatmul.mubr.f32.gmra.mrb[0].mxu0 %v3911
        %v3984 = vpop.f32.mrb[0].mxu0
        %v3985 = vadd.f32 0.0, %v3984
        %v3986 = vpop.f32.mrb[0].mxu0
        %3987 = vdwg.mxu0
        %3996 = vrot.lane.b32.xlu0 %v3713, 24
        %v3997 = vpop.permute.xlu0 %3996
        %3998 = vrot.lane.b32.xlu0 %v3718, 24
        %v3999 = vpop.permute.xlu0 %3998
        %4000 = vrot.lane.b32.xlu0 %v3802, 24
        %v4001 = vpop.permute.xlu0 %4000
        %4002 = vrot.lane.b32.xlu0 %v3807, 24
        %v4003 = vpop.permute.xlu0 %4002
        %4004 = vrot.lane.b32.xlu0 %v3891, 24
        %v4005 = vpop.permute.xlu0 %4004
        %4006 = vrot.lane.b32.xlu0 %v3896, 24
        %v4007 = vpop.permute.xlu0 %4006
        %4008 = vrot.lane.b32.xlu0 %v3980, 24
        %v4009 = vpop.permute.xlu0 %4008
        %4010 = vrot.lane.b32.xlu0 %v3985, 24
        %v4011 = vpop.permute.xlu0 %4010
        %vm4020 = vcmask 261312
        %4021 = vst.msk [vmem:[#allocation2] sm:$0xff] %vm4020, %v3997
        %4022 = vst.msk [vmem:[#allocation2 + $0x8] sm:$0xff] %vm4020, %v3999
        %4023 = vst.msk [vmem:[#allocation2 + $0x10] sm:$0xff] %vm4020, %v4001
        %4024 = vst.msk [vmem:[#allocation2 + $0x18] sm:$0xff] %vm4020, %v4003
        %4025 = vst.msk [vmem:[#allocation2 + $0x20] sm:$0xff] %vm4020, %v4005
        %4026 = vst.msk [vmem:[#allocation2 + $0x28] sm:$0xff] %vm4020, %v4007
        %4027 = vst.msk [vmem:[#allocation2 + $0x30] sm:$0xff] %vm4020, %v4009
        %4028 = vst.msk [vmem:[#allocation2 + $0x38] sm:$0xff] %vm4020, %v4011
        %v4029 = vld [vmem:[#allocation2] sm:$0xff]
        %v4030 = vld [vmem:[#allocation2 + $0x8] sm:$0xff]
        %v4031 = vld [vmem:[#allocation2 + $0x10] sm:$0xff]
        %v4032 = vld [vmem:[#allocation2 + $0x18] sm:$0xff]
        %v4033 = vld [vmem:[#allocation2 + $0x20] sm:$0xff]
        %v4034 = vld [vmem:[#allocation2 + $0x28] sm:$0xff]
        %v4035 = vld [vmem:[#allocation2 + $0x30] sm:$0xff]
        %v4036 = vld [vmem:[#allocation2 + $0x38] sm:$0xff]
        %vm4037 = vcmask 261120
        %4038 = vst.msk [vmem:[%s383] sm:$0xff] %vm4037, %v4029
        %4039 = vst.msk [vmem:[%s383 + $0x8] sm:$0xff] %vm4037, %v4030
        %4040 = vst.msk [vmem:[%s383 + $0x10] sm:$0xff] %vm4037, %v4031
        %4041 = vst.msk [vmem:[%s383 + $0x18] sm:$0xff] %vm4037, %v4032
        %4042 = vst.msk [vmem:[%s383 + $0x20] sm:$0xff] %vm4037, %v4033
        %4043 = vst.msk [vmem:[%s383 + $0x28] sm:$0xff] %vm4037, %v4034
        %4044 = vst.msk [vmem:[%s383 + $0x30] sm:$0xff] %vm4037, %v4035
        %4045 = vst.msk [vmem:[%s383 + $0x38] sm:$0xff] %vm4037, %v4036
        %s4046 = sand.u32 %s179, 1
        %s4047 = scalar_lea.sflag [#allocation5], %s4046
        %s4048 = sand.u32 %s179, 1
        %s4049 = smul.addr %s4048, 64
        %s4050 = scalar_lea.vmem [#allocation12], %s4049
        // Predicated region
        $region61: #{tpu_custom_call.1} parent=39 // pred_check
          %p4051 = pneg %p189
        $region62: #{tpu_custom_call.1} parent=39 // pred_check_branch
          %4053 = sbr.rel (%p4051) target = $region64
        $region63: #{tpu_custom_call.1} parent=39 // pred_region
          %s4054 = smul.u32 4, %s30
          %s4056 = ssub.s32 1024, 1024
          %4057 = vsyncadd %s4047, %s4056
          %s4058 = smul.addr %s4054, 2
          %s4059 = sadd.s32 %s31, %s4058
          %s4060 = smul.addr %s4059, 128
          %s4061 = scalar_lea.hbm %s5, %s4060
          %s4062 = sshll.u32 %s4050, 4
          %s4063 = int_to_ptr.vmem [resolvable:$true] %s4062
          %4068 = dma.vmem_to_hbm [thread:$0]  %s4063, 1024, %s4061, %s4047, 128, 128, 8
        $region64: #{tpu_custom_call.1} parent=39 // pred_fallthru
          _
      $region40: #{tpu_custom_call.1} parent=5 // pred_fallthru
        _
      %p4069 = scmp.le.s32.totalorder 2, %s21
      // Predicated region
      $region65: #{tpu_custom_call.1} parent=5 // pred_check
        %p4070 = pneg %p4069
      $region66: #{tpu_custom_call.1} parent=5 // pred_check_branch
        %4072 = sbr.rel (%p4070) target = $region68
      $region67: #{tpu_custom_call.1} parent=5 // pred_region
        %s4073 = ssub.s32 %s21, 2
        // Predicated region
        $region69: #{tpu_custom_call.1} parent=67 // pred_check
          %p4074 = pneg %p195
        $region70: #{tpu_custom_call.1} parent=67 // pred_check_branch
          %4076 = sbr.rel (%p4074) target = $region72
        $region71: #{tpu_custom_call.1} parent=67 // pred_region
          %s4077 = sand.u32 %s180, 1
          %s4078 = scalar_lea.sflag [#allocation5], %s4077
          %s4079 = sand.u32 %s180, 1
          %s4080 = smul.addr %s4079, 64
          %s4081 = scalar_lea.vmem [#allocation12], %s4080
          %4082 = dma.done %s4078, 1024
        $region72: #{tpu_custom_call.1} parent=67 // pred_fallthru
          _
      $region68: #{tpu_custom_call.1} parent=5 // pred_fallthru
        _
    $region6: #{tpu_custom_call.1} parent=1 // loop_footer
      %s25 = sadd.s32 1, %s21
    $region7: #{tpu_custom_call.1} parent=1 // loop_footer_branch
      %20 = sbr.rel target = $region3
    $region8: #{tpu_custom_call.1} parent=1 // loop_exit
      _
    %4083 = vsyncpa [#allocation4], 1
    %s4084 = scalar_lea.sflag [#allocation4], 1
    %4085 = vsyncpa %s4084, 1
    %4086 = vsyncpa [#allocation7], 1
    %s4087 = scalar_lea.sflag [#allocation7], 1
    %4088 = vsyncpa %s4087, 1
    %4089 = vsyncpa [#allocation10], 1
    %4090 = vsyncpa [#allocation5], 1
    %s4091 = scalar_lea.sflag [#allocation5], 1
    %4092 = vsyncpa %s4091, 1

</llo_original>
